<compile_context>
chip_gen: v6e
topology: v6e:2x2x1
jax: 0.10.0
libtpu: 0.0.40
codegen_flags: <defaults>
</compile_context>

<pallas_src>
import math

import numpy as np
import jax
import jax.numpy as jnp
from jax import lax
from jax.experimental import pallas as pl
from jax.experimental.pallas import tpu as pltpu


# ----------------------------------------------------------------------------
# Hilbert curve (identical to the PyTorch module's recursion)
# ----------------------------------------------------------------------------
def hilbert_curve(n):
    if n == 1:
        return np.array([0, 3, 1, 2]).reshape(2, 2)
    hp = hilbert_curve(n - 1)
    tpn = 2 ** n
    tpn_h = tpn // 2
    n_prev = 2 ** (2 * (n - 1))
    board = np.empty((tpn, tpn), dtype=np.int64)
    board[0:tpn_h, 0:tpn_h] = hp.T
    board[tpn_h:tpn, 0:tpn_h] = hp + n_prev
    board[tpn_h:tpn, tpn_h:tpn] = hp + 2 * n_prev
    board[0:tpn_h, tpn_h:tpn] = np.rot90(hp + 3 * n_prev, 2).T
    return board


# ----------------------------------------------------------------------------
# Batch tiling: fill the MXU sublane axis, keep >= 2 grid steps when possible
# (v7x has 2 TensorCores; on v5e/v6e parallel-vs-arbitrary is ~neutral).
# ----------------------------------------------------------------------------
def pick_batch_tile(B, P, target_rows=256):
    cap = max(1, target_rows // P)
    divs = [d for d in range(1, B + 1) if B % d == 0 and d <= cap]
    pref = [d for d in divs if B // d >= 2]
    return max(pref) if pref else max(divs)


# ----------------------------------------------------------------------------
# Fused Pallas kernel: both bidirectional tanh-RNN layers of the ReNet block
# ----------------------------------------------------------------------------
def make_hilbert_renet_kernel(G, B_t, P, F1, H, out_dtype=jnp.float32):
    """Builds a pallas_call computing the full ReNet block.

    Per grid step (one batch tile of B_t images):
      layer 1: rows = (pi, b)  [R = P*B_t sequences], time = pj, features F1
      layer 2: rows = (pj, b)  [R sequences],         time = pi, features 2H
    nn.RNN semantics: h_t = tanh(x_t W_ih^T + b_ih + h_{t-1} W_hh^T + b_hh);
    ReLU is applied to layer-1 *outputs* only (carried hidden stays raw).
    Fwd/bwd directions are fused via block-diagonal (2H,2H) W_hh and a (R,2H)
    carried state, so the serial chain is T steps, not 2T.
    """
    R = P * B_t          # rows carried through both recurrences (batch in M)
    H2 = 2 * H
    F2 = 2 * F1          # wrapper supplies [x_t, x_{T-1-t}] feature concat

    def kernel(x_ref, wih1_ref, whh1_ref, b1_ref,
               wih2_ref, whh2_ref, b2_ref, out_ref, proj_ref, mid_ref):
        # ---------------- layer 1 -------------------------------------------
        # x rows are ordered (pj, pi, b) and carry [feat(pj), feat(P-1-pj)], so
        # ONE block-diagonal bf16 MXU pass yields the fwd+bwd projections
        # already fused and time-major: no per-step concat / reversal on the
        # serial recurrence path.
        xb = x_ref[...].reshape(P * R, F2).astype(jnp.bfloat16)
        p1 = jnp.dot(xb, wih1_ref[...], preferred_element_type=jnp.float32)
        proj_ref[...] = (p1 + b1_ref[...]).reshape(P, R, H2)

        whh1 = whh1_ref[...]

        def step1(t, h):
            z = proj_ref[t] + jnp.dot(h.astype(jnp.bfloat16), whh1,
                                      preferred_element_type=jnp.float32)
            h = jnp.tanh(z)                       # f32 tanh (safe on v5e too)
            hr = jnp.maximum(h, 0.0)              # ReLU on outputs only
            # Natural-position (pi, pj) layout: contiguous full-row slabs per
            # step (no strided / scattered masked stores on the serial chain).
            mid_ref[t, :, 0:H] = hr[:, 0:H]
            mid_ref[P - 1 - t, :, H:H2] = hr[:, H:H2]
            return h

        lax.fori_loop(0, P, step1, jnp.zeros((R, H2), jnp.float32), unroll=True)

        # ---------------- layer 2 -------------------------------------------
        # Inter-layer (pi <-> pj) transpose is paid here ONCE, off the serial
        # chain: rows of mid are pi-major, so each time slab of layer 2 is a
        # pair of contiguous sub-block reads; one K=4H, N=2H matmul per slab
        # builds the fused (fwd @ t, bwd @ P-1-t) projection.
        wih2 = wih2_ref[...]
        b2 = b2_ref[...]
        whh2 = whh2_ref[...]
        for ti in range(P):                       # static prep loop
            gf = mid_ref[:, ti * B_t:(ti + 1) * B_t, :]
            gb = mid_ref[:, (P - 1 - ti) * B_t:(P - ti) * B_t, :]
            g = jnp.concatenate([gf, gb], axis=-1).reshape(R, 2 * H2)
            proj_ref[ti] = jnp.dot(g.astype(jnp.bfloat16), wih2,
                                   preferred_element_type=jnp.float32) + b2

        def step2(t, h):
            z = proj_ref[t] + jnp.dot(h.astype(jnp.bfloat16), whh2,
                                      preferred_element_type=jnp.float32)
            h = jnp.tanh(z)
            # Stream straight into the output block (no epilogue copy, no
            # per-step value lists); halves land at their natural pi slots.
            out_ref[0, t, :, 0:H] = h[:, 0:H].astype(out_ref.dtype)
            out_ref[0, P - 1 - t, :, H:H2] = h[:, H:H2].astype(out_ref.dtype)
            return h

        lax.fori_loop(0, P, step2, jnp.zeros((R, H2), jnp.float32), unroll=True)

    def wspec(shape):
        return pl.BlockSpec(shape, lambda g: (0,) * len(shape))

    return pl.pallas_call(
        kernel,
        out_shape=jax.ShapeDtypeStruct((G, P, R, H2), out_dtype),
        grid=(G,),
        in_specs=[
            pl.BlockSpec((1, P, R, F2), lambda g: (g, 0, 0, 0)),  # x, per batch tile
            wspec((F2, H2)),       # layer-1 W_in, block-diag over [x_t, x_rev]
            wspec((H2, H2)),       # layer-1 W_hh, block-diag fwd/bwd
            wspec((1, H2)),        # layer-1 bias (b_ih + b_hh, fwd|bwd)
            wspec((2 * H2, H2)),   # layer-2 W_in, block-diag over [o_t, o_rev]
            wspec((H2, H2)),       # layer-2 W_hh, block-diag fwd/bwd
            wspec((1, H2)),        # layer-2 bias
        ],
        out_specs=pl.BlockSpec((1, P, R, H2), lambda g: (g, 0, 0, 0)),
        scratch_shapes=[
            pltpu.VMEM((P, R, H2), jnp.float32),   # fused proj (reused by both layers)
            pltpu.VMEM((P, R, H2), jnp.float32),   # layer-1 ReLU outputs (natural layout)
        ],
        compiler_params=pltpu.CompilerParams(
            dimension_semantics=("parallel",),      # batch tiles across cores
        ),
    )


# ----------------------------------------------------------------------------
# Deterministic parameter init (xavier-uniform weights, uniform biases),
# mirroring torch layouts, then fused for the kernel.
# ----------------------------------------------------------------------------
def init_bidi_rnn_params(key, in_size, hidden):
    def xavier(k, fan_in, fan_out, shape):
        lim = math.sqrt(6.0 / (fan_in + fan_out))
        return jax.random.uniform(k, shape, jnp.float32, -lim, lim)

    ks = jax.random.split(key, 10)
    blim = 1.0 / math.sqrt(hidden)
    params = {}
    for d, off in (("f", 0), ("b", 5)):
        w_ih = xavier(ks[off + 0], in_size, hidden, (hidden, in_size))   # torch layout (H, in)
        w_hh = xavier(ks[off + 1], hidden, hidden, (hidden, hidden))
        b_ih = jax.random.uniform(ks[off + 2], (hidden,), jnp.float32, -blim, blim)
        b_hh = jax.random.uniform(ks[off + 3], (hidden,), jnp.float32, -blim, blim)
        params[d] = (w_ih.T,                  # (in, H)  -- x @ W_ih^T
                     w_hh.T,                  # (H, H)   -- h @ W_hh^T
                     (b_ih + b_hh).reshape(1, hidden))
    return params


def fuse_bidi_rnn_params(params, in_size, hidden):
    """W_in -> block-diag (2*in, 2H) acting on [x_t, x_{T-1-t}] features,
       W_hh -> block-diag (2H, 2H), bias -> (1, 2H)."""
    wih_f, whh_f, b_f = params["f"]
    wih_b, whh_b, b_b = params["b"]
    zi = jnp.zeros((in_size, hidden), jnp.float32)
    wih = jnp.concatenate(
        [jnp.concatenate([wih_f, zi], axis=1),
         jnp.concatenate([zi, wih_b], axis=1)], axis=0).astype(jnp.bfloat16)
    zh = jnp.zeros((hidden, hidden), jnp.float32)
    whh = jnp.concatenate(
        [jnp.concatenate([whh_f, zh], axis=1),
         jnp.concatenate([zh, whh_b], axis=1)], axis=0).astype(jnp.bfloat16)
    b = jnp.concatenate([b_f, b_b], axis=1)                               # (1, 2H) f32
    return wih, whh, b


# ----------------------------------------------------------------------------
# Full HilbertReNetLayer forward
# ----------------------------------------------------------------------------
def hilbert_renet_forward(x, fused1, fused2, window_size, hidden_dim):
    B, C, Himg, Wimg = x.shape
    WS = window_size
    P = Himg // WS
    assert Wimg // WS == P, "input is not quadratic"
    log2 = math.log2(P)
    assert log2 % 1 == 0.0, "not of size 2^n"
    F1 = C * WS * WS
    H = hidden_dim

    # --- get_valid_patches: torch unfold + bare .contiguous().view ----------
    # (feature dim is the raw row-major flatten, exactly as in the reference)
    p6 = x.reshape(B, C, P, WS, P, WS).transpose(0, 1, 2, 4, 3, 5)  # (B,C,Pi,Pj,wi,wj)
    patches = p6.reshape(B, F1, P, P)

    # Hilbert reorder of the flattened (Pi,Pj) raster (static numpy permutation).
    index = np.argsort(hilbert_curve(int(log2)), axis=None)
    patches = patches.reshape(B, F1, P * P)[:, :, index].reshape(B, F1, P, P)

    # --- kernel input: (G, pj, pi*B_t + b, 2*F1) -----------------------------
    # The bwd branch's time-reversed copy is concatenated along features here
    # (cheap XLA), so the kernel's single block-diagonal matmul yields the
    # fused time-major projections with zero in-kernel reversal work.
    B_t = pick_batch_tile(B, P)
    G = B // B_t
    pt = jnp.transpose(patches, (3, 2, 0, 1))                  # (pj, pi, B, F1)
    xcat = jnp.concatenate([pt, pt[::-1]], axis=-1)            # (pj, pi, B, 2F1)
    xcat = jnp.transpose(xcat, (2, 0, 1, 3))                   # (B, pj, pi, 2F1)
    xcat = xcat.reshape(G, B_t, P, P, 2 * F1).transpose(0, 2, 3, 1, 4)
    xcat = xcat.reshape(G, P, P * B_t, 2 * F1)                 # rows = pi*B_t + b

    kernel = make_hilbert_renet_kernel(G, B_t, P, F1, H)
    out = kernel(xcat, *fused1, *fused2)                       # (G, pi, pj*B_t+b, 2H)

    # Final feature map: (B, 2*hidden_dim, H/WS, W/WS).
    out = out.reshape(G, P, P, B_t, 2 * H)                     # (g, pi, pj, b, f)
    return jnp.transpose(out, (0, 3, 4, 1, 2)).reshape(B, 2 * H, P, P)


# ----------------------------------------------------------------------------
if __name__ == "__main__":
    window_size = 2
    hidden_dim = 32
    channels = 3
    batch = 2
    img = 16                                  # -> P = 8 patches per side (2^3)

    key = jax.random.PRNGKey(0)
    kx, k1, k2 = jax.random.split(key, 3)

    x = jax.random.normal(kx, (batch, channels, img, img), jnp.float32)

    f1 = window_size * window_size * channels
    p1 = init_bidi_rnn_params(k1, f1, hidden_dim)
    p2 = init_bidi_rnn_params(k2, 2 * hidden_dim, hidden_dim)
    fused1 = fuse_bidi_rnn_params(p1, f1, hidden_dim)
    fused2 = fuse_bidi_rnn_params(p2, 2 * hidden_dim, hidden_dim)

    fwd = jax.jit(hilbert_renet_forward,
                  static_argnames=("window_size", "hidden_dim"))
    out = fwd(x, fused1, fused2, window_size=window_size, hidden_dim=hidden_dim)
    out = jax.block_until_ready(out)

    expected = (batch, 2 * hidden_dim, img // window_size, img // window_size)
    assert out.shape == expected, (out.shape, expected)
    assert bool(jnp.all(jnp.isfinite(out)))
    print("KERNEL_OK")
</pallas_src>

<mosaic_0001>
module attributes {stable_mosaic.version = 11 : i64} {
  func.func @kernel(%arg0: i32, %arg1: memref<1x8x8x24xf32, #tpu.memory_space<vmem>>, %arg2: memref<24x64xbf16, #tpu.memory_space<vmem>>, %arg3: memref<64x64xbf16, #tpu.memory_space<vmem>>, %arg4: memref<1x64xf32, #tpu.memory_space<vmem>>, %arg5: memref<128x64xbf16, #tpu.memory_space<vmem>>, %arg6: memref<64x64xbf16, #tpu.memory_space<vmem>>, %arg7: memref<1x64xf32, #tpu.memory_space<vmem>>, %arg8: memref<1x8x8x64xf32, #tpu.memory_space<vmem>>, %arg9: memref<8x8x64xf32, #tpu.memory_space<vmem>>, %arg10: memref<8x8x64xf32, #tpu.memory_space<vmem>>) attributes {dimension_semantics = [#tpu.dimension_semantics<parallel>], iteration_bounds = array<i64: 2>, scalar_prefetch = 0 : i64, scratch_operands = 2 : i64, tpu.core_type = #tpu.core_type<tc>, window_params = [{transform_indices = @transform_0, window_bounds = array<i64: 1, 8, 8, 24>}, {pipeline_mode = #tpu.pipeline_mode<synchronous>, transform_indices = @transform_1, window_bounds = array<i64: 24, 64>}, {pipeline_mode = #tpu.pipeline_mode<synchronous>, transform_indices = @transform_2, window_bounds = array<i64: 64, 64>}, {pipeline_mode = #tpu.pipeline_mode<synchronous>, transform_indices = @transform_3, window_bounds = array<i64: 1, 64>}, {pipeline_mode = #tpu.pipeline_mode<synchronous>, transform_indices = @transform_4, window_bounds = array<i64: 128, 64>}, {pipeline_mode = #tpu.pipeline_mode<synchronous>, transform_indices = @transform_5, window_bounds = array<i64: 64, 64>}, {pipeline_mode = #tpu.pipeline_mode<synchronous>, transform_indices = @transform_6, window_bounds = array<i64: 1, 64>}, {transform_indices = @transform_7, window_bounds = array<i64: 1, 8, 8, 64>}]} {
    %c0 = arith.constant 0 : index
    %c0_0 = arith.constant 0 : index
    %c0_1 = arith.constant 0 : index
    %c0_2 = arith.constant 0 : index
    %0 = vector.load %arg1[%c0, %c0_0, %c0_1, %c0_2] : memref<1x8x8x24xf32, #tpu.memory_space<vmem>>, vector<1x8x8x24xf32>
    %1 = vector.shape_cast %0 : vector<1x8x8x24xf32> to vector<64x24xf32>
    %2 = arith.truncf %1 : vector<64x24xf32> to vector<64x24xbf16>
    %c0_3 = arith.constant 0 : index
    %c0_4 = arith.constant 0 : index
    %3 = vector.load %arg2[%c0_3, %c0_4] : memref<24x64xbf16, #tpu.memory_space<vmem>>, vector<24x64xbf16>
    %cst = arith.constant dense<0.000000e+00> : vector<64x64xf32>
    %4 = tpu.matmul %2, %3, %cst {dimension_numbers = #tpu.dot_dimension_numbers<[1], [0], [0], [1], [0, 0, 1, 1], [], []>} : vector<64x24xbf16>, vector<24x64xbf16>, vector<64x64xf32> -> vector<64x64xf32>
    %c0_5 = arith.constant 0 : index
    %c0_6 = arith.constant 0 : index
    %5 = vector.load %arg4[%c0_5, %c0_6] : memref<1x64xf32, #tpu.memory_space<vmem>>, vector<1x64xf32>
    %6 = vector.broadcast %5 : vector<1x64xf32> to vector<64x64xf32>
    %7 = arith.addf %4, %6 : vector<64x64xf32>
    %8 = vector.shape_cast %7 : vector<64x64xf32> to vector<8x8x64xf32>
    %c0_7 = arith.constant 0 : index
    %c0_8 = arith.constant 0 : index
    %c0_9 = arith.constant 0 : index
    %9 = vector.load %arg9[%c0_7, %c0_8, %c0_9] : memref<8x8x64xf32, #tpu.memory_space<vmem>>, vector<8x8x64xf32>
    tpu.vector_store %arg9[%c0_7, %c0_8, %c0_9], %8 {strides = array<i32>} : memref<8x8x64xf32, #tpu.memory_space<vmem>>, vector<8x8x64xf32>,
    %c0_10 = arith.constant 0 : index
    %c0_11 = arith.constant 0 : index
    %10 = vector.load %arg3[%c0_10, %c0_11] : memref<64x64xbf16, #tpu.memory_space<vmem>>, vector<64x64xbf16>
    %cst_12 = arith.constant 0.000000e+00 : f32
    %11 = vector.broadcast %cst_12 : f32 to vector<8x64xf32>
    %c0_i32 = arith.constant 0 : i32
    %12 = arith.index_cast %c0_i32 : i32 to index
    %c0_13 = arith.constant 0 : index
    %c0_14 = arith.constant 0 : index
    %13 = vector.load %arg9[%12, %c0_13, %c0_14] : memref<8x8x64xf32, #tpu.memory_space<vmem>>, vector<1x8x64xf32>
    %14 = vector.shape_cast %13 : vector<1x8x64xf32> to vector<8x64xf32>
    %15 = arith.truncf %11 : vector<8x64xf32> to vector<8x64xbf16>
    %cst_15 = arith.constant dense<0.000000e+00> : vector<8x64xf32>
    %16 = tpu.matmul %15, %10, %cst_15 {dimension_numbers = #tpu.dot_dimension_numbers<[1], [0], [0], [1], [0, 0, 1, 1], [], []>} : vector<8x64xbf16>, vector<64x64xbf16>, vector<8x64xf32> -> vector<8x64xf32>
    %17 = arith.addf %14, %16 : vector<8x64xf32>
    %18 = math.tanh %17 : vector<8x64xf32>
    %cst_16 = arith.constant 0.000000e+00 : f32
    %19 = vector.broadcast %cst_16 : f32 to vector<8x64xf32>
    %20 = arith.maximumf %18, %19 : vector<8x64xf32>
    %21 = vector.extract_strided_slice %20 {offsets = [0, 0], sizes = [8, 32], strides = [1, 1]} : vector<8x64xf32> to vector<8x32xf32>
    %22 = arith.index_cast %c0_i32 : i32 to index
    %c0_17 = arith.constant 0 : index
    %c0_18 = arith.constant 0 : index
    %23 = vector.load %arg10[%22, %c0_17, %c0_18] : memref<8x8x64xf32, #tpu.memory_space<vmem>>, vector<1x8x32xf32>
    %24 = vector.shape_cast %23 : vector<1x8x32xf32> to vector<8x32xf32>
    %25 = vector.shape_cast %21 : vector<8x32xf32> to vector<1x8x32xf32>
    tpu.vector_store %arg10[%22, %c0_17, %c0_18], %25 {strides = array<i32>} : memref<8x8x64xf32, #tpu.memory_space<vmem>>, vector<1x8x32xf32>,
    %26 = vector.extract_strided_slice %20 {offsets = [0, 32], sizes = [8, 32], strides = [1, 1]} : vector<8x64xf32> to vector<8x32xf32>
    %c7_i32 = arith.constant 7 : i32
    %27 = arith.subi %c7_i32, %c0_i32 : i32
    %28 = arith.index_cast %27 : i32 to index
    %c0_19 = arith.constant 0 : index
    %c32 = arith.constant 32 : index
    %29 = vector.load %arg10[%28, %c0_19, %c32] : memref<8x8x64xf32, #tpu.memory_space<vmem>>, vector<1x8x32xf32>
    %30 = vector.shape_cast %29 : vector<1x8x32xf32> to vector<8x32xf32>
    %31 = vector.shape_cast %26 : vector<8x32xf32> to vector<1x8x32xf32>
    tpu.vector_store %arg10[%28, %c0_19, %c32], %31 {strides = array<i32>} : memref<8x8x64xf32, #tpu.memory_space<vmem>>, vector<1x8x32xf32>,
    %c1_i32 = arith.constant 1 : i32
    %32 = arith.index_cast %c1_i32 : i32 to index
    %c0_20 = arith.constant 0 : index
    %c0_21 = arith.constant 0 : index
    %33 = vector.load %arg9[%32, %c0_20, %c0_21] : memref<8x8x64xf32, #tpu.memory_space<vmem>>, vector<1x8x64xf32>
    %34 = vector.shape_cast %33 : vector<1x8x64xf32> to vector<8x64xf32>
    %35 = arith.truncf %18 : vector<8x64xf32> to vector<8x64xbf16>
    %cst_22 = arith.constant dense<0.000000e+00> : vector<8x64xf32>
    %36 = tpu.matmul %35, %10, %cst_22 {dimension_numbers = #tpu.dot_dimension_numbers<[1], [0], [0], [1], [0, 0, 1, 1], [], []>} : vector<8x64xbf16>, vector<64x64xbf16>, vector<8x64xf32> -> vector<8x64xf32>
    %37 = arith.addf %34, %36 : vector<8x64xf32>
    %38 = math.tanh %37 : vector<8x64xf32>
    %cst_23 = arith.constant 0.000000e+00 : f32
    %39 = vector.broadcast %cst_23 : f32 to vector<8x64xf32>
    %40 = arith.maximumf %38, %39 : vector<8x64xf32>
    %41 = vector.extract_strided_slice %40 {offsets = [0, 0], sizes = [8, 32], strides = [1, 1]} : vector<8x64xf32> to vector<8x32xf32>
    %42 = arith.index_cast %c1_i32 : i32 to index
    %c0_24 = arith.constant 0 : index
    %c0_25 = arith.constant 0 : index
    %43 = vector.load %arg10[%42, %c0_24, %c0_25] : memref<8x8x64xf32, #tpu.memory_space<vmem>>, vector<1x8x32xf32>
    %44 = vector.shape_cast %43 : vector<1x8x32xf32> to vector<8x32xf32>
    %45 = vector.shape_cast %41 : vector<8x32xf32> to vector<1x8x32xf32>
    tpu.vector_store %arg10[%42, %c0_24, %c0_25], %45 {strides = array<i32>} : memref<8x8x64xf32, #tpu.memory_space<vmem>>, vector<1x8x32xf32>,
    %46 = vector.extract_strided_slice %40 {offsets = [0, 32], sizes = [8, 32], strides = [1, 1]} : vector<8x64xf32> to vector<8x32xf32>
    %c7_i32_26 = arith.constant 7 : i32
    %47 = arith.subi %c7_i32_26, %c1_i32 : i32
    %48 = arith.index_cast %47 : i32 to index
    %c0_27 = arith.constant 0 : index
    %c32_28 = arith.constant 32 : index
    %49 = vector.load %arg10[%48, %c0_27, %c32_28] : memref<8x8x64xf32, #tpu.memory_space<vmem>>, vector<1x8x32xf32>
    %50 = vector.shape_cast %49 : vector<1x8x32xf32> to vector<8x32xf32>
    %51 = vector.shape_cast %46 : vector<8x32xf32> to vector<1x8x32xf32>
    tpu.vector_store %arg10[%48, %c0_27, %c32_28], %51 {strides = array<i32>} : memref<8x8x64xf32, #tpu.memory_space<vmem>>, vector<1x8x32xf32>,
    %c2_i32 = arith.constant 2 : i32
    %52 = arith.index_cast %c2_i32 : i32 to index
    %c0_29 = arith.constant 0 : index
    %c0_30 = arith.constant 0 : index
    %53 = vector.load %arg9[%52, %c0_29, %c0_30] : memref<8x8x64xf32, #tpu.memory_space<vmem>>, vector<1x8x64xf32>
    %54 = vector.shape_cast %53 : vector<1x8x64xf32> to vector<8x64xf32>
    %55 = arith.truncf %38 : vector<8x64xf32> to vector<8x64xbf16>
    %cst_31 = arith.constant dense<0.000000e+00> : vector<8x64xf32>
    %56 = tpu.matmul %55, %10, %cst_31 {dimension_numbers = #tpu.dot_dimension_numbers<[1], [0], [0], [1], [0, 0, 1, 1], [], []>} : vector<8x64xbf16>, vector<64x64xbf16>, vector<8x64xf32> -> vector<8x64xf32>
    %57 = arith.addf %54, %56 : vector<8x64xf32>
    %58 = math.tanh %57 : vector<8x64xf32>
    %cst_32 = arith.constant 0.000000e+00 : f32
    %59 = vector.broadcast %cst_32 : f32 to vector<8x64xf32>
    %60 = arith.maximumf %58, %59 : vector<8x64xf32>
    %61 = vector.extract_strided_slice %60 {offsets = [0, 0], sizes = [8, 32], strides = [1, 1]} : vector<8x64xf32> to vector<8x32xf32>
    %62 = arith.index_cast %c2_i32 : i32 to index
    %c0_33 = arith.constant 0 : index
    %c0_34 = arith.constant 0 : index
    %63 = vector.load %arg10[%62, %c0_33, %c0_34] : memref<8x8x64xf32, #tpu.memory_space<vmem>>, vector<1x8x32xf32>
    %64 = vector.shape_cast %63 : vector<1x8x32xf32> to vector<8x32xf32>
    %65 = vector.shape_cast %61 : vector<8x32xf32> to vector<1x8x32xf32>
    tpu.vector_store %arg10[%62, %c0_33, %c0_34], %65 {strides = array<i32>} : memref<8x8x64xf32, #tpu.memory_space<vmem>>, vector<1x8x32xf32>,
    %66 = vector.extract_strided_slice %60 {offsets = [0, 32], sizes = [8, 32], strides = [1, 1]} : vector<8x64xf32> to vector<8x32xf32>
    %c7_i32_35 = arith.constant 7 : i32
    %67 = arith.subi %c7_i32_35, %c2_i32 : i32
    %68 = arith.index_cast %67 : i32 to index
    %c0_36 = arith.constant 0 : index
    %c32_37 = arith.constant 32 : index
    %69 = vector.load %arg10[%68, %c0_36, %c32_37] : memref<8x8x64xf32, #tpu.memory_space<vmem>>, vector<1x8x32xf32>
    %70 = vector.shape_cast %69 : vector<1x8x32xf32> to vector<8x32xf32>
    %71 = vector.shape_cast %66 : vector<8x32xf32> to vector<1x8x32xf32>
    tpu.vector_store %arg10[%68, %c0_36, %c32_37], %71 {strides = array<i32>} : memref<8x8x64xf32, #tpu.memory_space<vmem>>, vector<1x8x32xf32>,
    %c3_i32 = arith.constant 3 : i32
    %72 = arith.index_cast %c3_i32 : i32 to index
    %c0_38 = arith.constant 0 : index
    %c0_39 = arith.constant 0 : index
    %73 = vector.load %arg9[%72, %c0_38, %c0_39] : memref<8x8x64xf32, #tpu.memory_space<vmem>>, vector<1x8x64xf32>
    %74 = vector.shape_cast %73 : vector<1x8x64xf32> to vector<8x64xf32>
    %75 = arith.truncf %58 : vector<8x64xf32> to vector<8x64xbf16>
    %cst_40 = arith.constant dense<0.000000e+00> : vector<8x64xf32>
    %76 = tpu.matmul %75, %10, %cst_40 {dimension_numbers = #tpu.dot_dimension_numbers<[1], [0], [0], [1], [0, 0, 1, 1], [], []>} : vector<8x64xbf16>, vector<64x64xbf16>, vector<8x64xf32> -> vector<8x64xf32>
    %77 = arith.addf %74, %76 : vector<8x64xf32>
    %78 = math.tanh %77 : vector<8x64xf32>
    %cst_41 = arith.constant 0.000000e+00 : f32
    %79 = vector.broadcast %cst_41 : f32 to vector<8x64xf32>
    %80 = arith.maximumf %78, %79 : vector<8x64xf32>
    %81 = vector.extract_strided_slice %80 {offsets = [0, 0], sizes = [8, 32], strides = [1, 1]} : vector<8x64xf32> to vector<8x32xf32>
    %82 = arith.index_cast %c3_i32 : i32 to index
    %c0_42 = arith.constant 0 : index
    %c0_43 = arith.constant 0 : index
    %83 = vector.load %arg10[%82, %c0_42, %c0_43] : memref<8x8x64xf32, #tpu.memory_space<vmem>>, vector<1x8x32xf32>
    %84 = vector.shape_cast %83 : vector<1x8x32xf32> to vector<8x32xf32>
    %85 = vector.shape_cast %81 : vector<8x32xf32> to vector<1x8x32xf32>
    tpu.vector_store %arg10[%82, %c0_42, %c0_43], %85 {strides = array<i32>} : memref<8x8x64xf32, #tpu.memory_space<vmem>>, vector<1x8x32xf32>,
    %86 = vector.extract_strided_slice %80 {offsets = [0, 32], sizes = [8, 32], strides = [1, 1]} : vector<8x64xf32> to vector<8x32xf32>
    %c7_i32_44 = arith.constant 7 : i32
    %87 = arith.subi %c7_i32_44, %c3_i32 : i32
    %88 = arith.index_cast %87 : i32 to index
    %c0_45 = arith.constant 0 : index
    %c32_46 = arith.constant 32 : index
    %89 = vector.load %arg10[%88, %c0_45, %c32_46] : memref<8x8x64xf32, #tpu.memory_space<vmem>>, vector<1x8x32xf32>
    %90 = vector.shape_cast %89 : vector<1x8x32xf32> to vector<8x32xf32>
    %91 = vector.shape_cast %86 : vector<8x32xf32> to vector<1x8x32xf32>
    tpu.vector_store %arg10[%88, %c0_45, %c32_46], %91 {strides = array<i32>} : memref<8x8x64xf32, #tpu.memory_space<vmem>>, vector<1x8x32xf32>,
    %c4_i32 = arith.constant 4 : i32
    %92 = arith.index_cast %c4_i32 : i32 to index
    %c0_47 = arith.constant 0 : index
    %c0_48 = arith.constant 0 : index
    %93 = vector.load %arg9[%92, %c0_47, %c0_48] : memref<8x8x64xf32, #tpu.memory_space<vmem>>, vector<1x8x64xf32>
    %94 = vector.shape_cast %93 : vector<1x8x64xf32> to vector<8x64xf32>
    %95 = arith.truncf %78 : vector<8x64xf32> to vector<8x64xbf16>
    %cst_49 = arith.constant dense<0.000000e+00> : vector<8x64xf32>
    %96 = tpu.matmul %95, %10, %cst_49 {dimension_numbers = #tpu.dot_dimension_numbers<[1], [0], [0], [1], [0, 0, 1, 1], [], []>} : vector<8x64xbf16>, vector<64x64xbf16>, vector<8x64xf32> -> vector<8x64xf32>
    %97 = arith.addf %94, %96 : vector<8x64xf32>
    %98 = math.tanh %97 : vector<8x64xf32>
    %cst_50 = arith.constant 0.000000e+00 : f32
    %99 = vector.broadcast %cst_50 : f32 to vector<8x64xf32>
    %100 = arith.maximumf %98, %99 : vector<8x64xf32>
    %101 = vector.extract_strided_slice %100 {offsets = [0, 0], sizes = [8, 32], strides = [1, 1]} : vector<8x64xf32> to vector<8x32xf32>
    %102 = arith.index_cast %c4_i32 : i32 to index
    %c0_51 = arith.constant 0 : index
    %c0_52 = arith.constant 0 : index
    %103 = vector.load %arg10[%102, %c0_51, %c0_52] : memref<8x8x64xf32, #tpu.memory_space<vmem>>, vector<1x8x32xf32>
    %104 = vector.shape_cast %103 : vector<1x8x32xf32> to vector<8x32xf32>
    %105 = vector.shape_cast %101 : vector<8x32xf32> to vector<1x8x32xf32>
    tpu.vector_store %arg10[%102, %c0_51, %c0_52], %105 {strides = array<i32>} : memref<8x8x64xf32, #tpu.memory_space<vmem>>, vector<1x8x32xf32>,
    %106 = vector.extract_strided_slice %100 {offsets = [0, 32], sizes = [8, 32], strides = [1, 1]} : vector<8x64xf32> to vector<8x32xf32>
    %c7_i32_53 = arith.constant 7 : i32
    %107 = arith.subi %c7_i32_53, %c4_i32 : i32
    %108 = arith.index_cast %107 : i32 to index
    %c0_54 = arith.constant 0 : index
    %c32_55 = arith.constant 32 : index
    %109 = vector.load %arg10[%108, %c0_54, %c32_55] : memref<8x8x64xf32, #tpu.memory_space<vmem>>, vector<1x8x32xf32>
    %110 = vector.shape_cast %109 : vector<1x8x32xf32> to vector<8x32xf32>
    %111 = vector.shape_cast %106 : vector<8x32xf32> to vector<1x8x32xf32>
    tpu.vector_store %arg10[%108, %c0_54, %c32_55], %111 {strides = array<i32>} : memref<8x8x64xf32, #tpu.memory_space<vmem>>, vector<1x8x32xf32>,
    %c5_i32 = arith.constant 5 : i32
    %112 = arith.index_cast %c5_i32 : i32 to index
    %c0_56 = arith.constant 0 : index
    %c0_57 = arith.constant 0 : index
    %113 = vector.load %arg9[%112, %c0_56, %c0_57] : memref<8x8x64xf32, #tpu.memory_space<vmem>>, vector<1x8x64xf32>
    %114 = vector.shape_cast %113 : vector<1x8x64xf32> to vector<8x64xf32>
    %115 = arith.truncf %98 : vector<8x64xf32> to vector<8x64xbf16>
    %cst_58 = arith.constant dense<0.000000e+00> : vector<8x64xf32>
    %116 = tpu.matmul %115, %10, %cst_58 {dimension_numbers = #tpu.dot_dimension_numbers<[1], [0], [0], [1], [0, 0, 1, 1], [], []>} : vector<8x64xbf16>, vector<64x64xbf16>, vector<8x64xf32> -> vector<8x64xf32>
    %117 = arith.addf %114, %116 : vector<8x64xf32>
    %118 = math.tanh %117 : vector<8x64xf32>
    %cst_59 = arith.constant 0.000000e+00 : f32
    %119 = vector.broadcast %cst_59 : f32 to vector<8x64xf32>
    %120 = arith.maximumf %118, %119 : vector<8x64xf32>
    %121 = vector.extract_strided_slice %120 {offsets = [0, 0], sizes = [8, 32], strides = [1, 1]} : vector<8x64xf32> to vector<8x32xf32>
    %122 = arith.index_cast %c5_i32 : i32 to index
    %c0_60 = arith.constant 0 : index
    %c0_61 = arith.constant 0 : index
    %123 = vector.load %arg10[%122, %c0_60, %c0_61] : memref<8x8x64xf32, #tpu.memory_space<vmem>>, vector<1x8x32xf32>
    %124 = vector.shape_cast %123 : vector<1x8x32xf32> to vector<8x32xf32>
    %125 = vector.shape_cast %121 : vector<8x32xf32> to vector<1x8x32xf32>
    tpu.vector_store %arg10[%122, %c0_60, %c0_61], %125 {strides = array<i32>} : memref<8x8x64xf32, #tpu.memory_space<vmem>>, vector<1x8x32xf32>,
    %126 = vector.extract_strided_slice %120 {offsets = [0, 32], sizes = [8, 32], strides = [1, 1]} : vector<8x64xf32> to vector<8x32xf32>
    %c7_i32_62 = arith.constant 7 : i32
    %127 = arith.subi %c7_i32_62, %c5_i32 : i32
    %128 = arith.index_cast %127 : i32 to index
    %c0_63 = arith.constant 0 : index
    %c32_64 = arith.constant 32 : index
    %129 = vector.load %arg10[%128, %c0_63, %c32_64] : memref<8x8x64xf32, #tpu.memory_space<vmem>>, vector<1x8x32xf32>
    %130 = vector.shape_cast %129 : vector<1x8x32xf32> to vector<8x32xf32>
    %131 = vector.shape_cast %126 : vector<8x32xf32> to vector<1x8x32xf32>
    tpu.vector_store %arg10[%128, %c0_63, %c32_64], %131 {strides = array<i32>} : memref<8x8x64xf32, #tpu.memory_space<vmem>>, vector<1x8x32xf32>,
    %c6_i32 = arith.constant 6 : i32
    %132 = arith.index_cast %c6_i32 : i32 to index
    %c0_65 = arith.constant 0 : index
    %c0_66 = arith.constant 0 : index
    %133 = vector.load %arg9[%132, %c0_65, %c0_66] : memref<8x8x64xf32, #tpu.memory_space<vmem>>, vector<1x8x64xf32>
    %134 = vector.shape_cast %133 : vector<1x8x64xf32> to vector<8x64xf32>
    %135 = arith.truncf %118 : vector<8x64xf32> to vector<8x64xbf16>
    %cst_67 = arith.constant dense<0.000000e+00> : vector<8x64xf32>
    %136 = tpu.matmul %135, %10, %cst_67 {dimension_numbers = #tpu.dot_dimension_numbers<[1], [0], [0], [1], [0, 0, 1, 1], [], []>} : vector<8x64xbf16>, vector<64x64xbf16>, vector<8x64xf32> -> vector<8x64xf32>
    %137 = arith.addf %134, %136 : vector<8x64xf32>
    %138 = math.tanh %137 : vector<8x64xf32>
    %cst_68 = arith.constant 0.000000e+00 : f32
    %139 = vector.broadcast %cst_68 : f32 to vector<8x64xf32>
    %140 = arith.maximumf %138, %139 : vector<8x64xf32>
    %141 = vector.extract_strided_slice %140 {offsets = [0, 0], sizes = [8, 32], strides = [1, 1]} : vector<8x64xf32> to vector<8x32xf32>
    %142 = arith.index_cast %c6_i32 : i32 to index
    %c0_69 = arith.constant 0 : index
    %c0_70 = arith.constant 0 : index
    %143 = vector.load %arg10[%142, %c0_69, %c0_70] : memref<8x8x64xf32, #tpu.memory_space<vmem>>, vector<1x8x32xf32>
    %144 = vector.shape_cast %143 : vector<1x8x32xf32> to vector<8x32xf32>
    %145 = vector.shape_cast %141 : vector<8x32xf32> to vector<1x8x32xf32>
    tpu.vector_store %arg10[%142, %c0_69, %c0_70], %145 {strides = array<i32>} : memref<8x8x64xf32, #tpu.memory_space<vmem>>, vector<1x8x32xf32>,
    %146 = vector.extract_strided_slice %140 {offsets = [0, 32], sizes = [8, 32], strides = [1, 1]} : vector<8x64xf32> to vector<8x32xf32>
    %c7_i32_71 = arith.constant 7 : i32
    %147 = arith.subi %c7_i32_71, %c6_i32 : i32
    %148 = arith.index_cast %147 : i32 to index
    %c0_72 = arith.constant 0 : index
    %c32_73 = arith.constant 32 : index
    %149 = vector.load %arg10[%148, %c0_72, %c32_73] : memref<8x8x64xf32, #tpu.memory_space<vmem>>, vector<1x8x32xf32>
    %150 = vector.shape_cast %149 : vector<1x8x32xf32> to vector<8x32xf32>
    %151 = vector.shape_cast %146 : vector<8x32xf32> to vector<1x8x32xf32>
    tpu.vector_store %arg10[%148, %c0_72, %c32_73], %151 {strides = array<i32>} : memref<8x8x64xf32, #tpu.memory_space<vmem>>, vector<1x8x32xf32>,
    %c7_i32_74 = arith.constant 7 : i32
    %152 = arith.index_cast %c7_i32_74 : i32 to index
    %c0_75 = arith.constant 0 : index
    %c0_76 = arith.constant 0 : index
    %153 = vector.load %arg9[%152, %c0_75, %c0_76] : memref<8x8x64xf32, #tpu.memory_space<vmem>>, vector<1x8x64xf32>
    %154 = vector.shape_cast %153 : vector<1x8x64xf32> to vector<8x64xf32>
    %155 = arith.truncf %138 : vector<8x64xf32> to vector<8x64xbf16>
    %cst_77 = arith.constant dense<0.000000e+00> : vector<8x64xf32>
    %156 = tpu.matmul %155, %10, %cst_77 {dimension_numbers = #tpu.dot_dimension_numbers<[1], [0], [0], [1], [0, 0, 1, 1], [], []>} : vector<8x64xbf16>, vector<64x64xbf16>, vector<8x64xf32> -> vector<8x64xf32>
    %157 = arith.addf %154, %156 : vector<8x64xf32>
    %158 = math.tanh %157 : vector<8x64xf32>
    %cst_78 = arith.constant 0.000000e+00 : f32
    %159 = vector.broadcast %cst_78 : f32 to vector<8x64xf32>
    %160 = arith.maximumf %158, %159 : vector<8x64xf32>
    %161 = vector.extract_strided_slice %160 {offsets = [0, 0], sizes = [8, 32], strides = [1, 1]} : vector<8x64xf32> to vector<8x32xf32>
    %162 = arith.index_cast %c7_i32_74 : i32 to index
    %c0_79 = arith.constant 0 : index
    %c0_80 = arith.constant 0 : index
    %163 = vector.load %arg10[%162, %c0_79, %c0_80] : memref<8x8x64xf32, #tpu.memory_space<vmem>>, vector<1x8x32xf32>
    %164 = vector.shape_cast %163 : vector<1x8x32xf32> to vector<8x32xf32>
    %165 = vector.shape_cast %161 : vector<8x32xf32> to vector<1x8x32xf32>
    tpu.vector_store %arg10[%162, %c0_79, %c0_80], %165 {strides = array<i32>} : memref<8x8x64xf32, #tpu.memory_space<vmem>>, vector<1x8x32xf32>,
    %166 = vector.extract_strided_slice %160 {offsets = [0, 32], sizes = [8, 32], strides = [1, 1]} : vector<8x64xf32> to vector<8x32xf32>
    %c7_i32_81 = arith.constant 7 : i32
    %167 = arith.subi %c7_i32_81, %c7_i32_74 : i32
    %168 = arith.index_cast %167 : i32 to index
    %c0_82 = arith.constant 0 : index
    %c32_83 = arith.constant 32 : index
    %169 = vector.load %arg10[%168, %c0_82, %c32_83] : memref<8x8x64xf32, #tpu.memory_space<vmem>>, vector<1x8x32xf32>
    %170 = vector.shape_cast %169 : vector<1x8x32xf32> to vector<8x32xf32>
    %171 = vector.shape_cast %166 : vector<8x32xf32> to vector<1x8x32xf32>
    tpu.vector_store %arg10[%168, %c0_82, %c32_83], %171 {strides = array<i32>} : memref<8x8x64xf32, #tpu.memory_space<vmem>>, vector<1x8x32xf32>,
    %c8_i32 = arith.constant 8 : i32
    %c0_84 = arith.constant 0 : index
    %c0_85 = arith.constant 0 : index
    %172 = vector.load %arg5[%c0_84, %c0_85] : memref<128x64xbf16, #tpu.memory_space<vmem>>, vector<128x64xbf16>
    %c0_86 = arith.constant 0 : index
    %c0_87 = arith.constant 0 : index
    %173 = vector.load %arg7[%c0_86, %c0_87] : memref<1x64xf32, #tpu.memory_space<vmem>>, vector<1x64xf32>
    %c0_88 = arith.constant 0 : index
    %c0_89 = arith.constant 0 : index
    %174 = vector.load %arg6[%c0_88, %c0_89] : memref<64x64xbf16, #tpu.memory_space<vmem>>, vector<64x64xbf16>
    %c0_90 = arith.constant 0 : index
    %c0_91 = arith.constant 0 : index
    %c0_92 = arith.constant 0 : index
    %175 = vector.load %arg10[%c0_90, %c0_91, %c0_92] : memref<8x8x64xf32, #tpu.memory_space<vmem>>, vector<8x1x64xf32>
    %c0_93 = arith.constant 0 : index
    %c7 = arith.constant 7 : index
    %c0_94 = arith.constant 0 : index
    %176 = vector.load %arg10[%c0_93, %c7, %c0_94] : memref<8x8x64xf32, #tpu.memory_space<vmem>>, vector<8x1x64xf32>
    %177 = tpu.concatenate %175, %176 in 2 : vector<8x1x64xf32>, vector<8x1x64xf32> -> vector<8x1x128xf32>
    %178 = vector.shape_cast %177 : vector<8x1x128xf32> to vector<8x128xf32>
    %179 = arith.truncf %178 : vector<8x128xf32> to vector<8x128xbf16>
    %cst_95 = arith.constant dense<0.000000e+00> : vector<8x64xf32>
    %180 = tpu.matmul %179, %172, %cst_95 {dimension_numbers = #tpu.dot_dimension_numbers<[1], [0], [0], [1], [0, 0, 1, 1], [], []>} : vector<8x128xbf16>, vector<128x64xbf16>, vector<8x64xf32> -> vector<8x64xf32>
    %181 = vector.broadcast %173 : vector<1x64xf32> to vector<8x64xf32>
    %182 = arith.addf %180, %181 : vector<8x64xf32>
    %c0_96 = arith.constant 0 : index
    %c0_97 = arith.constant 0 : index
    %c0_98 = arith.constant 0 : index
    %183 = vector.load %arg9[%c0_96, %c0_97, %c0_98] : memref<8x8x64xf32, #tpu.memory_space<vmem>>, vector<1x8x64xf32>
    %184 = vector.shape_cast %183 : vector<1x8x64xf32> to vector<8x64xf32>
    %185 = vector.shape_cast %182 : vector<8x64xf32> to vector<1x8x64xf32>
    tpu.vector_store %arg9[%c0_96, %c0_97, %c0_98], %185 {strides = array<i32>} : memref<8x8x64xf32, #tpu.memory_space<vmem>>, vector<1x8x64xf32>,
    %c0_99 = arith.constant 0 : index
    %c1 = arith.constant 1 : index
    %c0_100 = arith.constant 0 : index
    %186 = vector.load %arg10[%c0_99, %c1, %c0_100] : memref<8x8x64xf32, #tpu.memory_space<vmem>>, vector<8x1x64xf32>
    %c0_101 = arith.constant 0 : index
    %c6 = arith.constant 6 : index
    %c0_102 = arith.constant 0 : index
    %187 = vector.load %arg10[%c0_101, %c6, %c0_102] : memref<8x8x64xf32, #tpu.memory_space<vmem>>, vector<8x1x64xf32>
    %188 = tpu.concatenate %186, %187 in 2 : vector<8x1x64xf32>, vector<8x1x64xf32> -> vector<8x1x128xf32>
    %189 = vector.shape_cast %188 : vector<8x1x128xf32> to vector<8x128xf32>
    %190 = arith.truncf %189 : vector<8x128xf32> to vector<8x128xbf16>
    %cst_103 = arith.constant dense<0.000000e+00> : vector<8x64xf32>
    %191 = tpu.matmul %190, %172, %cst_103 {dimension_numbers = #tpu.dot_dimension_numbers<[1], [0], [0], [1], [0, 0, 1, 1], [], []>} : vector<8x128xbf16>, vector<128x64xbf16>, vector<8x64xf32> -> vector<8x64xf32>
    %192 = vector.broadcast %173 : vector<1x64xf32> to vector<8x64xf32>
    %193 = arith.addf %191, %192 : vector<8x64xf32>
    %c1_104 = arith.constant 1 : index
    %c0_105 = arith.constant 0 : index
    %c0_106 = arith.constant 0 : index
    %194 = vector.load %arg9[%c1_104, %c0_105, %c0_106] : memref<8x8x64xf32, #tpu.memory_space<vmem>>, vector<1x8x64xf32>
    %195 = vector.shape_cast %194 : vector<1x8x64xf32> to vector<8x64xf32>
    %196 = vector.shape_cast %193 : vector<8x64xf32> to vector<1x8x64xf32>
    tpu.vector_store %arg9[%c1_104, %c0_105, %c0_106], %196 {strides = array<i32>} : memref<8x8x64xf32, #tpu.memory_space<vmem>>, vector<1x8x64xf32>,
    %c0_107 = arith.constant 0 : index
    %c2 = arith.constant 2 : index
    %c0_108 = arith.constant 0 : index
    %197 = vector.load %arg10[%c0_107, %c2, %c0_108] : memref<8x8x64xf32, #tpu.memory_space<vmem>>, vector<8x1x64xf32>
    %c0_109 = arith.constant 0 : index
    %c5 = arith.constant 5 : index
    %c0_110 = arith.constant 0 : index
    %198 = vector.load %arg10[%c0_109, %c5, %c0_110] : memref<8x8x64xf32, #tpu.memory_space<vmem>>, vector<8x1x64xf32>
    %199 = tpu.concatenate %197, %198 in 2 : vector<8x1x64xf32>, vector<8x1x64xf32> -> vector<8x1x128xf32>
    %200 = vector.shape_cast %199 : vector<8x1x128xf32> to vector<8x128xf32>
    %201 = arith.truncf %200 : vector<8x128xf32> to vector<8x128xbf16>
    %cst_111 = arith.constant dense<0.000000e+00> : vector<8x64xf32>
    %202 = tpu.matmul %201, %172, %cst_111 {dimension_numbers = #tpu.dot_dimension_numbers<[1], [0], [0], [1], [0, 0, 1, 1], [], []>} : vector<8x128xbf16>, vector<128x64xbf16>, vector<8x64xf32> -> vector<8x64xf32>
    %203 = vector.broadcast %173 : vector<1x64xf32> to vector<8x64xf32>
    %204 = arith.addf %202, %203 : vector<8x64xf32>
    %c2_112 = arith.constant 2 : index
    %c0_113 = arith.constant 0 : index
    %c0_114 = arith.constant 0 : index
    %205 = vector.load %arg9[%c2_112, %c0_113, %c0_114] : memref<8x8x64xf32, #tpu.memory_space<vmem>>, vector<1x8x64xf32>
    %206 = vector.shape_cast %205 : vector<1x8x64xf32> to vector<8x64xf32>
    %207 = vector.shape_cast %204 : vector<8x64xf32> to vector<1x8x64xf32>
    tpu.vector_store %arg9[%c2_112, %c0_113, %c0_114], %207 {strides = array<i32>} : memref<8x8x64xf32, #tpu.memory_space<vmem>>, vector<1x8x64xf32>,
    %c0_115 = arith.constant 0 : index
    %c3 = arith.constant 3 : index
    %c0_116 = arith.constant 0 : index
    %208 = vector.load %arg10[%c0_115, %c3, %c0_116] : memref<8x8x64xf32, #tpu.memory_space<vmem>>, vector<8x1x64xf32>
    %c0_117 = arith.constant 0 : index
    %c4 = arith.constant 4 : index
    %c0_118 = arith.constant 0 : index
    %209 = vector.load %arg10[%c0_117, %c4, %c0_118] : memref<8x8x64xf32, #tpu.memory_space<vmem>>, vector<8x1x64xf32>
    %210 = tpu.concatenate %208, %209 in 2 : vector<8x1x64xf32>, vector<8x1x64xf32> -> vector<8x1x128xf32>
    %211 = vector.shape_cast %210 : vector<8x1x128xf32> to vector<8x128xf32>
    %212 = arith.truncf %211 : vector<8x128xf32> to vector<8x128xbf16>
    %cst_119 = arith.constant dense<0.000000e+00> : vector<8x64xf32>
    %213 = tpu.matmul %212, %172, %cst_119 {dimension_numbers = #tpu.dot_dimension_numbers<[1], [0], [0], [1], [0, 0, 1, 1], [], []>} : vector<8x128xbf16>, vector<128x64xbf16>, vector<8x64xf32> -> vector<8x64xf32>
    %214 = vector.broadcast %173 : vector<1x64xf32> to vector<8x64xf32>
    %215 = arith.addf %213, %214 : vector<8x64xf32>
    %c3_120 = arith.constant 3 : index
    %c0_121 = arith.constant 0 : index
    %c0_122 = arith.constant 0 : index
    %216 = vector.load %arg9[%c3_120, %c0_121, %c0_122] : memref<8x8x64xf32, #tpu.memory_space<vmem>>, vector<1x8x64xf32>
    %217 = vector.shape_cast %216 : vector<1x8x64xf32> to vector<8x64xf32>
    %218 = vector.shape_cast %215 : vector<8x64xf32> to vector<1x8x64xf32>
    tpu.vector_store %arg9[%c3_120, %c0_121, %c0_122], %218 {strides = array<i32>} : memref<8x8x64xf32, #tpu.memory_space<vmem>>, vector<1x8x64xf32>,
    %c0_123 = arith.constant 0 : index
    %c4_124 = arith.constant 4 : index
    %c0_125 = arith.constant 0 : index
    %219 = vector.load %arg10[%c0_123, %c4_124, %c0_125] : memref<8x8x64xf32, #tpu.memory_space<vmem>>, vector<8x1x64xf32>
    %c0_126 = arith.constant 0 : index
    %c3_127 = arith.constant 3 : index
    %c0_128 = arith.constant 0 : index
    %220 = vector.load %arg10[%c0_126, %c3_127, %c0_128] : memref<8x8x64xf32, #tpu.memory_space<vmem>>, vector<8x1x64xf32>
    %221 = tpu.concatenate %219, %220 in 2 : vector<8x1x64xf32>, vector<8x1x64xf32> -> vector<8x1x128xf32>
    %222 = vector.shape_cast %221 : vector<8x1x128xf32> to vector<8x128xf32>
    %223 = arith.truncf %222 : vector<8x128xf32> to vector<8x128xbf16>
    %cst_129 = arith.constant dense<0.000000e+00> : vector<8x64xf32>
    %224 = tpu.matmul %223, %172, %cst_129 {dimension_numbers = #tpu.dot_dimension_numbers<[1], [0], [0], [1], [0, 0, 1, 1], [], []>} : vector<8x128xbf16>, vector<128x64xbf16>, vector<8x64xf32> -> vector<8x64xf32>
    %225 = vector.broadcast %173 : vector<1x64xf32> to vector<8x64xf32>
    %226 = arith.addf %224, %225 : vector<8x64xf32>
    %c4_130 = arith.constant 4 : index
    %c0_131 = arith.constant 0 : index
    %c0_132 = arith.constant 0 : index
    %227 = vector.load %arg9[%c4_130, %c0_131, %c0_132] : memref<8x8x64xf32, #tpu.memory_space<vmem>>, vector<1x8x64xf32>
    %228 = vector.shape_cast %227 : vector<1x8x64xf32> to vector<8x64xf32>
    %229 = vector.shape_cast %226 : vector<8x64xf32> to vector<1x8x64xf32>
    tpu.vector_store %arg9[%c4_130, %c0_131, %c0_132], %229 {strides = array<i32>} : memref<8x8x64xf32, #tpu.memory_space<vmem>>, vector<1x8x64xf32>,
    %c0_133 = arith.constant 0 : index
    %c5_134 = arith.constant 5 : index
    %c0_135 = arith.constant 0 : index
    %230 = vector.load %arg10[%c0_133, %c5_134, %c0_135] : memref<8x8x64xf32, #tpu.memory_space<vmem>>, vector<8x1x64xf32>
    %c0_136 = arith.constant 0 : index
    %c2_137 = arith.constant 2 : index
    %c0_138 = arith.constant 0 : index
    %231 = vector.load %arg10[%c0_136, %c2_137, %c0_138] : memref<8x8x64xf32, #tpu.memory_space<vmem>>, vector<8x1x64xf32>
    %232 = tpu.concatenate %230, %231 in 2 : vector<8x1x64xf32>, vector<8x1x64xf32> -> vector<8x1x128xf32>
    %233 = vector.shape_cast %232 : vector<8x1x128xf32> to vector<8x128xf32>
    %234 = arith.truncf %233 : vector<8x128xf32> to vector<8x128xbf16>
    %cst_139 = arith.constant dense<0.000000e+00> : vector<8x64xf32>
    %235 = tpu.matmul %234, %172, %cst_139 {dimension_numbers = #tpu.dot_dimension_numbers<[1], [0], [0], [1], [0, 0, 1, 1], [], []>} : vector<8x128xbf16>, vector<128x64xbf16>, vector<8x64xf32> -> vector<8x64xf32>
    %236 = vector.broadcast %173 : vector<1x64xf32> to vector<8x64xf32>
    %237 = arith.addf %235, %236 : vector<8x64xf32>
    %c5_140 = arith.constant 5 : index
    %c0_141 = arith.constant 0 : index
    %c0_142 = arith.constant 0 : index
    %238 = vector.load %arg9[%c5_140, %c0_141, %c0_142] : memref<8x8x64xf32, #tpu.memory_space<vmem>>, vector<1x8x64xf32>
    %239 = vector.shape_cast %238 : vector<1x8x64xf32> to vector<8x64xf32>
    %240 = vector.shape_cast %237 : vector<8x64xf32> to vector<1x8x64xf32>
    tpu.vector_store %arg9[%c5_140, %c0_141, %c0_142], %240 {strides = array<i32>} : memref<8x8x64xf32, #tpu.memory_space<vmem>>, vector<1x8x64xf32>,
    %c0_143 = arith.constant 0 : index
    %c6_144 = arith.constant 6 : index
    %c0_145 = arith.constant 0 : index
    %241 = vector.load %arg10[%c0_143, %c6_144, %c0_145] : memref<8x8x64xf32, #tpu.memory_space<vmem>>, vector<8x1x64xf32>
    %c0_146 = arith.constant 0 : index
    %c1_147 = arith.constant 1 : index
    %c0_148 = arith.constant 0 : index
    %242 = vector.load %arg10[%c0_146, %c1_147, %c0_148] : memref<8x8x64xf32, #tpu.memory_space<vmem>>, vector<8x1x64xf32>
    %243 = tpu.concatenate %241, %242 in 2 : vector<8x1x64xf32>, vector<8x1x64xf32> -> vector<8x1x128xf32>
    %244 = vector.shape_cast %243 : vector<8x1x128xf32> to vector<8x128xf32>
    %245 = arith.truncf %244 : vector<8x128xf32> to vector<8x128xbf16>
    %cst_149 = arith.constant dense<0.000000e+00> : vector<8x64xf32>
    %246 = tpu.matmul %245, %172, %cst_149 {dimension_numbers = #tpu.dot_dimension_numbers<[1], [0], [0], [1], [0, 0, 1, 1], [], []>} : vector<8x128xbf16>, vector<128x64xbf16>, vector<8x64xf32> -> vector<8x64xf32>
    %247 = vector.broadcast %173 : vector<1x64xf32> to vector<8x64xf32>
    %248 = arith.addf %246, %247 : vector<8x64xf32>
    %c6_150 = arith.constant 6 : index
    %c0_151 = arith.constant 0 : index
    %c0_152 = arith.constant 0 : index
    %249 = vector.load %arg9[%c6_150, %c0_151, %c0_152] : memref<8x8x64xf32, #tpu.memory_space<vmem>>, vector<1x8x64xf32>
    %250 = vector.shape_cast %249 : vector<1x8x64xf32> to vector<8x64xf32>
    %251 = vector.shape_cast %248 : vector<8x64xf32> to vector<1x8x64xf32>
    tpu.vector_store %arg9[%c6_150, %c0_151, %c0_152], %251 {strides = array<i32>} : memref<8x8x64xf32, #tpu.memory_space<vmem>>, vector<1x8x64xf32>,
    %c0_153 = arith.constant 0 : index
    %c7_154 = arith.constant 7 : index
    %c0_155 = arith.constant 0 : index
    %252 = vector.load %arg10[%c0_153, %c7_154, %c0_155] : memref<8x8x64xf32, #tpu.memory_space<vmem>>, vector<8x1x64xf32>
    %c0_156 = arith.constant 0 : index
    %c0_157 = arith.constant 0 : index
    %c0_158 = arith.constant 0 : index
    %253 = vector.load %arg10[%c0_156, %c0_157, %c0_158] : memref<8x8x64xf32, #tpu.memory_space<vmem>>, vector<8x1x64xf32>
    %254 = tpu.concatenate %252, %253 in 2 : vector<8x1x64xf32>, vector<8x1x64xf32> -> vector<8x1x128xf32>
    %255 = vector.shape_cast %254 : vector<8x1x128xf32> to vector<8x128xf32>
    %256 = arith.truncf %255 : vector<8x128xf32> to vector<8x128xbf16>
    %cst_159 = arith.constant dense<0.000000e+00> : vector<8x64xf32>
    %257 = tpu.matmul %256, %172, %cst_159 {dimension_numbers = #tpu.dot_dimension_numbers<[1], [0], [0], [1], [0, 0, 1, 1], [], []>} : vector<8x128xbf16>, vector<128x64xbf16>, vector<8x64xf32> -> vector<8x64xf32>
    %258 = vector.broadcast %173 : vector<1x64xf32> to vector<8x64xf32>
    %259 = arith.addf %257, %258 : vector<8x64xf32>
    %c7_160 = arith.constant 7 : index
    %c0_161 = arith.constant 0 : index
    %c0_162 = arith.constant 0 : index
    %260 = vector.load %arg9[%c7_160, %c0_161, %c0_162] : memref<8x8x64xf32, #tpu.memory_space<vmem>>, vector<1x8x64xf32>
    %261 = vector.shape_cast %260 : vector<1x8x64xf32> to vector<8x64xf32>
    %262 = vector.shape_cast %259 : vector<8x64xf32> to vector<1x8x64xf32>
    tpu.vector_store %arg9[%c7_160, %c0_161, %c0_162], %262 {strides = array<i32>} : memref<8x8x64xf32, #tpu.memory_space<vmem>>, vector<1x8x64xf32>,
    %cst_163 = arith.constant 0.000000e+00 : f32
    %263 = vector.broadcast %cst_163 : f32 to vector<8x64xf32>
    %c0_i32_164 = arith.constant 0 : i32
    %264 = arith.index_cast %c0_i32_164 : i32 to index
    %c0_165 = arith.constant 0 : index
    %c0_166 = arith.constant 0 : index
    %265 = vector.load %arg9[%264, %c0_165, %c0_166] : memref<8x8x64xf32, #tpu.memory_space<vmem>>, vector<1x8x64xf32>
    %266 = vector.shape_cast %265 : vector<1x8x64xf32> to vector<8x64xf32>
    %267 = arith.truncf %263 : vector<8x64xf32> to vector<8x64xbf16>
    %cst_167 = arith.constant dense<0.000000e+00> : vector<8x64xf32>
    %268 = tpu.matmul %267, %174, %cst_167 {dimension_numbers = #tpu.dot_dimension_numbers<[1], [0], [0], [1], [0, 0, 1, 1], [], []>} : vector<8x64xbf16>, vector<64x64xbf16>, vector<8x64xf32> -> vector<8x64xf32>
    %269 = arith.addf %266, %268 : vector<8x64xf32>
    %270 = math.tanh %269 : vector<8x64xf32>
    %271 = vector.extract_strided_slice %270 {offsets = [0, 0], sizes = [8, 32], strides = [1, 1]} : vector<8x64xf32> to vector<8x32xf32>
    %c0_168 = arith.constant 0 : index
    %272 = arith.index_cast %c0_i32_164 : i32 to index
    %c0_169 = arith.constant 0 : index
    %c0_170 = arith.constant 0 : index
    %273 = vector.load %arg8[%c0_168, %272, %c0_169, %c0_170] : memref<1x8x8x64xf32, #tpu.memory_space<vmem>>, vector<1x1x8x32xf32>
    %274 = vector.shape_cast %273 : vector<1x1x8x32xf32> to vector<8x32xf32>
    %275 = vector.shape_cast %271 : vector<8x32xf32> to vector<1x1x8x32xf32>
    tpu.vector_store %arg8[%c0_168, %272, %c0_169, %c0_170], %275 {strides = array<i32>} : memref<1x8x8x64xf32, #tpu.memory_space<vmem>>, vector<1x1x8x32xf32>,
    %276 = vector.extract_strided_slice %270 {offsets = [0, 32], sizes = [8, 32], strides = [1, 1]} : vector<8x64xf32> to vector<8x32xf32>
    %c7_i32_171 = arith.constant 7 : i32
    %277 = arith.subi %c7_i32_171, %c0_i32_164 : i32
    %c0_172 = arith.constant 0 : index
    %278 = arith.index_cast %277 : i32 to index
    %c0_173 = arith.constant 0 : index
    %c32_174 = arith.constant 32 : index
    %279 = vector.load %arg8[%c0_172, %278, %c0_173, %c32_174] : memref<1x8x8x64xf32, #tpu.memory_space<vmem>>, vector<1x1x8x32xf32>
    %280 = vector.shape_cast %279 : vector<1x1x8x32xf32> to vector<8x32xf32>
    %281 = vector.shape_cast %276 : vector<8x32xf32> to vector<1x1x8x32xf32>
    tpu.vector_store %arg8[%c0_172, %278, %c0_173, %c32_174], %281 {strides = array<i32>} : memref<1x8x8x64xf32, #tpu.memory_space<vmem>>, vector<1x1x8x32xf32>,
    %c1_i32_175 = arith.constant 1 : i32
    %282 = arith.index_cast %c1_i32_175 : i32 to index
    %c0_176 = arith.constant 0 : index
    %c0_177 = arith.constant 0 : index
    %283 = vector.load %arg9[%282, %c0_176, %c0_177] : memref<8x8x64xf32, #tpu.memory_space<vmem>>, vector<1x8x64xf32>
    %284 = vector.shape_cast %283 : vector<1x8x64xf32> to vector<8x64xf32>
    %285 = arith.truncf %270 : vector<8x64xf32> to vector<8x64xbf16>
    %cst_178 = arith.constant dense<0.000000e+00> : vector<8x64xf32>
    %286 = tpu.matmul %285, %174, %cst_178 {dimension_numbers = #tpu.dot_dimension_numbers<[1], [0], [0], [1], [0, 0, 1, 1], [], []>} : vector<8x64xbf16>, vector<64x64xbf16>, vector<8x64xf32> -> vector<8x64xf32>
    %287 = arith.addf %284, %286 : vector<8x64xf32>
    %288 = math.tanh %287 : vector<8x64xf32>
    %289 = vector.extract_strided_slice %288 {offsets = [0, 0], sizes = [8, 32], strides = [1, 1]} : vector<8x64xf32> to vector<8x32xf32>
    %c0_179 = arith.constant 0 : index
    %290 = arith.index_cast %c1_i32_175 : i32 to index
    %c0_180 = arith.constant 0 : index
    %c0_181 = arith.constant 0 : index
    %291 = vector.load %arg8[%c0_179, %290, %c0_180, %c0_181] : memref<1x8x8x64xf32, #tpu.memory_space<vmem>>, vector<1x1x8x32xf32>
    %292 = vector.shape_cast %291 : vector<1x1x8x32xf32> to vector<8x32xf32>
    %293 = vector.shape_cast %289 : vector<8x32xf32> to vector<1x1x8x32xf32>
    tpu.vector_store %arg8[%c0_179, %290, %c0_180, %c0_181], %293 {strides = array<i32>} : memref<1x8x8x64xf32, #tpu.memory_space<vmem>>, vector<1x1x8x32xf32>,
    %294 = vector.extract_strided_slice %288 {offsets = [0, 32], sizes = [8, 32], strides = [1, 1]} : vector<8x64xf32> to vector<8x32xf32>
    %c7_i32_182 = arith.constant 7 : i32
    %295 = arith.subi %c7_i32_182, %c1_i32_175 : i32
    %c0_183 = arith.constant 0 : index
    %296 = arith.index_cast %295 : i32 to index
    %c0_184 = arith.constant 0 : index
    %c32_185 = arith.constant 32 : index
    %297 = vector.load %arg8[%c0_183, %296, %c0_184, %c32_185] : memref<1x8x8x64xf32, #tpu.memory_space<vmem>>, vector<1x1x8x32xf32>
    %298 = vector.shape_cast %297 : vector<1x1x8x32xf32> to vector<8x32xf32>
    %299 = vector.shape_cast %294 : vector<8x32xf32> to vector<1x1x8x32xf32>
    tpu.vector_store %arg8[%c0_183, %296, %c0_184, %c32_185], %299 {strides = array<i32>} : memref<1x8x8x64xf32, #tpu.memory_space<vmem>>, vector<1x1x8x32xf32>,
    %c2_i32_186 = arith.constant 2 : i32
    %300 = arith.index_cast %c2_i32_186 : i32 to index
    %c0_187 = arith.constant 0 : index
    %c0_188 = arith.constant 0 : index
    %301 = vector.load %arg9[%300, %c0_187, %c0_188] : memref<8x8x64xf32, #tpu.memory_space<vmem>>, vector<1x8x64xf32>
    %302 = vector.shape_cast %301 : vector<1x8x64xf32> to vector<8x64xf32>
    %303 = arith.truncf %288 : vector<8x64xf32> to vector<8x64xbf16>
    %cst_189 = arith.constant dense<0.000000e+00> : vector<8x64xf32>
    %304 = tpu.matmul %303, %174, %cst_189 {dimension_numbers = #tpu.dot_dimension_numbers<[1], [0], [0], [1], [0, 0, 1, 1], [], []>} : vector<8x64xbf16>, vector<64x64xbf16>, vector<8x64xf32> -> vector<8x64xf32>
    %305 = arith.addf %302, %304 : vector<8x64xf32>
    %306 = math.tanh %305 : vector<8x64xf32>
    %307 = vector.extract_strided_slice %306 {offsets = [0, 0], sizes = [8, 32], strides = [1, 1]} : vector<8x64xf32> to vector<8x32xf32>
    %c0_190 = arith.constant 0 : index
    %308 = arith.index_cast %c2_i32_186 : i32 to index
    %c0_191 = arith.constant 0 : index
    %c0_192 = arith.constant 0 : index
    %309 = vector.load %arg8[%c0_190, %308, %c0_191, %c0_192] : memref<1x8x8x64xf32, #tpu.memory_space<vmem>>, vector<1x1x8x32xf32>
    %310 = vector.shape_cast %309 : vector<1x1x8x32xf32> to vector<8x32xf32>
    %311 = vector.shape_cast %307 : vector<8x32xf32> to vector<1x1x8x32xf32>
    tpu.vector_store %arg8[%c0_190, %308, %c0_191, %c0_192], %311 {strides = array<i32>} : memref<1x8x8x64xf32, #tpu.memory_space<vmem>>, vector<1x1x8x32xf32>,
    %312 = vector.extract_strided_slice %306 {offsets = [0, 32], sizes = [8, 32], strides = [1, 1]} : vector<8x64xf32> to vector<8x32xf32>
    %c7_i32_193 = arith.constant 7 : i32
    %313 = arith.subi %c7_i32_193, %c2_i32_186 : i32
    %c0_194 = arith.constant 0 : index
    %314 = arith.index_cast %313 : i32 to index
    %c0_195 = arith.constant 0 : index
    %c32_196 = arith.constant 32 : index
    %315 = vector.load %arg8[%c0_194, %314, %c0_195, %c32_196] : memref<1x8x8x64xf32, #tpu.memory_space<vmem>>, vector<1x1x8x32xf32>
    %316 = vector.shape_cast %315 : vector<1x1x8x32xf32> to vector<8x32xf32>
    %317 = vector.shape_cast %312 : vector<8x32xf32> to vector<1x1x8x32xf32>
    tpu.vector_store %arg8[%c0_194, %314, %c0_195, %c32_196], %317 {strides = array<i32>} : memref<1x8x8x64xf32, #tpu.memory_space<vmem>>, vector<1x1x8x32xf32>,
    %c3_i32_197 = arith.constant 3 : i32
    %318 = arith.index_cast %c3_i32_197 : i32 to index
    %c0_198 = arith.constant 0 : index
    %c0_199 = arith.constant 0 : index
    %319 = vector.load %arg9[%318, %c0_198, %c0_199] : memref<8x8x64xf32, #tpu.memory_space<vmem>>, vector<1x8x64xf32>
    %320 = vector.shape_cast %319 : vector<1x8x64xf32> to vector<8x64xf32>
    %321 = arith.truncf %306 : vector<8x64xf32> to vector<8x64xbf16>
    %cst_200 = arith.constant dense<0.000000e+00> : vector<8x64xf32>
    %322 = tpu.matmul %321, %174, %cst_200 {dimension_numbers = #tpu.dot_dimension_numbers<[1], [0], [0], [1], [0, 0, 1, 1], [], []>} : vector<8x64xbf16>, vector<64x64xbf16>, vector<8x64xf32> -> vector<8x64xf32>
    %323 = arith.addf %320, %322 : vector<8x64xf32>
    %324 = math.tanh %323 : vector<8x64xf32>
    %325 = vector.extract_strided_slice %324 {offsets = [0, 0], sizes = [8, 32], strides = [1, 1]} : vector<8x64xf32> to vector<8x32xf32>
    %c0_201 = arith.constant 0 : index
    %326 = arith.index_cast %c3_i32_197 : i32 to index
    %c0_202 = arith.constant 0 : index
    %c0_203 = arith.constant 0 : index
    %327 = vector.load %arg8[%c0_201, %326, %c0_202, %c0_203] : memref<1x8x8x64xf32, #tpu.memory_space<vmem>>, vector<1x1x8x32xf32>
    %328 = vector.shape_cast %327 : vector<1x1x8x32xf32> to vector<8x32xf32>
    %329 = vector.shape_cast %325 : vector<8x32xf32> to vector<1x1x8x32xf32>
    tpu.vector_store %arg8[%c0_201, %326, %c0_202, %c0_203], %329 {strides = array<i32>} : memref<1x8x8x64xf32, #tpu.memory_space<vmem>>, vector<1x1x8x32xf32>,
    %330 = vector.extract_strided_slice %324 {offsets = [0, 32], sizes = [8, 32], strides = [1, 1]} : vector<8x64xf32> to vector<8x32xf32>
    %c7_i32_204 = arith.constant 7 : i32
    %331 = arith.subi %c7_i32_204, %c3_i32_197 : i32
    %c0_205 = arith.constant 0 : index
    %332 = arith.index_cast %331 : i32 to index
    %c0_206 = arith.constant 0 : index
    %c32_207 = arith.constant 32 : index
    %333 = vector.load %arg8[%c0_205, %332, %c0_206, %c32_207] : memref<1x8x8x64xf32, #tpu.memory_space<vmem>>, vector<1x1x8x32xf32>
    %334 = vector.shape_cast %333 : vector<1x1x8x32xf32> to vector<8x32xf32>
    %335 = vector.shape_cast %330 : vector<8x32xf32> to vector<1x1x8x32xf32>
    tpu.vector_store %arg8[%c0_205, %332, %c0_206, %c32_207], %335 {strides = array<i32>} : memref<1x8x8x64xf32, #tpu.memory_space<vmem>>, vector<1x1x8x32xf32>,
    %c4_i32_208 = arith.constant 4 : i32
    %336 = arith.index_cast %c4_i32_208 : i32 to index
    %c0_209 = arith.constant 0 : index
    %c0_210 = arith.constant 0 : index
    %337 = vector.load %arg9[%336, %c0_209, %c0_210] : memref<8x8x64xf32, #tpu.memory_space<vmem>>, vector<1x8x64xf32>
    %338 = vector.shape_cast %337 : vector<1x8x64xf32> to vector<8x64xf32>
    %339 = arith.truncf %324 : vector<8x64xf32> to vector<8x64xbf16>
    %cst_211 = arith.constant dense<0.000000e+00> : vector<8x64xf32>
    %340 = tpu.matmul %339, %174, %cst_211 {dimension_numbers = #tpu.dot_dimension_numbers<[1], [0], [0], [1], [0, 0, 1, 1], [], []>} : vector<8x64xbf16>, vector<64x64xbf16>, vector<8x64xf32> -> vector<8x64xf32>
    %341 = arith.addf %338, %340 : vector<8x64xf32>
    %342 = math.tanh %341 : vector<8x64xf32>
    %343 = vector.extract_strided_slice %342 {offsets = [0, 0], sizes = [8, 32], strides = [1, 1]} : vector<8x64xf32> to vector<8x32xf32>
    %c0_212 = arith.constant 0 : index
    %344 = arith.index_cast %c4_i32_208 : i32 to index
    %c0_213 = arith.constant 0 : index
    %c0_214 = arith.constant 0 : index
    %345 = vector.load %arg8[%c0_212, %344, %c0_213, %c0_214] : memref<1x8x8x64xf32, #tpu.memory_space<vmem>>, vector<1x1x8x32xf32>
    %346 = vector.shape_cast %345 : vector<1x1x8x32xf32> to vector<8x32xf32>
    %347 = vector.shape_cast %343 : vector<8x32xf32> to vector<1x1x8x32xf32>
    tpu.vector_store %arg8[%c0_212, %344, %c0_213, %c0_214], %347 {strides = array<i32>} : memref<1x8x8x64xf32, #tpu.memory_space<vmem>>, vector<1x1x8x32xf32>,
    %348 = vector.extract_strided_slice %342 {offsets = [0, 32], sizes = [8, 32], strides = [1, 1]} : vector<8x64xf32> to vector<8x32xf32>
    %c7_i32_215 = arith.constant 7 : i32
    %349 = arith.subi %c7_i32_215, %c4_i32_208 : i32
    %c0_216 = arith.constant 0 : index
    %350 = arith.index_cast %349 : i32 to index
    %c0_217 = arith.constant 0 : index
    %c32_218 = arith.constant 32 : index
    %351 = vector.load %arg8[%c0_216, %350, %c0_217, %c32_218] : memref<1x8x8x64xf32, #tpu.memory_space<vmem>>, vector<1x1x8x32xf32>
    %352 = vector.shape_cast %351 : vector<1x1x8x32xf32> to vector<8x32xf32>
    %353 = vector.shape_cast %348 : vector<8x32xf32> to vector<1x1x8x32xf32>
    tpu.vector_store %arg8[%c0_216, %350, %c0_217, %c32_218], %353 {strides = array<i32>} : memref<1x8x8x64xf32, #tpu.memory_space<vmem>>, vector<1x1x8x32xf32>,
    %c5_i32_219 = arith.constant 5 : i32
    %354 = arith.index_cast %c5_i32_219 : i32 to index
    %c0_220 = arith.constant 0 : index
    %c0_221 = arith.constant 0 : index
    %355 = vector.load %arg9[%354, %c0_220, %c0_221] : memref<8x8x64xf32, #tpu.memory_space<vmem>>, vector<1x8x64xf32>
    %356 = vector.shape_cast %355 : vector<1x8x64xf32> to vector<8x64xf32>
    %357 = arith.truncf %342 : vector<8x64xf32> to vector<8x64xbf16>
    %cst_222 = arith.constant dense<0.000000e+00> : vector<8x64xf32>
    %358 = tpu.matmul %357, %174, %cst_222 {dimension_numbers = #tpu.dot_dimension_numbers<[1], [0], [0], [1], [0, 0, 1, 1], [], []>} : vector<8x64xbf16>, vector<64x64xbf16>, vector<8x64xf32> -> vector<8x64xf32>
    %359 = arith.addf %356, %358 : vector<8x64xf32>
    %360 = math.tanh %359 : vector<8x64xf32>
    %361 = vector.extract_strided_slice %360 {offsets = [0, 0], sizes = [8, 32], strides = [1, 1]} : vector<8x64xf32> to vector<8x32xf32>
    %c0_223 = arith.constant 0 : index
    %362 = arith.index_cast %c5_i32_219 : i32 to index
    %c0_224 = arith.constant 0 : index
    %c0_225 = arith.constant 0 : index
    %363 = vector.load %arg8[%c0_223, %362, %c0_224, %c0_225] : memref<1x8x8x64xf32, #tpu.memory_space<vmem>>, vector<1x1x8x32xf32>
    %364 = vector.shape_cast %363 : vector<1x1x8x32xf32> to vector<8x32xf32>
    %365 = vector.shape_cast %361 : vector<8x32xf32> to vector<1x1x8x32xf32>
    tpu.vector_store %arg8[%c0_223, %362, %c0_224, %c0_225], %365 {strides = array<i32>} : memref<1x8x8x64xf32, #tpu.memory_space<vmem>>, vector<1x1x8x32xf32>,
    %366 = vector.extract_strided_slice %360 {offsets = [0, 32], sizes = [8, 32], strides = [1, 1]} : vector<8x64xf32> to vector<8x32xf32>
    %c7_i32_226 = arith.constant 7 : i32
    %367 = arith.subi %c7_i32_226, %c5_i32_219 : i32
    %c0_227 = arith.constant 0 : index
    %368 = arith.index_cast %367 : i32 to index
    %c0_228 = arith.constant 0 : index
    %c32_229 = arith.constant 32 : index
    %369 = vector.load %arg8[%c0_227, %368, %c0_228, %c32_229] : memref<1x8x8x64xf32, #tpu.memory_space<vmem>>, vector<1x1x8x32xf32>
    %370 = vector.shape_cast %369 : vector<1x1x8x32xf32> to vector<8x32xf32>
    %371 = vector.shape_cast %366 : vector<8x32xf32> to vector<1x1x8x32xf32>
    tpu.vector_store %arg8[%c0_227, %368, %c0_228, %c32_229], %371 {strides = array<i32>} : memref<1x8x8x64xf32, #tpu.memory_space<vmem>>, vector<1x1x8x32xf32>,
    %c6_i32_230 = arith.constant 6 : i32
    %372 = arith.index_cast %c6_i32_230 : i32 to index
    %c0_231 = arith.constant 0 : index
    %c0_232 = arith.constant 0 : index
    %373 = vector.load %arg9[%372, %c0_231, %c0_232] : memref<8x8x64xf32, #tpu.memory_space<vmem>>, vector<1x8x64xf32>
    %374 = vector.shape_cast %373 : vector<1x8x64xf32> to vector<8x64xf32>
    %375 = arith.truncf %360 : vector<8x64xf32> to vector<8x64xbf16>
    %cst_233 = arith.constant dense<0.000000e+00> : vector<8x64xf32>
    %376 = tpu.matmul %375, %174, %cst_233 {dimension_numbers = #tpu.dot_dimension_numbers<[1], [0], [0], [1], [0, 0, 1, 1], [], []>} : vector<8x64xbf16>, vector<64x64xbf16>, vector<8x64xf32> -> vector<8x64xf32>
    %377 = arith.addf %374, %376 : vector<8x64xf32>
    %378 = math.tanh %377 : vector<8x64xf32>
    %379 = vector.extract_strided_slice %378 {offsets = [0, 0], sizes = [8, 32], strides = [1, 1]} : vector<8x64xf32> to vector<8x32xf32>
    %c0_234 = arith.constant 0 : index
    %380 = arith.index_cast %c6_i32_230 : i32 to index
    %c0_235 = arith.constant 0 : index
    %c0_236 = arith.constant 0 : index
    %381 = vector.load %arg8[%c0_234, %380, %c0_235, %c0_236] : memref<1x8x8x64xf32, #tpu.memory_space<vmem>>, vector<1x1x8x32xf32>
    %382 = vector.shape_cast %381 : vector<1x1x8x32xf32> to vector<8x32xf32>
    %383 = vector.shape_cast %379 : vector<8x32xf32> to vector<1x1x8x32xf32>
    tpu.vector_store %arg8[%c0_234, %380, %c0_235, %c0_236], %383 {strides = array<i32>} : memref<1x8x8x64xf32, #tpu.memory_space<vmem>>, vector<1x1x8x32xf32>,
    %384 = vector.extract_strided_slice %378 {offsets = [0, 32], sizes = [8, 32], strides = [1, 1]} : vector<8x64xf32> to vector<8x32xf32>
    %c7_i32_237 = arith.constant 7 : i32
    %385 = arith.subi %c7_i32_237, %c6_i32_230 : i32
    %c0_238 = arith.constant 0 : index
    %386 = arith.index_cast %385 : i32 to index
    %c0_239 = arith.constant 0 : index
    %c32_240 = arith.constant 32 : index
    %387 = vector.load %arg8[%c0_238, %386, %c0_239, %c32_240] : memref<1x8x8x64xf32, #tpu.memory_space<vmem>>, vector<1x1x8x32xf32>
    %388 = vector.shape_cast %387 : vector<1x1x8x32xf32> to vector<8x32xf32>
    %389 = vector.shape_cast %384 : vector<8x32xf32> to vector<1x1x8x32xf32>
    tpu.vector_store %arg8[%c0_238, %386, %c0_239, %c32_240], %389 {strides = array<i32>} : memref<1x8x8x64xf32, #tpu.memory_space<vmem>>, vector<1x1x8x32xf32>,
    %c7_i32_241 = arith.constant 7 : i32
    %390 = arith.index_cast %c7_i32_241 : i32 to index
    %c0_242 = arith.constant 0 : index
    %c0_243 = arith.constant 0 : index
    %391 = vector.load %arg9[%390, %c0_242, %c0_243] : memref<8x8x64xf32, #tpu.memory_space<vmem>>, vector<1x8x64xf32>
    %392 = vector.shape_cast %391 : vector<1x8x64xf32> to vector<8x64xf32>
    %393 = arith.truncf %378 : vector<8x64xf32> to vector<8x64xbf16>
    %cst_244 = arith.constant dense<0.000000e+00> : vector<8x64xf32>
    %394 = tpu.matmul %393, %174, %cst_244 {dimension_numbers = #tpu.dot_dimension_numbers<[1], [0], [0], [1], [0, 0, 1, 1], [], []>} : vector<8x64xbf16>, vector<64x64xbf16>, vector<8x64xf32> -> vector<8x64xf32>
    %395 = arith.addf %392, %394 : vector<8x64xf32>
    %396 = math.tanh %395 : vector<8x64xf32>
    %397 = vector.extract_strided_slice %396 {offsets = [0, 0], sizes = [8, 32], strides = [1, 1]} : vector<8x64xf32> to vector<8x32xf32>
    %c0_245 = arith.constant 0 : index
    %398 = arith.index_cast %c7_i32_241 : i32 to index
    %c0_246 = arith.constant 0 : index
    %c0_247 = arith.constant 0 : index
    %399 = vector.load %arg8[%c0_245, %398, %c0_246, %c0_247] : memref<1x8x8x64xf32, #tpu.memory_space<vmem>>, vector<1x1x8x32xf32>
    %400 = vector.shape_cast %399 : vector<1x1x8x32xf32> to vector<8x32xf32>
    %401 = vector.shape_cast %397 : vector<8x32xf32> to vector<1x1x8x32xf32>
    tpu.vector_store %arg8[%c0_245, %398, %c0_246, %c0_247], %401 {strides = array<i32>} : memref<1x8x8x64xf32, #tpu.memory_space<vmem>>, vector<1x1x8x32xf32>,
    %402 = vector.extract_strided_slice %396 {offsets = [0, 32], sizes = [8, 32], strides = [1, 1]} : vector<8x64xf32> to vector<8x32xf32>
    %c7_i32_248 = arith.constant 7 : i32
    %403 = arith.subi %c7_i32_248, %c7_i32_241 : i32
    %c0_249 = arith.constant 0 : index
    %404 = arith.index_cast %403 : i32 to index
    %c0_250 = arith.constant 0 : index
    %c32_251 = arith.constant 32 : index
    %405 = vector.load %arg8[%c0_249, %404, %c0_250, %c32_251] : memref<1x8x8x64xf32, #tpu.memory_space<vmem>>, vector<1x1x8x32xf32>
    %406 = vector.shape_cast %405 : vector<1x1x8x32xf32> to vector<8x32xf32>
    %407 = vector.shape_cast %402 : vector<8x32xf32> to vector<1x1x8x32xf32>
    tpu.vector_store %arg8[%c0_249, %404, %c0_250, %c32_251], %407 {strides = array<i32>} : memref<1x8x8x64xf32, #tpu.memory_space<vmem>>, vector<1x1x8x32xf32>,
    %c8_i32_252 = arith.constant 8 : i32
    return
  }
  func.func @transform_0(%arg0: i32) -> (i32, i32, i32, i32) {
    %c0_i32 = arith.constant 0 : i32
    %c0_i32_0 = arith.constant 0 : i32
    %c0_i32_1 = arith.constant 0 : i32
    %c0_i32_2 = arith.constant 0 : i32
    return %arg0, %c0_i32, %c0_i32_0, %c0_i32_1 : i32, i32, i32, i32
  }
  func.func @transform_1(%arg0: i32) -> (i32, i32) {
    %c0_i32 = arith.constant 0 : i32
    %c0_i32_0 = arith.constant 0 : i32
    %c0_i32_1 = arith.constant 0 : i32
    return %c0_i32, %c0_i32_0 : i32, i32
  }
  func.func @transform_2(%arg0: i32) -> (i32, i32) {
    %c0_i32 = arith.constant 0 : i32
    %c0_i32_0 = arith.constant 0 : i32
    %c0_i32_1 = arith.constant 0 : i32
    return %c0_i32, %c0_i32_0 : i32, i32
  }
  func.func @transform_3(%arg0: i32) -> (i32, i32) {
    %c0_i32 = arith.constant 0 : i32
    %c0_i32_0 = arith.constant 0 : i32
    %c0_i32_1 = arith.constant 0 : i32
    return %c0_i32, %c0_i32_0 : i32, i32
  }
  func.func @transform_4(%arg0: i32) -> (i32, i32) {
    %c0_i32 = arith.constant 0 : i32
    %c0_i32_0 = arith.constant 0 : i32
    %c0_i32_1 = arith.constant 0 : i32
    return %c0_i32, %c0_i32_0 : i32, i32
  }
  func.func @transform_5(%arg0: i32) -> (i32, i32) {
    %c0_i32 = arith.constant 0 : i32
    %c0_i32_0 = arith.constant 0 : i32
    %c0_i32_1 = arith.constant 0 : i32
    return %c0_i32, %c0_i32_0 : i32, i32
  }
  func.func @transform_6(%arg0: i32) -> (i32, i32) {
    %c0_i32 = arith.constant 0 : i32
    %c0_i32_0 = arith.constant 0 : i32
    %c0_i32_1 = arith.constant 0 : i32
    return %c0_i32, %c0_i32_0 : i32, i32
  }
  func.func @transform_7(%arg0: i32) -> (i32, i32, i32, i32) {
    %c0_i32 = arith.constant 0 : i32
    %c0_i32_0 = arith.constant 0 : i32
    %c0_i32_1 = arith.constant 0 : i32
    %c0_i32_2 = arith.constant 0 : i32
    return %arg0, %c0_i32, %c0_i32_0, %c0_i32_1 : i32, i32, i32, i32
  }
}

</mosaic_0001>

<llo_original>
// kernel: hilbert_renet_forward.1
$region0: #{hilbert_renet_forward.1}
  #allocation0 [shape = 'u32[]', space=smem, size = 0x4, offset = 0x4, fixed_abs, tag = 'smem constant byte address 0x4 - core index']
  #allocation1 [shape = 'u32[144,128]{1,0:T(1,128)}', space=vmem, size = 0x12000, scoped, tag = 'internal scratch']
  #allocation2 [shape = 'f32[8,8,64]{2,1,0:T(8,128)}', space=vmem, size = 0x8000, scoped, tag = 'scratch operand']
  #allocation3 [shape = 'f32[8,8,64]{2,1,0:T(8,128)}', space=vmem, size = 0x8000, scoped, tag = 'scratch operand']
  %s0 = inlined_call_operand.vmem [shape: f32[2,8,8,24], index: 0, kind: input, shape index: {}]
  %s1 = inlined_call_operand.vmem [shape: bf16[24,64], index: 1, kind: input, shape index: {}]
  %s2 = inlined_call_operand.vmem [shape: bf16[64,64], index: 2, kind: input, shape index: {}]
  %s3 = inlined_call_operand.vmem [shape: f32[1,64], index: 3, kind: input, shape index: {}]
  %s4 = inlined_call_operand.vmem [shape: bf16[128,64], index: 4, kind: input, shape index: {}]
  %s5 = inlined_call_operand.vmem [shape: bf16[64,64], index: 5, kind: input, shape index: {}]
  %s6 = inlined_call_operand.vmem [shape: f32[1,64], index: 6, kind: input, shape index: {}]
  %s7 = inlined_call_operand.hbm [shape: f32[2,8,8,64], index: 7, kind: output, shape index: {}]
  %s8 = sld [smem:[#allocation0]]
  $region61: #{hilbert_renet_forward.1} parent=0
    _
  %s10 = ssub.s32 1, %s8
  %s11 = scalar_select 0, %s10, %s8
  $region1: #{hilbert_renet_forward.1} parent=0
    #allocation4 [shape = 'u8[65536]{0}', space=vmem, size = 0x10000, scoped, tag = 'output window, operand 0']
    #allocation5 [shape = 's32[2]{0}', space=sflag, size = 0x8, scoped, tag = 'scoped memory for hilbert_renet_forward.1']
    %12 = vsyncpa [#allocation5], 0
    %s13 = scalar_lea.sflag [#allocation5], 1
    %14 = vsyncpa %s13, 0
    loop: start=0, step=1, limit=4
    $region2: #{hilbert_renet_forward.1} parent=1 // loop_pre_header
      _
    $region3: #{hilbert_renet_forward.1} parent=1 // loop_header
      %s16 = sphi 0, %s20
      %p17 = scmp.ge.s32.totalorder %s16, 4
      %s26 = sphi 0, %s28
      %s29 = sphi 0, %s26
      %s30 = sphi 0, %s29
      %s46 = sphi 0, %s30
      %s50 = sphi 0, %s50
      %s52 = sphi 0, %s50
      %s53 = sphi 0, %s52
      %s67 = sphi 0, %s53
      %s71 = sphi 0, %s71
      %s73 = sphi 0, %s71
      %s74 = sphi 0, %s73
      %s88 = sphi 0, %s74
      %s92 = sphi 0, %s92
      %s94 = sphi 0, %s92
      %s95 = sphi 0, %s94
      %s109 = sphi 0, %s95
      %s113 = sphi 0, %s113
      %s115 = sphi 0, %s113
      %s116 = sphi 0, %s115
      %s130 = sphi 0, %s116
      %s134 = sphi 0, %s134
      %s136 = sphi 0, %s134
      %s137 = sphi 0, %s136
      %s151 = sphi 0, %s137
      %s155 = sphi 0, %s155
      %s157 = sphi 0, %s155
      %s158 = sphi 0, %s157
      %s172 = sphi 0, %s158
      %s178 = sphi 0, %s180
      %s181 = sphi 0, %s178
      %s182 = sphi 0, %s181
      %s198 = sphi 0, %s182
    $region4: #{hilbert_renet_forward.1} parent=1 // loop_header_branch
      %19 = sbr.rel (%p17) target = $region8
    $region5: #{hilbert_renet_forward.1} parent=1 // loop_body
      %s21 = ssub.s32 %s16, 1
      %s22 = ssub.s32 %s16, 2
      %s23 = sadd.s32 %s16, 1
      %s24 = ssub.s32 %s16, %s23
      %p25 = scmp.eq.s32.totalorder %s24, 0
      %s27 = sadd.s32 %s26, 1
      %s28 = scalar_select %p25, %s26, %s27
      %p31 = pneg %p25
      %p32 = scmp.eq.s32.totalorder %s16, 1
      %p33 = por %p31, %p32
      %p34 = scmp.ne.s32.totalorder %s26, %s29
      %p35 = scmp.eq.s32.totalorder %s16, 0
      %p36 = por %p34, %p35
      %p37 = scmp.ne.s32.totalorder %s26, %s29
      %p38 = scmp.eq.s32.totalorder %s21, 1
      %p39 = por %p37, %p38
      %p40 = scmp.ne.s32.totalorder %s29, %s30
      %p41 = scmp.eq.s32.totalorder %s21, 0
      %p42 = por %p40, %p41
      %p43 = scmp.ne.s32.totalorder %s29, %s30
      %p44 = scmp.eq.s32.totalorder %s22, 1
      %p45 = por %p43, %p44
      %p47 = scmp.ne.s32.totalorder %s30, %s46
      %p48 = scmp.eq.s32.totalorder %s22, 0
      %p49 = por %p47, %p48
      %s51 = sadd.s32 %s50, 1
      %p54 = scmp.eq.s32.totalorder %s16, 1
      %p55 = scmp.ne.s32.totalorder %s50, %s52
      %p56 = scmp.eq.s32.totalorder %s16, 0
      %p57 = por %p55, %p56
      %p58 = scmp.ne.s32.totalorder %s50, %s52
      %p59 = scmp.eq.s32.totalorder %s21, 1
      %p60 = por %p58, %p59
      %p61 = scmp.ne.s32.totalorder %s52, %s53
      %p62 = scmp.eq.s32.totalorder %s21, 0
      %p63 = por %p61, %p62
      %p64 = scmp.ne.s32.totalorder %s52, %s53
      %p65 = scmp.eq.s32.totalorder %s22, 1
      %p66 = por %p64, %p65
      %p68 = scmp.ne.s32.totalorder %s53, %s67
      %p69 = scmp.eq.s32.totalorder %s22, 0
      %p70 = por %p68, %p69
      %s72 = sadd.s32 %s71, 1
      %p75 = scmp.eq.s32.totalorder %s16, 1
      %p76 = scmp.ne.s32.totalorder %s71, %s73
      %p77 = scmp.eq.s32.totalorder %s16, 0
      %p78 = por %p76, %p77
      %p79 = scmp.ne.s32.totalorder %s71, %s73
      %p80 = scmp.eq.s32.totalorder %s21, 1
      %p81 = por %p79, %p80
      %p82 = scmp.ne.s32.totalorder %s73, %s74
      %p83 = scmp.eq.s32.totalorder %s21, 0
      %p84 = por %p82, %p83
      %p85 = scmp.ne.s32.totalorder %s73, %s74
      %p86 = scmp.eq.s32.totalorder %s22, 1
      %p87 = por %p85, %p86
      %p89 = scmp.ne.s32.totalorder %s74, %s88
      %p90 = scmp.eq.s32.totalorder %s22, 0
      %p91 = por %p89, %p90
      %s93 = sadd.s32 %s92, 1
      %p96 = scmp.eq.s32.totalorder %s16, 1
      %p97 = scmp.ne.s32.totalorder %s92, %s94
      %p98 = scmp.eq.s32.totalorder %s16, 0
      %p99 = por %p97, %p98
      %p100 = scmp.ne.s32.totalorder %s92, %s94
      %p101 = scmp.eq.s32.totalorder %s21, 1
      %p102 = por %p100, %p101
      %p103 = scmp.ne.s32.totalorder %s94, %s95
      %p104 = scmp.eq.s32.totalorder %s21, 0
      %p105 = por %p103, %p104
      %p106 = scmp.ne.s32.totalorder %s94, %s95
      %p107 = scmp.eq.s32.totalorder %s22, 1
      %p108 = por %p106, %p107
      %p110 = scmp.ne.s32.totalorder %s95, %s109
      %p111 = scmp.eq.s32.totalorder %s22, 0
      %p112 = por %p110, %p111
      %s114 = sadd.s32 %s113, 1
      %p117 = scmp.eq.s32.totalorder %s16, 1
      %p118 = scmp.ne.s32.totalorder %s113, %s115
      %p119 = scmp.eq.s32.totalorder %s16, 0
      %p120 = por %p118, %p119
      %p121 = scmp.ne.s32.totalorder %s113, %s115
      %p122 = scmp.eq.s32.totalorder %s21, 1
      %p123 = por %p121, %p122
      %p124 = scmp.ne.s32.totalorder %s115, %s116
      %p125 = scmp.eq.s32.totalorder %s21, 0
      %p126 = por %p124, %p125
      %p127 = scmp.ne.s32.totalorder %s115, %s116
      %p128 = scmp.eq.s32.totalorder %s22, 1
      %p129 = por %p127, %p128
      %p131 = scmp.ne.s32.totalorder %s116, %s130
      %p132 = scmp.eq.s32.totalorder %s22, 0
      %p133 = por %p131, %p132
      %s135 = sadd.s32 %s134, 1
      %p138 = scmp.eq.s32.totalorder %s16, 1
      %p139 = scmp.ne.s32.totalorder %s134, %s136
      %p140 = scmp.eq.s32.totalorder %s16, 0
      %p141 = por %p139, %p140
      %p142 = scmp.ne.s32.totalorder %s134, %s136
      %p143 = scmp.eq.s32.totalorder %s21, 1
      %p144 = por %p142, %p143
      %p145 = scmp.ne.s32.totalorder %s136, %s137
      %p146 = scmp.eq.s32.totalorder %s21, 0
      %p147 = por %p145, %p146
      %p148 = scmp.ne.s32.totalorder %s136, %s137
      %p149 = scmp.eq.s32.totalorder %s22, 1
      %p150 = por %p148, %p149
      %p152 = scmp.ne.s32.totalorder %s137, %s151
      %p153 = scmp.eq.s32.totalorder %s22, 0
      %p154 = por %p152, %p153
      %s156 = sadd.s32 %s155, 1
      %p159 = scmp.eq.s32.totalorder %s16, 1
      %p160 = scmp.ne.s32.totalorder %s155, %s157
      %p161 = scmp.eq.s32.totalorder %s16, 0
      %p162 = por %p160, %p161
      %p163 = scmp.ne.s32.totalorder %s155, %s157
      %p164 = scmp.eq.s32.totalorder %s21, 1
      %p165 = por %p163, %p164
      %p166 = scmp.ne.s32.totalorder %s157, %s158
      %p167 = scmp.eq.s32.totalorder %s21, 0
      %p168 = por %p166, %p167
      %p169 = scmp.ne.s32.totalorder %s157, %s158
      %p170 = scmp.eq.s32.totalorder %s22, 1
      %p171 = por %p169, %p170
      %p173 = scmp.ne.s32.totalorder %s158, %s172
      %p174 = scmp.eq.s32.totalorder %s22, 0
      %p175 = por %p173, %p174
      %s176 = ssub.s32 %s16, %s23
      %p177 = scmp.eq.s32.totalorder %s176, 0
      %s179 = sadd.s32 %s178, 1
      %s180 = scalar_select %p177, %s178, %s179
      %p183 = pneg %p177
      %p184 = scmp.eq.s32.totalorder %s16, 1
      %p185 = por %p183, %p184
      %p186 = scmp.ne.s32.totalorder %s178, %s181
      %p187 = scmp.eq.s32.totalorder %s16, 0
      %p188 = por %p186, %p187
      %p189 = scmp.ne.s32.totalorder %s178, %s181
      %p190 = scmp.eq.s32.totalorder %s21, 1
      %p191 = por %p189, %p190
      %p192 = scmp.ne.s32.totalorder %s181, %s182
      %p193 = scmp.eq.s32.totalorder %s21, 0
      %p194 = por %p192, %p193
      %p195 = scmp.ne.s32.totalorder %s181, %s182
      %p196 = scmp.eq.s32.totalorder %s22, 1
      %p197 = por %p195, %p196
      %p199 = scmp.ne.s32.totalorder %s182, %s198
      %p200 = scmp.eq.s32.totalorder %s22, 0
      %p201 = por %p199, %p200
      %p202 = scmp.le.s32.totalorder 1, %s16
      %p203 = scmp.lt.s32.totalorder %s16, 3
      %p204 = pnand %p202, %p203
      %p205 = pneg %p204
      // Predicated region
      $region9: #{hilbert_renet_forward.1} parent=5 // pred_check
        _
      $region10: #{hilbert_renet_forward.1} parent=5 // pred_check_branch
        %207 = sbr.rel (%p204) target = $region12
      $region11: #{hilbert_renet_forward.1} parent=5 // pred_region
        %s208 = ssub.s32 %s16, 1
        // Predicated region
        $region13: #{hilbert_renet_forward.1} parent=11 // pred_check
          %p209 = pneg %p63
        $region14: #{hilbert_renet_forward.1} parent=11 // pred_check_branch
          %211 = sbr.rel (%p209) target = $region16
        $region15: #{hilbert_renet_forward.1} parent=11 // pred_region
          _
        $region16: #{hilbert_renet_forward.1} parent=11 // pred_fallthru
          _
        // Predicated region
        $region17: #{hilbert_renet_forward.1} parent=11 // pred_check
          %p212 = pneg %p84
        $region18: #{hilbert_renet_forward.1} parent=11 // pred_check_branch
          %214 = sbr.rel (%p212) target = $region20
        $region19: #{hilbert_renet_forward.1} parent=11 // pred_region
          _
        $region20: #{hilbert_renet_forward.1} parent=11 // pred_fallthru
          _
        // Predicated region
        $region21: #{hilbert_renet_forward.1} parent=11 // pred_check
          %p215 = pneg %p105
        $region22: #{hilbert_renet_forward.1} parent=11 // pred_check_branch
          %217 = sbr.rel (%p215) target = $region24
        $region23: #{hilbert_renet_forward.1} parent=11 // pred_region
          _
        $region24: #{hilbert_renet_forward.1} parent=11 // pred_fallthru
          _
        // Predicated region
        $region25: #{hilbert_renet_forward.1} parent=11 // pred_check
          %p218 = pneg %p126
        $region26: #{hilbert_renet_forward.1} parent=11 // pred_check_branch
          %220 = sbr.rel (%p218) target = $region28
        $region27: #{hilbert_renet_forward.1} parent=11 // pred_region
          _
        $region28: #{hilbert_renet_forward.1} parent=11 // pred_fallthru
          _
        // Predicated region
        $region29: #{hilbert_renet_forward.1} parent=11 // pred_check
          %p221 = pneg %p147
        $region30: #{hilbert_renet_forward.1} parent=11 // pred_check_branch
          %223 = sbr.rel (%p221) target = $region32
        $region31: #{hilbert_renet_forward.1} parent=11 // pred_region
          _
        $region32: #{hilbert_renet_forward.1} parent=11 // pred_fallthru
          _
        // Predicated region
        $region33: #{hilbert_renet_forward.1} parent=11 // pred_check
          %p224 = pneg %p168
        $region34: #{hilbert_renet_forward.1} parent=11 // pred_check_branch
          %226 = sbr.rel (%p224) target = $region36
        $region35: #{hilbert_renet_forward.1} parent=11 // pred_region
          _
        $region36: #{hilbert_renet_forward.1} parent=11 // pred_fallthru
          _
      $region12: #{hilbert_renet_forward.1} parent=5 // pred_fallthru
        _
      %p227 = scmp.lt.s32.totalorder %s16, 2
      // Predicated region
      $region37: #{hilbert_renet_forward.1} parent=5 // pred_check
        %p228 = pneg %p227
      $region38: #{hilbert_renet_forward.1} parent=5 // pred_check_branch
        %230 = sbr.rel (%p228) target = $region40
      $region39: #{hilbert_renet_forward.1} parent=5 // pred_region
        // Predicated region
        $region41: #{hilbert_renet_forward.1} parent=39 // pred_check
          %p231 = pneg %p36
        $region42: #{hilbert_renet_forward.1} parent=39 // pred_check_branch
          %233 = sbr.rel (%p231) target = $region44
        $region43: #{hilbert_renet_forward.1} parent=39 // pred_region
          %p234 = scmp.lt.s32.totalorder %s16, 1
          %s235 = scalar_select %p234, %s16, 1
          %s236 = smul.addr %s235, 8
          %s237 = smul.addr %s236, 8
          %s238 = scalar_lea.vmem %s0, %s237
        $region44: #{hilbert_renet_forward.1} parent=39 // pred_fallthru
          _
      $region40: #{hilbert_renet_forward.1} parent=5 // pred_fallthru
        _
      %p239 = scmp.le.s32.totalorder 1, %s16
      %p240 = scmp.lt.s32.totalorder %s16, 3
      %p241 = pnand %p239, %p240
      %p242 = pneg %p241
      // Predicated region
      $region45: #{hilbert_renet_forward.1} parent=5 // pred_check
        _
      $region46: #{hilbert_renet_forward.1} parent=5 // pred_check_branch
        %244 = sbr.rel (%p241) target = $region48
      $region47: #{hilbert_renet_forward.1} parent=5 // pred_region
        %s245 = ssub.s32 %s16, 1
        %p246 = scmp.lt.s32.totalorder %s21, 1
        %s247 = scalar_select %p246, %s21, 1
        %s248 = smul.addr %s247, 8
        %s249 = smul.addr %s248, 8
        %s250 = scalar_lea.vmem %s0, %s249
        %p251 = pneg %p42
        %p252 = pneg %p39
        %p253 = pneg %p63
        %p254 = pneg %p60
        %p255 = pneg %p84
        %p256 = pneg %p81
        %p257 = pneg %p105
        %p258 = pneg %p102
        %p259 = pneg %p126
        %p260 = pneg %p123
        %p261 = pneg %p147
        %p262 = pneg %p144
        %p263 = pneg %p168
        %p264 = pneg %p165
        %p265 = pneg %p194
        %p266 = pneg %p191
        %s267 = sand.u32 %s181, 1
        %s268 = scalar_lea.sflag [#allocation5], %s267
        %s269 = sand.u32 %s181, 1
        %s270 = smul.addr %s269, 64
        %s271 = scalar_lea.vmem [#allocation4], %s270
        %p272 = scmp.lt.s32.totalorder %s21, 1
        %s273 = scalar_select %p272, %s21, 1
        %s274 = smul.addr %s273, 8
        %s275 = smul.addr %s274, 8
        %s276 = scalar_lea.vmem %s0, %s275
        %v278 = vld [vmem:[%s276] sm:$0xff]
        %v279 = vld [vmem:[%s276 + $0x8] sm:$0xff]
        %v280 = vld [vmem:[%s276 + $0x10] sm:$0xff]
        %v281 = vld [vmem:[%s276 + $0x18] sm:$0xff]
        %v282 = vld [vmem:[%s276 + $0x20] sm:$0xff]
        %v283 = vld [vmem:[%s276 + $0x28] sm:$0xff]
        %v284 = vld [vmem:[%s276 + $0x30] sm:$0xff]
        %v285 = vld [vmem:[%s276 + $0x38] sm:$0xff]
        %v286 = vpack.c.bf16 %v279, %v278
        %v287 = vpack.c.bf16 %v281, %v280
        %v288 = vpack.c.bf16 %v283, %v282
        %v289 = vpack.c.bf16 %v285, %v284
        %v290 = vld [vmem:[%s1] sm:$0xf]
        %v291 = vld [vmem:[%s1 + $0x4] sm:$0xf]
        %v292 = vld [vmem:[%s1 + $0x8] sm:$0xf]
        %v293 = vld [vmem:[%s3] sm:$0x1]
        %v295 = vlaneseq
        %v296 = vshrl.u32 %v295, 7
        %v297 = vsub.s32 0, %v296
        %v298 = vrot.slane %v293, %v297
        %v303 = vunpack.c.l.b16 %v290
        %v304 = vunpack.c.l.b16 %v291
        %v305 = vunpack.c.l.b16 %v292
        %v306 = vpack.c.b16 %v304, %v303
        %v307 = vpack.c.b16 %v305, %v305
        %vm309 = vcmask 195584
        %v311 = vsel %vm309, %v286, 0
        %v314 = vsel %vm309, %v287, 0
        %v317 = vsel %vm309, %v288, 0
        %v320 = vsel %vm309, %v289, 0
        %vm322 = vcmask 1043456
        %v324 = vsel %vm322, %v307, 0
        %326 = vmatprep.subr.bf16.mxu0 0
        %327 = vmatpush1.bf16.msra.mxu0 0
        %328 = vmatprep.subr.bf16.mxu0 0
        %329 = vmatpush1.bf16.msra.mxu0 0
        %330 = vmatprep.subr.bf16.mxu0 0
        %331 = vmatpush1.bf16.msra.mxu0 0
        %332 = vmatprep.subr.bf16.mxu0 0
        %333 = vmatpush1.bf16.msra.mxu0 0
        %334 = vmatprep.subr.bf16.mxu0 0
        %335 = vmatpush1.bf16.msra.mxu0 0
        %336 = vmatprep.subr.bf16.mxu0 0
        %337 = vmatpush1.bf16.msra.mxu0 0
        %338 = vmatprep.subr.bf16.mxu0 0
        %339 = vmatpush1.bf16.msra.mxu0 %v324
        %340 = vmatprep.subr.bf16.mxu0 0
        %341 = vmatpush1.bf16.msra.mxu0 %v306
        %342 = vmatprep.subr.bf16.mxu0 0
        %343 = vmatpush2.bf16.msra.mxu0 0
        %344 = vmatprep.subr.bf16.mxu0 0
        %345 = vmatpush2.bf16.msra.mxu0 0
        %346 = vmatprep.subr.bf16.mxu0 0
        %347 = vmatpush2.bf16.msra.mxu0 0
        %348 = vmatprep.subr.bf16.mxu0 0
        %349 = vmatpush2.bf16.msra.mxu0 0
        %350 = vmatprep.subr.bf16.mxu0 0
        %351 = vmatpush2.bf16.msra.mxu0 0
        %352 = vmatprep.subr.bf16.mxu0 0
        %353 = vmatpush2.bf16.msra.mxu0 0
        %354 = vmatprep.subr.bf16.mxu0 0
        %355 = vmatpush2.bf16.msra.mxu0 0
        %356 = vmatprep.subr.bf16.mxu0 0
        %357 = vmatpush2.bf16.msra.mxu0 0
        %358 = vmatprep.mubr.bf16.mxu0 0
        %359 = vmatmul.mubr.bf16.gmra.mxu0 %v311
        %v360 = vpop.f32.mrf.mxu0
        %v361 = vadd.f32 %v298, %v360
        %v362 = vpop.f32.mrf.mxu0
        %v363 = vpop.f32.mrf.mxu0
        %v364 = vadd.f32 %v298, %v363
        %v365 = vpop.f32.mrf.mxu0
        %366 = vmatprep.mubr.bf16.mxu0 0
        %367 = vmatmul.mubr.bf16.gmra.mxu0 %v314
        %v368 = vpop.f32.mrf.mxu0
        %v369 = vadd.f32 %v298, %v368
        %v370 = vpop.f32.mrf.mxu0
        %v371 = vpop.f32.mrf.mxu0
        %v372 = vadd.f32 %v298, %v371
        %v373 = vpop.f32.mrf.mxu0
        %374 = vmatprep.mubr.bf16.mxu0 0
        %375 = vmatmul.mubr.bf16.gmra.mxu0 %v317
        %v376 = vpop.f32.mrf.mxu0
        %v377 = vadd.f32 %v298, %v376
        %v378 = vpop.f32.mrf.mxu0
        %v379 = vpop.f32.mrf.mxu0
        %v380 = vadd.f32 %v298, %v379
        %v381 = vpop.f32.mrf.mxu0
        %382 = vmatprep.mubr.bf16.mxu0 0
        %383 = vmatmul.mubr.bf16.gmra.mxu0 %v320
        %v384 = vpop.f32.mrf.mxu0
        %v385 = vadd.f32 %v298, %v384
        %v386 = vpop.f32.mrf.mxu0
        %v387 = vpop.f32.mrf.mxu0
        %v388 = vadd.f32 %v298, %v387
        %v389 = vpop.f32.mrf.mxu0
        %390 = vdwg.mxu0
        %vm391 = vcmask 523264
        %392 = vst.msk [vmem:[#allocation2] sm:$0xff] %vm391, %v361
        %393 = vst.msk [vmem:[#allocation2 + $0x8] sm:$0xff] %vm391, %v364
        %394 = vst.msk [vmem:[#allocation2 + $0x10] sm:$0xff] %vm391, %v369
        %395 = vst.msk [vmem:[#allocation2 + $0x18] sm:$0xff] %vm391, %v372
        %396 = vst.msk [vmem:[#allocation2 + $0x20] sm:$0xff] %vm391, %v377
        %397 = vst.msk [vmem:[#allocation2 + $0x28] sm:$0xff] %vm391, %v380
        %398 = vst.msk [vmem:[#allocation2 + $0x30] sm:$0xff] %vm391, %v385
        %399 = vst.msk [vmem:[#allocation2 + $0x38] sm:$0xff] %vm391, %v388
        %v400 = vld [vmem:[%s2] sm:$0xf]
        %v401 = vld [vmem:[%s2 + $0x4] sm:$0xf]
        %v402 = vld [vmem:[%s2 + $0x8] sm:$0xf]
        %v403 = vld [vmem:[%s2 + $0xc] sm:$0xf]
        %v404 = vld [vmem:[%s2 + $0x10] sm:$0xf]
        %v405 = vld [vmem:[%s2 + $0x14] sm:$0xf]
        %v406 = vld [vmem:[%s2 + $0x18] sm:$0xf]
        %v407 = vld [vmem:[%s2 + $0x1c] sm:$0xf]
        %v408 = vld [vmem:[#allocation2] sm:$0xff]
        %v417 = vunpack.c.l.b16 %v400
        %v418 = vunpack.c.l.b16 %v401
        %v419 = vunpack.c.l.b16 %v402
        %v420 = vunpack.c.l.b16 %v403
        %v421 = vunpack.c.l.b16 %v404
        %v422 = vunpack.c.l.b16 %v405
        %v423 = vunpack.c.l.b16 %v406
        %v424 = vunpack.c.l.b16 %v407
        %v425 = vpack.c.b16 %v418, %v417
        %v426 = vpack.c.b16 %v420, %v419
        %v427 = vpack.c.b16 %v422, %v421
        %v428 = vpack.c.b16 %v424, %v423
        %v434 = vsel %vm391, 0, 0
        %436 = vmatprep.subr.bf16.mxu0 0
        %437 = vmatpush1.bf16.msra.mxu0 0
        %438 = vmatprep.subr.bf16.mxu0 0
        %439 = vmatpush1.bf16.msra.mxu0 0
        %440 = vmatprep.subr.bf16.mxu0 0
        %441 = vmatpush1.bf16.msra.mxu0 0
        %442 = vmatprep.subr.bf16.mxu0 0
        %443 = vmatpush1.bf16.msra.mxu0 0
        %444 = vmatprep.subr.bf16.mxu0 0
        %445 = vmatpush1.bf16.msra.mxu0 %v428
        %446 = vmatprep.subr.bf16.mxu0 0
        %447 = vmatpush1.bf16.msra.mxu0 %v427
        %448 = vmatprep.subr.bf16.mxu0 0
        %449 = vmatpush1.bf16.msra.mxu0 %v426
        %450 = vmatprep.subr.bf16.mxu0 0
        %451 = vmatpush1.bf16.msra.mxu0 %v425
        %452 = vmatprep.subr.bf16.mxu0 0
        %453 = vmatpush2.bf16.msra.mxu0 0
        %454 = vmatprep.subr.bf16.mxu0 0
        %455 = vmatpush2.bf16.msra.mxu0 0
        %456 = vmatprep.subr.bf16.mxu0 0
        %457 = vmatpush2.bf16.msra.mxu0 0
        %458 = vmatprep.subr.bf16.mxu0 0
        %459 = vmatpush2.bf16.msra.mxu0 0
        %460 = vmatprep.subr.bf16.mxu0 0
        %461 = vmatpush2.bf16.msra.mxu0 0
        %462 = vmatprep.subr.bf16.mxu0 0
        %463 = vmatpush2.bf16.msra.mxu0 0
        %464 = vmatprep.subr.bf16.mxu0 0
        %465 = vmatpush2.bf16.msra.mxu0 0
        %466 = vmatprep.subr.bf16.mxu0 0
        %467 = vmatpush2.bf16.msra.mxu0 0
        %468 = vmatprep.mubr.bf16.mxu0 0
        %469 = vmatmul.mubr.bf16.gmra.mxu0 %v434
        %v470 = vpop.f32.mrf.mxu0
        %v471 = vadd.f32 0.0, %v470
        %v472 = vpop.f32.mrf.mxu0
        %v473 = vpop.f32.mrf.mxu0
        %v474 = vpop.f32.mrf.mxu0
        %475 = vdwg.mxu0
        %v476 = vadd.f32 %v408, %v471
        %v477 = vtanh.pop %v476
        %v478 = vmax.f32 %v477, 0.0
        %vm479 = vcmask 261120
        %480 = vst.msk [vmem:[#allocation3] sm:$0xff] %vm479, %v478
        %s481 = scalar_lea.vmem [#allocation3], 56
        %vm482 = vcmask 523520
        %483 = vst.msk [vmem:[%s481] sm:$0xff] %vm482, %v478
        %s484 = scalar_lea.vmem [#allocation2], 8
        %v485 = vld [vmem:[%s484] sm:$0xff]
        %v486 = vpack.c.bf16 %v477, %v477
        %v488 = vsel %vm391, %v486, 0
        %490 = vmatprep.subr.bf16.mxu0 0
        %491 = vmatpush1.bf16.msra.mxu0 0
        %492 = vmatprep.subr.bf16.mxu0 0
        %493 = vmatpush1.bf16.msra.mxu0 0
        %494 = vmatprep.subr.bf16.mxu0 0
        %495 = vmatpush1.bf16.msra.mxu0 0
        %496 = vmatprep.subr.bf16.mxu0 0
        %497 = vmatpush1.bf16.msra.mxu0 0
        %498 = vmatprep.subr.bf16.mxu0 0
        %499 = vmatpush1.bf16.msra.mxu0 %v428
        %500 = vmatprep.subr.bf16.mxu0 0
        %501 = vmatpush1.bf16.msra.mxu0 %v427
        %502 = vmatprep.subr.bf16.mxu0 0
        %503 = vmatpush1.bf16.msra.mxu0 %v426
        %504 = vmatprep.subr.bf16.mxu0 0
        %505 = vmatpush1.bf16.msra.mxu0 %v425
        %506 = vmatprep.subr.bf16.mxu0 0
        %507 = vmatpush2.bf16.msra.mxu0 0
        %508 = vmatprep.subr.bf16.mxu0 0
        %509 = vmatpush2.bf16.msra.mxu0 0
        %510 = vmatprep.subr.bf16.mxu0 0
        %511 = vmatpush2.bf16.msra.mxu0 0
        %512 = vmatprep.subr.bf16.mxu0 0
        %513 = vmatpush2.bf16.msra.mxu0 0
        %514 = vmatprep.subr.bf16.mxu0 0
        %515 = vmatpush2.bf16.msra.mxu0 0
        %516 = vmatprep.subr.bf16.mxu0 0
        %517 = vmatpush2.bf16.msra.mxu0 0
        %518 = vmatprep.subr.bf16.mxu0 0
        %519 = vmatpush2.bf16.msra.mxu0 0
        %520 = vmatprep.subr.bf16.mxu0 0
        %521 = vmatpush2.bf16.msra.mxu0 0
        %522 = vmatprep.mubr.bf16.mxu0 0
        %523 = vmatmul.mubr.bf16.gmra.mxu0 %v488
        %v524 = vpop.f32.mrf.mxu0
        %v525 = vadd.f32 0.0, %v524
        %v526 = vpop.f32.mrf.mxu0
        %v527 = vpop.f32.mrf.mxu0
        %v528 = vpop.f32.mrf.mxu0
        %529 = vdwg.mxu0
        %v530 = vadd.f32 %v485, %v525
        %v531 = vtanh.pop %v530
        %v532 = vmax.f32 %v531, 0.0
        %s533 = scalar_lea.vmem [#allocation3], 8
        %534 = vst.msk [vmem:[%s533] sm:$0xff] %vm479, %v532
        %s535 = scalar_lea.vmem [#allocation3], 48
        %536 = vst.msk [vmem:[%s535] sm:$0xff] %vm482, %v532
        %s537 = scalar_lea.vmem [#allocation2], 16
        %v538 = vld [vmem:[%s537] sm:$0xff]
        %v539 = vpack.c.bf16 %v531, %v531
        %v541 = vsel %vm391, %v539, 0
        %543 = vmatprep.subr.bf16.mxu0 0
        %544 = vmatpush1.bf16.msra.mxu0 0
        %545 = vmatprep.subr.bf16.mxu0 0
        %546 = vmatpush1.bf16.msra.mxu0 0
        %547 = vmatprep.subr.bf16.mxu0 0
        %548 = vmatpush1.bf16.msra.mxu0 0
        %549 = vmatprep.subr.bf16.mxu0 0
        %550 = vmatpush1.bf16.msra.mxu0 0
        %551 = vmatprep.subr.bf16.mxu0 0
        %552 = vmatpush1.bf16.msra.mxu0 %v428
        %553 = vmatprep.subr.bf16.mxu0 0
        %554 = vmatpush1.bf16.msra.mxu0 %v427
        %555 = vmatprep.subr.bf16.mxu0 0
        %556 = vmatpush1.bf16.msra.mxu0 %v426
        %557 = vmatprep.subr.bf16.mxu0 0
        %558 = vmatpush1.bf16.msra.mxu0 %v425
        %559 = vmatprep.subr.bf16.mxu0 0
        %560 = vmatpush2.bf16.msra.mxu0 0
        %561 = vmatprep.subr.bf16.mxu0 0
        %562 = vmatpush2.bf16.msra.mxu0 0
        %563 = vmatprep.subr.bf16.mxu0 0
        %564 = vmatpush2.bf16.msra.mxu0 0
        %565 = vmatprep.subr.bf16.mxu0 0
        %566 = vmatpush2.bf16.msra.mxu0 0
        %567 = vmatprep.subr.bf16.mxu0 0
        %568 = vmatpush2.bf16.msra.mxu0 0
        %569 = vmatprep.subr.bf16.mxu0 0
        %570 = vmatpush2.bf16.msra.mxu0 0
        %571 = vmatprep.subr.bf16.mxu0 0
        %572 = vmatpush2.bf16.msra.mxu0 0
        %573 = vmatprep.subr.bf16.mxu0 0
        %574 = vmatpush2.bf16.msra.mxu0 0
        %575 = vmatprep.mubr.bf16.mxu0 0
        %576 = vmatmul.mubr.bf16.gmra.mxu0 %v541
        %v577 = vpop.f32.mrf.mxu0
        %v578 = vadd.f32 0.0, %v577
        %v579 = vpop.f32.mrf.mxu0
        %v580 = vpop.f32.mrf.mxu0
        %v581 = vpop.f32.mrf.mxu0
        %582 = vdwg.mxu0
        %v583 = vadd.f32 %v538, %v578
        %v584 = vtanh.pop %v583
        %v585 = vmax.f32 %v584, 0.0
        %s586 = scalar_lea.vmem [#allocation3], 16
        %587 = vst.msk [vmem:[%s586] sm:$0xff] %vm479, %v585
        %s588 = scalar_lea.vmem [#allocation3], 40
        %589 = vst.msk [vmem:[%s588] sm:$0xff] %vm482, %v585
        %s590 = scalar_lea.vmem [#allocation2], 24
        %v591 = vld [vmem:[%s590] sm:$0xff]
        %v592 = vpack.c.bf16 %v584, %v584
        %v594 = vsel %vm391, %v592, 0
        %596 = vmatprep.subr.bf16.mxu0 0
        %597 = vmatpush1.bf16.msra.mxu0 0
        %598 = vmatprep.subr.bf16.mxu0 0
        %599 = vmatpush1.bf16.msra.mxu0 0
        %600 = vmatprep.subr.bf16.mxu0 0
        %601 = vmatpush1.bf16.msra.mxu0 0
        %602 = vmatprep.subr.bf16.mxu0 0
        %603 = vmatpush1.bf16.msra.mxu0 0
        %604 = vmatprep.subr.bf16.mxu0 0
        %605 = vmatpush1.bf16.msra.mxu0 %v428
        %606 = vmatprep.subr.bf16.mxu0 0
        %607 = vmatpush1.bf16.msra.mxu0 %v427
        %608 = vmatprep.subr.bf16.mxu0 0
        %609 = vmatpush1.bf16.msra.mxu0 %v426
        %610 = vmatprep.subr.bf16.mxu0 0
        %611 = vmatpush1.bf16.msra.mxu0 %v425
        %612 = vmatprep.subr.bf16.mxu0 0
        %613 = vmatpush2.bf16.msra.mxu0 0
        %614 = vmatprep.subr.bf16.mxu0 0
        %615 = vmatpush2.bf16.msra.mxu0 0
        %616 = vmatprep.subr.bf16.mxu0 0
        %617 = vmatpush2.bf16.msra.mxu0 0
        %618 = vmatprep.subr.bf16.mxu0 0
        %619 = vmatpush2.bf16.msra.mxu0 0
        %620 = vmatprep.subr.bf16.mxu0 0
        %621 = vmatpush2.bf16.msra.mxu0 0
        %622 = vmatprep.subr.bf16.mxu0 0
        %623 = vmatpush2.bf16.msra.mxu0 0
        %624 = vmatprep.subr.bf16.mxu0 0
        %625 = vmatpush2.bf16.msra.mxu0 0
        %626 = vmatprep.subr.bf16.mxu0 0
        %627 = vmatpush2.bf16.msra.mxu0 0
        %628 = vmatprep.mubr.bf16.mxu0 0
        %629 = vmatmul.mubr.bf16.gmra.mxu0 %v594
        %v630 = vpop.f32.mrf.mxu0
        %v631 = vadd.f32 0.0, %v630
        %v632 = vpop.f32.mrf.mxu0
        %v633 = vpop.f32.mrf.mxu0
        %v634 = vpop.f32.mrf.mxu0
        %635 = vdwg.mxu0
        %v636 = vadd.f32 %v591, %v631
        %v637 = vtanh.pop %v636
        %v638 = vmax.f32 %v637, 0.0
        %s639 = scalar_lea.vmem [#allocation3], 24
        %640 = vst.msk [vmem:[%s639] sm:$0xff] %vm479, %v638
        %s641 = scalar_lea.vmem [#allocation3], 32
        %642 = vst.msk [vmem:[%s641] sm:$0xff] %vm482, %v638
        %s643 = scalar_lea.vmem [#allocation2], 32
        %v644 = vld [vmem:[%s643] sm:$0xff]
        %v645 = vpack.c.bf16 %v637, %v637
        %v647 = vsel %vm391, %v645, 0
        %649 = vmatprep.subr.bf16.mxu0 0
        %650 = vmatpush1.bf16.msra.mxu0 0
        %651 = vmatprep.subr.bf16.mxu0 0
        %652 = vmatpush1.bf16.msra.mxu0 0
        %653 = vmatprep.subr.bf16.mxu0 0
        %654 = vmatpush1.bf16.msra.mxu0 0
        %655 = vmatprep.subr.bf16.mxu0 0
        %656 = vmatpush1.bf16.msra.mxu0 0
        %657 = vmatprep.subr.bf16.mxu0 0
        %658 = vmatpush1.bf16.msra.mxu0 %v428
        %659 = vmatprep.subr.bf16.mxu0 0
        %660 = vmatpush1.bf16.msra.mxu0 %v427
        %661 = vmatprep.subr.bf16.mxu0 0
        %662 = vmatpush1.bf16.msra.mxu0 %v426
        %663 = vmatprep.subr.bf16.mxu0 0
        %664 = vmatpush1.bf16.msra.mxu0 %v425
        %665 = vmatprep.subr.bf16.mxu0 0
        %666 = vmatpush2.bf16.msra.mxu0 0
        %667 = vmatprep.subr.bf16.mxu0 0
        %668 = vmatpush2.bf16.msra.mxu0 0
        %669 = vmatprep.subr.bf16.mxu0 0
        %670 = vmatpush2.bf16.msra.mxu0 0
        %671 = vmatprep.subr.bf16.mxu0 0
        %672 = vmatpush2.bf16.msra.mxu0 0
        %673 = vmatprep.subr.bf16.mxu0 0
        %674 = vmatpush2.bf16.msra.mxu0 0
        %675 = vmatprep.subr.bf16.mxu0 0
        %676 = vmatpush2.bf16.msra.mxu0 0
        %677 = vmatprep.subr.bf16.mxu0 0
        %678 = vmatpush2.bf16.msra.mxu0 0
        %679 = vmatprep.subr.bf16.mxu0 0
        %680 = vmatpush2.bf16.msra.mxu0 0
        %681 = vmatprep.mubr.bf16.mxu0 0
        %682 = vmatmul.mubr.bf16.gmra.mxu0 %v647
        %v683 = vpop.f32.mrf.mxu0
        %v684 = vadd.f32 0.0, %v683
        %v685 = vpop.f32.mrf.mxu0
        %v686 = vpop.f32.mrf.mxu0
        %v687 = vpop.f32.mrf.mxu0
        %688 = vdwg.mxu0
        %v689 = vadd.f32 %v644, %v684
        %v690 = vtanh.pop %v689
        %v691 = vmax.f32 %v690, 0.0
        %692 = vst.msk [vmem:[%s641] sm:$0xff] %vm479, %v691
        %693 = vst.msk [vmem:[%s639] sm:$0xff] %vm482, %v691
        %s694 = scalar_lea.vmem [#allocation2], 40
        %v695 = vld [vmem:[%s694] sm:$0xff]
        %v696 = vpack.c.bf16 %v690, %v690
        %v698 = vsel %vm391, %v696, 0
        %700 = vmatprep.subr.bf16.mxu0 0
        %701 = vmatpush1.bf16.msra.mxu0 0
        %702 = vmatprep.subr.bf16.mxu0 0
        %703 = vmatpush1.bf16.msra.mxu0 0
        %704 = vmatprep.subr.bf16.mxu0 0
        %705 = vmatpush1.bf16.msra.mxu0 0
        %706 = vmatprep.subr.bf16.mxu0 0
        %707 = vmatpush1.bf16.msra.mxu0 0
        %708 = vmatprep.subr.bf16.mxu0 0
        %709 = vmatpush1.bf16.msra.mxu0 %v428
        %710 = vmatprep.subr.bf16.mxu0 0
        %711 = vmatpush1.bf16.msra.mxu0 %v427
        %712 = vmatprep.subr.bf16.mxu0 0
        %713 = vmatpush1.bf16.msra.mxu0 %v426
        %714 = vmatprep.subr.bf16.mxu0 0
        %715 = vmatpush1.bf16.msra.mxu0 %v425
        %716 = vmatprep.subr.bf16.mxu0 0
        %717 = vmatpush2.bf16.msra.mxu0 0
        %718 = vmatprep.subr.bf16.mxu0 0
        %719 = vmatpush2.bf16.msra.mxu0 0
        %720 = vmatprep.subr.bf16.mxu0 0
        %721 = vmatpush2.bf16.msra.mxu0 0
        %722 = vmatprep.subr.bf16.mxu0 0
        %723 = vmatpush2.bf16.msra.mxu0 0
        %724 = vmatprep.subr.bf16.mxu0 0
        %725 = vmatpush2.bf16.msra.mxu0 0
        %726 = vmatprep.subr.bf16.mxu0 0
        %727 = vmatpush2.bf16.msra.mxu0 0
        %728 = vmatprep.subr.bf16.mxu0 0
        %729 = vmatpush2.bf16.msra.mxu0 0
        %730 = vmatprep.subr.bf16.mxu0 0
        %731 = vmatpush2.bf16.msra.mxu0 0
        %732 = vmatprep.mubr.bf16.mxu0 0
        %733 = vmatmul.mubr.bf16.gmra.mxu0 %v698
        %v734 = vpop.f32.mrf.mxu0
        %v735 = vadd.f32 0.0, %v734
        %v736 = vpop.f32.mrf.mxu0
        %v737 = vpop.f32.mrf.mxu0
        %v738 = vpop.f32.mrf.mxu0
        %739 = vdwg.mxu0
        %v740 = vadd.f32 %v695, %v735
        %v741 = vtanh.pop %v740
        %v742 = vmax.f32 %v741, 0.0
        %743 = vst.msk [vmem:[%s588] sm:$0xff] %vm479, %v742
        %744 = vst.msk [vmem:[%s586] sm:$0xff] %vm482, %v742
        %s745 = scalar_lea.vmem [#allocation2], 48
        %v746 = vld [vmem:[%s745] sm:$0xff]
        %v747 = vpack.c.bf16 %v741, %v741
        %v749 = vsel %vm391, %v747, 0
        %751 = vmatprep.subr.bf16.mxu0 0
        %752 = vmatpush1.bf16.msra.mxu0 0
        %753 = vmatprep.subr.bf16.mxu0 0
        %754 = vmatpush1.bf16.msra.mxu0 0
        %755 = vmatprep.subr.bf16.mxu0 0
        %756 = vmatpush1.bf16.msra.mxu0 0
        %757 = vmatprep.subr.bf16.mxu0 0
        %758 = vmatpush1.bf16.msra.mxu0 0
        %759 = vmatprep.subr.bf16.mxu0 0
        %760 = vmatpush1.bf16.msra.mxu0 %v428
        %761 = vmatprep.subr.bf16.mxu0 0
        %762 = vmatpush1.bf16.msra.mxu0 %v427
        %763 = vmatprep.subr.bf16.mxu0 0
        %764 = vmatpush1.bf16.msra.mxu0 %v426
        %765 = vmatprep.subr.bf16.mxu0 0
        %766 = vmatpush1.bf16.msra.mxu0 %v425
        %767 = vmatprep.subr.bf16.mxu0 0
        %768 = vmatpush2.bf16.msra.mxu0 0
        %769 = vmatprep.subr.bf16.mxu0 0
        %770 = vmatpush2.bf16.msra.mxu0 0
        %771 = vmatprep.subr.bf16.mxu0 0
        %772 = vmatpush2.bf16.msra.mxu0 0
        %773 = vmatprep.subr.bf16.mxu0 0
        %774 = vmatpush2.bf16.msra.mxu0 0
        %775 = vmatprep.subr.bf16.mxu0 0
        %776 = vmatpush2.bf16.msra.mxu0 0
        %777 = vmatprep.subr.bf16.mxu0 0
        %778 = vmatpush2.bf16.msra.mxu0 0
        %779 = vmatprep.subr.bf16.mxu0 0
        %780 = vmatpush2.bf16.msra.mxu0 0
        %781 = vmatprep.subr.bf16.mxu0 0
        %782 = vmatpush2.bf16.msra.mxu0 0
        %783 = vmatprep.mubr.bf16.mxu0 0
        %784 = vmatmul.mubr.bf16.gmra.mxu0 %v749
        %v785 = vpop.f32.mrf.mxu0
        %v786 = vadd.f32 0.0, %v785
        %v787 = vpop.f32.mrf.mxu0
        %v788 = vpop.f32.mrf.mxu0
        %v789 = vpop.f32.mrf.mxu0
        %790 = vdwg.mxu0
        %v791 = vadd.f32 %v746, %v786
        %v792 = vtanh.pop %v791
        %v793 = vmax.f32 %v792, 0.0
        %794 = vst.msk [vmem:[%s535] sm:$0xff] %vm479, %v793
        %795 = vst.msk [vmem:[%s533] sm:$0xff] %vm482, %v793
        %s796 = scalar_lea.vmem [#allocation2], 56
        %v797 = vld [vmem:[%s796] sm:$0xff]
        %v798 = vpack.c.bf16 %v792, %v792
        %v800 = vsel %vm391, %v798, 0
        %802 = vmatprep.subr.bf16.mxu0 0
        %803 = vmatpush1.bf16.msra.mxu0 0
        %804 = vmatprep.subr.bf16.mxu0 0
        %805 = vmatpush1.bf16.msra.mxu0 0
        %806 = vmatprep.subr.bf16.mxu0 0
        %807 = vmatpush1.bf16.msra.mxu0 0
        %808 = vmatprep.subr.bf16.mxu0 0
        %809 = vmatpush1.bf16.msra.mxu0 0
        %810 = vmatprep.subr.bf16.mxu0 0
        %811 = vmatpush1.bf16.msra.mxu0 %v428
        %812 = vmatprep.subr.bf16.mxu0 0
        %813 = vmatpush1.bf16.msra.mxu0 %v427
        %814 = vmatprep.subr.bf16.mxu0 0
        %815 = vmatpush1.bf16.msra.mxu0 %v426
        %816 = vmatprep.subr.bf16.mxu0 0
        %817 = vmatpush1.bf16.msra.mxu0 %v425
        %818 = vmatprep.subr.bf16.mxu0 0
        %819 = vmatpush2.bf16.msra.mxu0 0
        %820 = vmatprep.subr.bf16.mxu0 0
        %821 = vmatpush2.bf16.msra.mxu0 0
        %822 = vmatprep.subr.bf16.mxu0 0
        %823 = vmatpush2.bf16.msra.mxu0 0
        %824 = vmatprep.subr.bf16.mxu0 0
        %825 = vmatpush2.bf16.msra.mxu0 0
        %826 = vmatprep.subr.bf16.mxu0 0
        %827 = vmatpush2.bf16.msra.mxu0 0
        %828 = vmatprep.subr.bf16.mxu0 0
        %829 = vmatpush2.bf16.msra.mxu0 0
        %830 = vmatprep.subr.bf16.mxu0 0
        %831 = vmatpush2.bf16.msra.mxu0 0
        %832 = vmatprep.subr.bf16.mxu0 0
        %833 = vmatpush2.bf16.msra.mxu0 0
        %834 = vmatprep.mubr.bf16.mxu0 0
        %835 = vmatmul.mubr.bf16.gmra.mxu0 %v800
        %v836 = vpop.f32.mrf.mxu0
        %v837 = vadd.f32 0.0, %v836
        %v838 = vpop.f32.mrf.mxu0
        %v839 = vpop.f32.mrf.mxu0
        %v840 = vpop.f32.mrf.mxu0
        %841 = vdwg.mxu0
        %v842 = vadd.f32 %v797, %v837
        %v843 = vtanh.pop %v842
        %v844 = vmax.f32 %v843, 0.0
        %845 = vst.msk [vmem:[%s481] sm:$0xff] %vm479, %v844
        %846 = vst.msk [vmem:[#allocation3] sm:$0xff] %vm482, %v844
        %v847 = vld [vmem:[%s4] sm:$0xf]
        %v848 = vld [vmem:[%s4 + $0x4] sm:$0xf]
        %v849 = vld [vmem:[%s4 + $0x8] sm:$0xf]
        %v850 = vld [vmem:[%s4 + $0xc] sm:$0xf]
        %v851 = vld [vmem:[%s4 + $0x10] sm:$0xf]
        %v852 = vld [vmem:[%s4 + $0x14] sm:$0xf]
        %v853 = vld [vmem:[%s4 + $0x18] sm:$0xf]
        %v854 = vld [vmem:[%s4 + $0x1c] sm:$0xf]
        %v855 = vld [vmem:[%s4 + $0x20] sm:$0xf]
        %v856 = vld [vmem:[%s4 + $0x24] sm:$0xf]
        %v857 = vld [vmem:[%s4 + $0x28] sm:$0xf]
        %v858 = vld [vmem:[%s4 + $0x2c] sm:$0xf]
        %v859 = vld [vmem:[%s4 + $0x30] sm:$0xf]
        %v860 = vld [vmem:[%s4 + $0x34] sm:$0xf]
        %v861 = vld [vmem:[%s4 + $0x38] sm:$0xf]
        %v862 = vld [vmem:[%s4 + $0x3c] sm:$0xf]
        %v863 = vld [vmem:[%s6] sm:$0x1]
        %v864 = vld [vmem:[%s5] sm:$0xf]
        %v865 = vld [vmem:[%s5 + $0x4] sm:$0xf]
        %v866 = vld [vmem:[%s5 + $0x8] sm:$0xf]
        %v867 = vld [vmem:[%s5 + $0xc] sm:$0xf]
        %v868 = vld [vmem:[%s5 + $0x10] sm:$0xf]
        %v869 = vld [vmem:[%s5 + $0x14] sm:$0xf]
        %v870 = vld [vmem:[%s5 + $0x18] sm:$0xf]
        %v871 = vld [vmem:[%s5 + $0x1c] sm:$0xf]
        %v872 = vld [vmem:[#allocation3] sm:$0x1]
        %v873 = vld [vmem:[#allocation3 + $0x8] sm:$0x1]
        %v874 = vld [vmem:[#allocation3 + $0x10] sm:$0x1]
        %v875 = vld [vmem:[#allocation3 + $0x18] sm:$0x1]
        %v876 = vld [vmem:[#allocation3 + $0x20] sm:$0x1]
        %v877 = vld [vmem:[#allocation3 + $0x28] sm:$0x1]
        %v878 = vld [vmem:[#allocation3 + $0x30] sm:$0x1]
        %v879 = vld [vmem:[#allocation3 + $0x38] sm:$0x1]
        %v880 = vld [vmem:[#allocation3 + $0x7] sm:$0x1]
        %v881 = vld [vmem:[#allocation3 + $0xf] sm:$0x1]
        %v882 = vld [vmem:[#allocation3 + $0x17] sm:$0x1]
        %v883 = vld [vmem:[#allocation3 + $0x1f] sm:$0x1]
        %v884 = vld [vmem:[#allocation3 + $0x27] sm:$0x1]
        %v885 = vld [vmem:[#allocation3 + $0x2f] sm:$0x1]
        %v886 = vld [vmem:[#allocation3 + $0x37] sm:$0x1]
        %v887 = vld [vmem:[#allocation3 + $0x3f] sm:$0x1]
        %896 = vrot.lane.b32.xlu0 %v880, 64
        %v897 = vpop.permute.xlu0 %896
        %898 = vrot.lane.b32.xlu0 %v881, 64
        %v899 = vpop.permute.xlu0 %898
        %900 = vrot.lane.b32.xlu0 %v882, 64
        %v901 = vpop.permute.xlu0 %900
        %902 = vrot.lane.b32.xlu0 %v883, 64
        %v903 = vpop.permute.xlu0 %902
        %904 = vrot.lane.b32.xlu0 %v884, 64
        %v905 = vpop.permute.xlu0 %904
        %906 = vrot.lane.b32.xlu0 %v885, 64
        %v907 = vpop.permute.xlu0 %906
        %908 = vrot.lane.b32.xlu0 %v886, 64
        %v909 = vpop.permute.xlu0 %908
        %910 = vrot.lane.b32.xlu0 %v887, 64
        %v911 = vpop.permute.xlu0 %910
        %v920 = vsel %vm391, %v872, %v897
        %v921 = vsel %vm391, %v873, %v899
        %v922 = vsel %vm391, %v874, %v901
        %v923 = vsel %vm391, %v875, %v903
        %v924 = vsel %vm391, %v876, %v905
        %v925 = vsel %vm391, %v877, %v907
        %v926 = vsel %vm391, %v878, %v909
        %v927 = vsel %vm391, %v879, %v911
        %v928 = vpack.c.bf16 %v920, %v920
        %v929 = vpack.c.bf16 %v921, %v921
        %v930 = vpack.c.bf16 %v922, %v922
        %v931 = vpack.c.bf16 %v923, %v923
        %v932 = vpack.c.bf16 %v924, %v924
        %v933 = vpack.c.bf16 %v925, %v925
        %v934 = vpack.c.bf16 %v926, %v926
        %v935 = vpack.c.bf16 %v927, %v927
        %v937 = vlaneseq
        %v938 = vshrl.u32 %v937, 7
        %v939 = vsub.s32 0, %v938
        %v940 = vrot.slane %v863, %v939
        %v950 = vunpack.c.l.b16 %v928
        %v951 = vunpack.c.l.b16 %v929
        %v952 = vunpack.c.l.b16 %v930
        %v953 = vunpack.c.l.b16 %v931
        %v954 = vunpack.c.l.b16 %v932
        %v955 = vunpack.c.l.b16 %v933
        %v956 = vunpack.c.l.b16 %v934
        %v957 = vunpack.c.l.b16 %v935
        %v958 = vrot.slane %v951, 7
        %vm959 = vcmask 1041409
        %v960 = vsel %vm959, %v958, %v950
        %v961 = vrot.slane %v952, 6
        %vm962 = vcmask 1042434
        %v963 = vsel %vm962, %v961, %v960
        %v964 = vrot.slane %v953, 5
        %vm965 = vcmask 1043459
        %v966 = vsel %vm965, %v964, %v963
        %v967 = vrot.slane %v954, 4
        %vm968 = vcmask 1044484
        %v969 = vsel %vm968, %v967, %v966
        %v970 = vrot.slane %v955, 3
        %vm971 = vcmask 1045509
        %v972 = vsel %vm971, %v970, %v969
        %v973 = vrot.slane %v956, 2
        %vm974 = vcmask 1046534
        %v975 = vsel %vm974, %v973, %v972
        %v976 = vrot.slane %v957, 1
        %vm977 = vcmask 1047559
        %v978 = vsel %vm977, %v976, %v975
        %v979 = vpack.c.b16 %v978, %v978
        %v997 = vunpack.c.l.b16 %v847
        %v998 = vunpack.c.l.b16 %v848
        %v999 = vunpack.c.l.b16 %v849
        %v1000 = vunpack.c.l.b16 %v850
        %v1001 = vunpack.c.l.b16 %v851
        %v1002 = vunpack.c.l.b16 %v852
        %v1003 = vunpack.c.l.b16 %v853
        %v1004 = vunpack.c.l.b16 %v854
        %v1005 = vunpack.c.l.b16 %v855
        %v1006 = vunpack.c.l.b16 %v856
        %v1007 = vunpack.c.l.b16 %v857
        %v1008 = vunpack.c.l.b16 %v858
        %v1009 = vunpack.c.l.b16 %v859
        %v1010 = vunpack.c.l.b16 %v860
        %v1011 = vunpack.c.l.b16 %v861
        %v1012 = vunpack.c.l.b16 %v862
        %v1013 = vpack.c.b16 %v998, %v997
        %v1014 = vpack.c.b16 %v1000, %v999
        %v1015 = vpack.c.b16 %v1002, %v1001
        %v1016 = vpack.c.b16 %v1004, %v1003
        %v1017 = vpack.c.b16 %v1006, %v1005
        %v1018 = vpack.c.b16 %v1008, %v1007
        %v1019 = vpack.c.b16 %v1010, %v1009
        %v1020 = vpack.c.b16 %v1012, %v1011
        %1029 = vmatprep.subr.bf16.mxu0 0
        %1030 = vmatpush1.bf16.msra.mxu0 %v1020
        %1031 = vmatprep.subr.bf16.mxu0 0
        %1032 = vmatpush1.bf16.msra.mxu0 %v1019
        %1033 = vmatprep.subr.bf16.mxu0 0
        %1034 = vmatpush1.bf16.msra.mxu0 %v1018
        %1035 = vmatprep.subr.bf16.mxu0 0
        %1036 = vmatpush1.bf16.msra.mxu0 %v1017
        %1037 = vmatprep.subr.bf16.mxu0 0
        %1038 = vmatpush1.bf16.msra.mxu0 %v1016
        %1039 = vmatprep.subr.bf16.mxu0 0
        %1040 = vmatpush1.bf16.msra.mxu0 %v1015
        %1041 = vmatprep.subr.bf16.mxu0 0
        %1042 = vmatpush1.bf16.msra.mxu0 %v1014
        %1043 = vmatprep.subr.bf16.mxu0 0
        %1044 = vmatpush1.bf16.msra.mxu0 %v1013
        %1045 = vmatprep.subr.bf16.mxu0 0
        %1046 = vmatpush2.bf16.msra.mxu0 0
        %1047 = vmatprep.subr.bf16.mxu0 0
        %1048 = vmatpush2.bf16.msra.mxu0 0
        %1049 = vmatprep.subr.bf16.mxu0 0
        %1050 = vmatpush2.bf16.msra.mxu0 0
        %1051 = vmatprep.subr.bf16.mxu0 0
        %1052 = vmatpush2.bf16.msra.mxu0 0
        %1053 = vmatprep.subr.bf16.mxu0 0
        %1054 = vmatpush2.bf16.msra.mxu0 0
        %1055 = vmatprep.subr.bf16.mxu0 0
        %1056 = vmatpush2.bf16.msra.mxu0 0
        %1057 = vmatprep.subr.bf16.mxu0 0
        %1058 = vmatpush2.bf16.msra.mxu0 0
        %1059 = vmatprep.subr.bf16.mxu0 0
        %1060 = vmatpush2.bf16.msra.mxu0 0
        %1061 = vmatprep.mubr.bf16.mxu0 0
        %1062 = vmatmul.mubr.bf16.gmra.mxu0 %v979
        %v1063 = vpop.f32.mrf.mxu0
        %v1064 = vadd.f32 %v940, %v1063
        %v1065 = vpop.f32.mrf.mxu0
        %v1066 = vpop.f32.mrf.mxu0
        %v1067 = vpop.f32.mrf.mxu0
        %1068 = vdwg.mxu0
        %1069 = vst.msk [vmem:[#allocation2] sm:$0xff] %vm391, %v1064
        %v1070 = vld [vmem:[#allocation3 + $0x1] sm:$0x1]
        %v1071 = vld [vmem:[#allocation3 + $0x9] sm:$0x1]
        %v1072 = vld [vmem:[#allocation3 + $0x11] sm:$0x1]
        %v1073 = vld [vmem:[#allocation3 + $0x19] sm:$0x1]
        %v1074 = vld [vmem:[#allocation3 + $0x21] sm:$0x1]
        %v1075 = vld [vmem:[#allocation3 + $0x29] sm:$0x1]
        %v1076 = vld [vmem:[#allocation3 + $0x31] sm:$0x1]
        %v1077 = vld [vmem:[#allocation3 + $0x39] sm:$0x1]
        %v1078 = vld [vmem:[#allocation3 + $0x6] sm:$0x1]
        %v1079 = vld [vmem:[#allocation3 + $0xe] sm:$0x1]
        %v1080 = vld [vmem:[#allocation3 + $0x16] sm:$0x1]
        %v1081 = vld [vmem:[#allocation3 + $0x1e] sm:$0x1]
        %v1082 = vld [vmem:[#allocation3 + $0x26] sm:$0x1]
        %v1083 = vld [vmem:[#allocation3 + $0x2e] sm:$0x1]
        %v1084 = vld [vmem:[#allocation3 + $0x36] sm:$0x1]
        %v1085 = vld [vmem:[#allocation3 + $0x3e] sm:$0x1]
        %1094 = vrot.lane.b32.xlu0 %v1078, 64
        %v1095 = vpop.permute.xlu0 %1094
        %1096 = vrot.lane.b32.xlu0 %v1079, 64
        %v1097 = vpop.permute.xlu0 %1096
        %1098 = vrot.lane.b32.xlu0 %v1080, 64
        %v1099 = vpop.permute.xlu0 %1098
        %1100 = vrot.lane.b32.xlu0 %v1081, 64
        %v1101 = vpop.permute.xlu0 %1100
        %1102 = vrot.lane.b32.xlu0 %v1082, 64
        %v1103 = vpop.permute.xlu0 %1102
        %1104 = vrot.lane.b32.xlu0 %v1083, 64
        %v1105 = vpop.permute.xlu0 %1104
        %1106 = vrot.lane.b32.xlu0 %v1084, 64
        %v1107 = vpop.permute.xlu0 %1106
        %1108 = vrot.lane.b32.xlu0 %v1085, 64
        %v1109 = vpop.permute.xlu0 %1108
        %v1118 = vsel %vm391, %v1070, %v1095
        %v1119 = vsel %vm391, %v1071, %v1097
        %v1120 = vsel %vm391, %v1072, %v1099
        %v1121 = vsel %vm391, %v1073, %v1101
        %v1122 = vsel %vm391, %v1074, %v1103
        %v1123 = vsel %vm391, %v1075, %v1105
        %v1124 = vsel %vm391, %v1076, %v1107
        %v1125 = vsel %vm391, %v1077, %v1109
        %v1126 = vpack.c.bf16 %v1118, %v1118
        %v1127 = vpack.c.bf16 %v1119, %v1119
        %v1128 = vpack.c.bf16 %v1120, %v1120
        %v1129 = vpack.c.bf16 %v1121, %v1121
        %v1130 = vpack.c.bf16 %v1122, %v1122
        %v1131 = vpack.c.bf16 %v1123, %v1123
        %v1132 = vpack.c.bf16 %v1124, %v1124
        %v1133 = vpack.c.bf16 %v1125, %v1125
        %v1142 = vunpack.c.l.b16 %v1126
        %v1143 = vunpack.c.l.b16 %v1127
        %v1144 = vunpack.c.l.b16 %v1128
        %v1145 = vunpack.c.l.b16 %v1129
        %v1146 = vunpack.c.l.b16 %v1130
        %v1147 = vunpack.c.l.b16 %v1131
        %v1148 = vunpack.c.l.b16 %v1132
        %v1149 = vunpack.c.l.b16 %v1133
        %v1150 = vrot.slane %v1143, 7
        %v1151 = vsel %vm959, %v1150, %v1142
        %v1152 = vrot.slane %v1144, 6
        %v1153 = vsel %vm962, %v1152, %v1151
        %v1154 = vrot.slane %v1145, 5
        %v1155 = vsel %vm965, %v1154, %v1153
        %v1156 = vrot.slane %v1146, 4
        %v1157 = vsel %vm968, %v1156, %v1155
        %v1158 = vrot.slane %v1147, 3
        %v1159 = vsel %vm971, %v1158, %v1157
        %v1160 = vrot.slane %v1148, 2
        %v1161 = vsel %vm974, %v1160, %v1159
        %v1162 = vrot.slane %v1149, 1
        %v1163 = vsel %vm977, %v1162, %v1161
        %v1164 = vpack.c.b16 %v1163, %v1163
        %1166 = vmatprep.subr.bf16.mxu0 0
        %1167 = vmatpush1.bf16.msra.mxu0 %v1020
        %1168 = vmatprep.subr.bf16.mxu0 0
        %1169 = vmatpush1.bf16.msra.mxu0 %v1019
        %1170 = vmatprep.subr.bf16.mxu0 0
        %1171 = vmatpush1.bf16.msra.mxu0 %v1018
        %1172 = vmatprep.subr.bf16.mxu0 0
        %1173 = vmatpush1.bf16.msra.mxu0 %v1017
        %1174 = vmatprep.subr.bf16.mxu0 0
        %1175 = vmatpush1.bf16.msra.mxu0 %v1016
        %1176 = vmatprep.subr.bf16.mxu0 0
        %1177 = vmatpush1.bf16.msra.mxu0 %v1015
        %1178 = vmatprep.subr.bf16.mxu0 0
        %1179 = vmatpush1.bf16.msra.mxu0 %v1014
        %1180 = vmatprep.subr.bf16.mxu0 0
        %1181 = vmatpush1.bf16.msra.mxu0 %v1013
        %1182 = vmatprep.subr.bf16.mxu0 0
        %1183 = vmatpush2.bf16.msra.mxu0 0
        %1184 = vmatprep.subr.bf16.mxu0 0
        %1185 = vmatpush2.bf16.msra.mxu0 0
        %1186 = vmatprep.subr.bf16.mxu0 0
        %1187 = vmatpush2.bf16.msra.mxu0 0
        %1188 = vmatprep.subr.bf16.mxu0 0
        %1189 = vmatpush2.bf16.msra.mxu0 0
        %1190 = vmatprep.subr.bf16.mxu0 0
        %1191 = vmatpush2.bf16.msra.mxu0 0
        %1192 = vmatprep.subr.bf16.mxu0 0
        %1193 = vmatpush2.bf16.msra.mxu0 0
        %1194 = vmatprep.subr.bf16.mxu0 0
        %1195 = vmatpush2.bf16.msra.mxu0 0
        %1196 = vmatprep.subr.bf16.mxu0 0
        %1197 = vmatpush2.bf16.msra.mxu0 0
        %1198 = vmatprep.mubr.bf16.mxu0 0
        %1199 = vmatmul.mubr.bf16.gmra.mxu0 %v1164
        %v1200 = vpop.f32.mrf.mxu0
        %v1201 = vadd.f32 %v940, %v1200
        %v1202 = vpop.f32.mrf.mxu0
        %v1203 = vpop.f32.mrf.mxu0
        %v1204 = vpop.f32.mrf.mxu0
        %1205 = vdwg.mxu0
        %1206 = vst.msk [vmem:[%s484] sm:$0xff] %vm391, %v1201
        %v1207 = vld [vmem:[#allocation3 + $0x2] sm:$0x1]
        %v1208 = vld [vmem:[#allocation3 + $0xa] sm:$0x1]
        %v1209 = vld [vmem:[#allocation3 + $0x12] sm:$0x1]
        %v1210 = vld [vmem:[#allocation3 + $0x1a] sm:$0x1]
        %v1211 = vld [vmem:[#allocation3 + $0x22] sm:$0x1]
        %v1212 = vld [vmem:[#allocation3 + $0x2a] sm:$0x1]
        %v1213 = vld [vmem:[#allocation3 + $0x32] sm:$0x1]
        %v1214 = vld [vmem:[#allocation3 + $0x3a] sm:$0x1]
        %v1215 = vld [vmem:[#allocation3 + $0x5] sm:$0x1]
        %v1216 = vld [vmem:[#allocation3 + $0xd] sm:$0x1]
        %v1217 = vld [vmem:[#allocation3 + $0x15] sm:$0x1]
        %v1218 = vld [vmem:[#allocation3 + $0x1d] sm:$0x1]
        %v1219 = vld [vmem:[#allocation3 + $0x25] sm:$0x1]
        %v1220 = vld [vmem:[#allocation3 + $0x2d] sm:$0x1]
        %v1221 = vld [vmem:[#allocation3 + $0x35] sm:$0x1]
        %v1222 = vld [vmem:[#allocation3 + $0x3d] sm:$0x1]
        %1231 = vrot.lane.b32.xlu0 %v1215, 64
        %v1232 = vpop.permute.xlu0 %1231
        %1233 = vrot.lane.b32.xlu0 %v1216, 64
        %v1234 = vpop.permute.xlu0 %1233
        %1235 = vrot.lane.b32.xlu0 %v1217, 64
        %v1236 = vpop.permute.xlu0 %1235
        %1237 = vrot.lane.b32.xlu0 %v1218, 64
        %v1238 = vpop.permute.xlu0 %1237
        %1239 = vrot.lane.b32.xlu0 %v1219, 64
        %v1240 = vpop.permute.xlu0 %1239
        %1241 = vrot.lane.b32.xlu0 %v1220, 64
        %v1242 = vpop.permute.xlu0 %1241
        %1243 = vrot.lane.b32.xlu0 %v1221, 64
        %v1244 = vpop.permute.xlu0 %1243
        %1245 = vrot.lane.b32.xlu0 %v1222, 64
        %v1246 = vpop.permute.xlu0 %1245
        %v1255 = vsel %vm391, %v1207, %v1232
        %v1256 = vsel %vm391, %v1208, %v1234
        %v1257 = vsel %vm391, %v1209, %v1236
        %v1258 = vsel %vm391, %v1210, %v1238
        %v1259 = vsel %vm391, %v1211, %v1240
        %v1260 = vsel %vm391, %v1212, %v1242
        %v1261 = vsel %vm391, %v1213, %v1244
        %v1262 = vsel %vm391, %v1214, %v1246
        %v1263 = vpack.c.bf16 %v1255, %v1255
        %v1264 = vpack.c.bf16 %v1256, %v1256
        %v1265 = vpack.c.bf16 %v1257, %v1257
        %v1266 = vpack.c.bf16 %v1258, %v1258
        %v1267 = vpack.c.bf16 %v1259, %v1259
        %v1268 = vpack.c.bf16 %v1260, %v1260
        %v1269 = vpack.c.bf16 %v1261, %v1261
        %v1270 = vpack.c.bf16 %v1262, %v1262
        %v1279 = vunpack.c.l.b16 %v1263
        %v1280 = vunpack.c.l.b16 %v1264
        %v1281 = vunpack.c.l.b16 %v1265
        %v1282 = vunpack.c.l.b16 %v1266
        %v1283 = vunpack.c.l.b16 %v1267
        %v1284 = vunpack.c.l.b16 %v1268
        %v1285 = vunpack.c.l.b16 %v1269
        %v1286 = vunpack.c.l.b16 %v1270
        %v1287 = vrot.slane %v1280, 7
        %v1288 = vsel %vm959, %v1287, %v1279
        %v1289 = vrot.slane %v1281, 6
        %v1290 = vsel %vm962, %v1289, %v1288
        %v1291 = vrot.slane %v1282, 5
        %v1292 = vsel %vm965, %v1291, %v1290
        %v1293 = vrot.slane %v1283, 4
        %v1294 = vsel %vm968, %v1293, %v1292
        %v1295 = vrot.slane %v1284, 3
        %v1296 = vsel %vm971, %v1295, %v1294
        %v1297 = vrot.slane %v1285, 2
        %v1298 = vsel %vm974, %v1297, %v1296
        %v1299 = vrot.slane %v1286, 1
        %v1300 = vsel %vm977, %v1299, %v1298
        %v1301 = vpack.c.b16 %v1300, %v1300
        %1303 = vmatprep.subr.bf16.mxu0 0
        %1304 = vmatpush1.bf16.msra.mxu0 %v1020
        %1305 = vmatprep.subr.bf16.mxu0 0
        %1306 = vmatpush1.bf16.msra.mxu0 %v1019
        %1307 = vmatprep.subr.bf16.mxu0 0
        %1308 = vmatpush1.bf16.msra.mxu0 %v1018
        %1309 = vmatprep.subr.bf16.mxu0 0
        %1310 = vmatpush1.bf16.msra.mxu0 %v1017
        %1311 = vmatprep.subr.bf16.mxu0 0
        %1312 = vmatpush1.bf16.msra.mxu0 %v1016
        %1313 = vmatprep.subr.bf16.mxu0 0
        %1314 = vmatpush1.bf16.msra.mxu0 %v1015
        %1315 = vmatprep.subr.bf16.mxu0 0
        %1316 = vmatpush1.bf16.msra.mxu0 %v1014
        %1317 = vmatprep.subr.bf16.mxu0 0
        %1318 = vmatpush1.bf16.msra.mxu0 %v1013
        %1319 = vmatprep.subr.bf16.mxu0 0
        %1320 = vmatpush2.bf16.msra.mxu0 0
        %1321 = vmatprep.subr.bf16.mxu0 0
        %1322 = vmatpush2.bf16.msra.mxu0 0
        %1323 = vmatprep.subr.bf16.mxu0 0
        %1324 = vmatpush2.bf16.msra.mxu0 0
        %1325 = vmatprep.subr.bf16.mxu0 0
        %1326 = vmatpush2.bf16.msra.mxu0 0
        %1327 = vmatprep.subr.bf16.mxu0 0
        %1328 = vmatpush2.bf16.msra.mxu0 0
        %1329 = vmatprep.subr.bf16.mxu0 0
        %1330 = vmatpush2.bf16.msra.mxu0 0
        %1331 = vmatprep.subr.bf16.mxu0 0
        %1332 = vmatpush2.bf16.msra.mxu0 0
        %1333 = vmatprep.subr.bf16.mxu0 0
        %1334 = vmatpush2.bf16.msra.mxu0 0
        %1335 = vmatprep.mubr.bf16.mxu0 0
        %1336 = vmatmul.mubr.bf16.gmra.mxu0 %v1301
        %v1337 = vpop.f32.mrf.mxu0
        %v1338 = vadd.f32 %v940, %v1337
        %v1339 = vpop.f32.mrf.mxu0
        %v1340 = vpop.f32.mrf.mxu0
        %v1341 = vpop.f32.mrf.mxu0
        %1342 = vdwg.mxu0
        %1343 = vst.msk [vmem:[%s537] sm:$0xff] %vm391, %v1338
        %v1344 = vld [vmem:[#allocation3 + $0x3] sm:$0x1]
        %v1345 = vld [vmem:[#allocation3 + $0xb] sm:$0x1]
        %v1346 = vld [vmem:[#allocation3 + $0x13] sm:$0x1]
        %v1347 = vld [vmem:[#allocation3 + $0x1b] sm:$0x1]
        %v1348 = vld [vmem:[#allocation3 + $0x23] sm:$0x1]
        %v1349 = vld [vmem:[#allocation3 + $0x2b] sm:$0x1]
        %v1350 = vld [vmem:[#allocation3 + $0x33] sm:$0x1]
        %v1351 = vld [vmem:[#allocation3 + $0x3b] sm:$0x1]
        %v1352 = vld [vmem:[#allocation3 + $0x4] sm:$0x1]
        %v1353 = vld [vmem:[#allocation3 + $0xc] sm:$0x1]
        %v1354 = vld [vmem:[#allocation3 + $0x14] sm:$0x1]
        %v1355 = vld [vmem:[#allocation3 + $0x1c] sm:$0x1]
        %v1356 = vld [vmem:[#allocation3 + $0x24] sm:$0x1]
        %v1357 = vld [vmem:[#allocation3 + $0x2c] sm:$0x1]
        %v1358 = vld [vmem:[#allocation3 + $0x34] sm:$0x1]
        %v1359 = vld [vmem:[#allocation3 + $0x3c] sm:$0x1]
        %1368 = vrot.lane.b32.xlu0 %v1352, 64
        %v1369 = vpop.permute.xlu0 %1368
        %1370 = vrot.lane.b32.xlu0 %v1353, 64
        %v1371 = vpop.permute.xlu0 %1370
        %1372 = vrot.lane.b32.xlu0 %v1354, 64
        %v1373 = vpop.permute.xlu0 %1372
        %1374 = vrot.lane.b32.xlu0 %v1355, 64
        %v1375 = vpop.permute.xlu0 %1374
        %1376 = vrot.lane.b32.xlu0 %v1356, 64
        %v1377 = vpop.permute.xlu0 %1376
        %1378 = vrot.lane.b32.xlu0 %v1357, 64
        %v1379 = vpop.permute.xlu0 %1378
        %1380 = vrot.lane.b32.xlu0 %v1358, 64
        %v1381 = vpop.permute.xlu0 %1380
        %1382 = vrot.lane.b32.xlu0 %v1359, 64
        %v1383 = vpop.permute.xlu0 %1382
        %v1392 = vsel %vm391, %v1344, %v1369
        %v1393 = vsel %vm391, %v1345, %v1371
        %v1394 = vsel %vm391, %v1346, %v1373
        %v1395 = vsel %vm391, %v1347, %v1375
        %v1396 = vsel %vm391, %v1348, %v1377
        %v1397 = vsel %vm391, %v1349, %v1379
        %v1398 = vsel %vm391, %v1350, %v1381
        %v1399 = vsel %vm391, %v1351, %v1383
        %v1400 = vpack.c.bf16 %v1392, %v1392
        %v1401 = vpack.c.bf16 %v1393, %v1393
        %v1402 = vpack.c.bf16 %v1394, %v1394
        %v1403 = vpack.c.bf16 %v1395, %v1395
        %v1404 = vpack.c.bf16 %v1396, %v1396
        %v1405 = vpack.c.bf16 %v1397, %v1397
        %v1406 = vpack.c.bf16 %v1398, %v1398
        %v1407 = vpack.c.bf16 %v1399, %v1399
        %v1416 = vunpack.c.l.b16 %v1400
        %v1417 = vunpack.c.l.b16 %v1401
        %v1418 = vunpack.c.l.b16 %v1402
        %v1419 = vunpack.c.l.b16 %v1403
        %v1420 = vunpack.c.l.b16 %v1404
        %v1421 = vunpack.c.l.b16 %v1405
        %v1422 = vunpack.c.l.b16 %v1406
        %v1423 = vunpack.c.l.b16 %v1407
        %v1424 = vrot.slane %v1417, 7
        %v1425 = vsel %vm959, %v1424, %v1416
        %v1426 = vrot.slane %v1418, 6
        %v1427 = vsel %vm962, %v1426, %v1425
        %v1428 = vrot.slane %v1419, 5
        %v1429 = vsel %vm965, %v1428, %v1427
        %v1430 = vrot.slane %v1420, 4
        %v1431 = vsel %vm968, %v1430, %v1429
        %v1432 = vrot.slane %v1421, 3
        %v1433 = vsel %vm971, %v1432, %v1431
        %v1434 = vrot.slane %v1422, 2
        %v1435 = vsel %vm974, %v1434, %v1433
        %v1436 = vrot.slane %v1423, 1
        %v1437 = vsel %vm977, %v1436, %v1435
        %v1438 = vpack.c.b16 %v1437, %v1437
        %1440 = vmatprep.subr.bf16.mxu0 0
        %1441 = vmatpush1.bf16.msra.mxu0 %v1020
        %1442 = vmatprep.subr.bf16.mxu0 0
        %1443 = vmatpush1.bf16.msra.mxu0 %v1019
        %1444 = vmatprep.subr.bf16.mxu0 0
        %1445 = vmatpush1.bf16.msra.mxu0 %v1018
        %1446 = vmatprep.subr.bf16.mxu0 0
        %1447 = vmatpush1.bf16.msra.mxu0 %v1017
        %1448 = vmatprep.subr.bf16.mxu0 0
        %1449 = vmatpush1.bf16.msra.mxu0 %v1016
        %1450 = vmatprep.subr.bf16.mxu0 0
        %1451 = vmatpush1.bf16.msra.mxu0 %v1015
        %1452 = vmatprep.subr.bf16.mxu0 0
        %1453 = vmatpush1.bf16.msra.mxu0 %v1014
        %1454 = vmatprep.subr.bf16.mxu0 0
        %1455 = vmatpush1.bf16.msra.mxu0 %v1013
        %1456 = vmatprep.subr.bf16.mxu0 0
        %1457 = vmatpush2.bf16.msra.mxu0 0
        %1458 = vmatprep.subr.bf16.mxu0 0
        %1459 = vmatpush2.bf16.msra.mxu0 0
        %1460 = vmatprep.subr.bf16.mxu0 0
        %1461 = vmatpush2.bf16.msra.mxu0 0
        %1462 = vmatprep.subr.bf16.mxu0 0
        %1463 = vmatpush2.bf16.msra.mxu0 0
        %1464 = vmatprep.subr.bf16.mxu0 0
        %1465 = vmatpush2.bf16.msra.mxu0 0
        %1466 = vmatprep.subr.bf16.mxu0 0
        %1467 = vmatpush2.bf16.msra.mxu0 0
        %1468 = vmatprep.subr.bf16.mxu0 0
        %1469 = vmatpush2.bf16.msra.mxu0 0
        %1470 = vmatprep.subr.bf16.mxu0 0
        %1471 = vmatpush2.bf16.msra.mxu0 0
        %1472 = vmatprep.mubr.bf16.mxu0 0
        %1473 = vmatmul.mubr.bf16.gmra.mxu0 %v1438
        %v1474 = vpop.f32.mrf.mxu0
        %v1475 = vadd.f32 %v940, %v1474
        %v1476 = vpop.f32.mrf.mxu0
        %v1477 = vpop.f32.mrf.mxu0
        %v1478 = vpop.f32.mrf.mxu0
        %1479 = vdwg.mxu0
        %1480 = vst.msk [vmem:[%s590] sm:$0xff] %vm391, %v1475
        %v1481 = vld [vmem:[#allocation3 + $0x4] sm:$0x1]
        %v1482 = vld [vmem:[#allocation3 + $0xc] sm:$0x1]
        %v1483 = vld [vmem:[#allocation3 + $0x14] sm:$0x1]
        %v1484 = vld [vmem:[#allocation3 + $0x1c] sm:$0x1]
        %v1485 = vld [vmem:[#allocation3 + $0x24] sm:$0x1]
        %v1486 = vld [vmem:[#allocation3 + $0x2c] sm:$0x1]
        %v1487 = vld [vmem:[#allocation3 + $0x34] sm:$0x1]
        %v1488 = vld [vmem:[#allocation3 + $0x3c] sm:$0x1]
        %v1489 = vld [vmem:[#allocation3 + $0x3] sm:$0x1]
        %v1490 = vld [vmem:[#allocation3 + $0xb] sm:$0x1]
        %v1491 = vld [vmem:[#allocation3 + $0x13] sm:$0x1]
        %v1492 = vld [vmem:[#allocation3 + $0x1b] sm:$0x1]
        %v1493 = vld [vmem:[#allocation3 + $0x23] sm:$0x1]
        %v1494 = vld [vmem:[#allocation3 + $0x2b] sm:$0x1]
        %v1495 = vld [vmem:[#allocation3 + $0x33] sm:$0x1]
        %v1496 = vld [vmem:[#allocation3 + $0x3b] sm:$0x1]
        %1505 = vrot.lane.b32.xlu0 %v1489, 64
        %v1506 = vpop.permute.xlu0 %1505
        %1507 = vrot.lane.b32.xlu0 %v1490, 64
        %v1508 = vpop.permute.xlu0 %1507
        %1509 = vrot.lane.b32.xlu0 %v1491, 64
        %v1510 = vpop.permute.xlu0 %1509
        %1511 = vrot.lane.b32.xlu0 %v1492, 64
        %v1512 = vpop.permute.xlu0 %1511
        %1513 = vrot.lane.b32.xlu0 %v1493, 64
        %v1514 = vpop.permute.xlu0 %1513
        %1515 = vrot.lane.b32.xlu0 %v1494, 64
        %v1516 = vpop.permute.xlu0 %1515
        %1517 = vrot.lane.b32.xlu0 %v1495, 64
        %v1518 = vpop.permute.xlu0 %1517
        %1519 = vrot.lane.b32.xlu0 %v1496, 64
        %v1520 = vpop.permute.xlu0 %1519
        %v1529 = vsel %vm391, %v1481, %v1506
        %v1530 = vsel %vm391, %v1482, %v1508
        %v1531 = vsel %vm391, %v1483, %v1510
        %v1532 = vsel %vm391, %v1484, %v1512
        %v1533 = vsel %vm391, %v1485, %v1514
        %v1534 = vsel %vm391, %v1486, %v1516
        %v1535 = vsel %vm391, %v1487, %v1518
        %v1536 = vsel %vm391, %v1488, %v1520
        %v1537 = vpack.c.bf16 %v1529, %v1529
        %v1538 = vpack.c.bf16 %v1530, %v1530
        %v1539 = vpack.c.bf16 %v1531, %v1531
        %v1540 = vpack.c.bf16 %v1532, %v1532
        %v1541 = vpack.c.bf16 %v1533, %v1533
        %v1542 = vpack.c.bf16 %v1534, %v1534
        %v1543 = vpack.c.bf16 %v1535, %v1535
        %v1544 = vpack.c.bf16 %v1536, %v1536
        %v1553 = vunpack.c.l.b16 %v1537
        %v1554 = vunpack.c.l.b16 %v1538
        %v1555 = vunpack.c.l.b16 %v1539
        %v1556 = vunpack.c.l.b16 %v1540
        %v1557 = vunpack.c.l.b16 %v1541
        %v1558 = vunpack.c.l.b16 %v1542
        %v1559 = vunpack.c.l.b16 %v1543
        %v1560 = vunpack.c.l.b16 %v1544
        %v1561 = vrot.slane %v1554, 7
        %v1562 = vsel %vm959, %v1561, %v1553
        %v1563 = vrot.slane %v1555, 6
        %v1564 = vsel %vm962, %v1563, %v1562
        %v1565 = vrot.slane %v1556, 5
        %v1566 = vsel %vm965, %v1565, %v1564
        %v1567 = vrot.slane %v1557, 4
        %v1568 = vsel %vm968, %v1567, %v1566
        %v1569 = vrot.slane %v1558, 3
        %v1570 = vsel %vm971, %v1569, %v1568
        %v1571 = vrot.slane %v1559, 2
        %v1572 = vsel %vm974, %v1571, %v1570
        %v1573 = vrot.slane %v1560, 1
        %v1574 = vsel %vm977, %v1573, %v1572
        %v1575 = vpack.c.b16 %v1574, %v1574
        %1577 = vmatprep.subr.bf16.mxu0 0
        %1578 = vmatpush1.bf16.msra.mxu0 %v1020
        %1579 = vmatprep.subr.bf16.mxu0 0
        %1580 = vmatpush1.bf16.msra.mxu0 %v1019
        %1581 = vmatprep.subr.bf16.mxu0 0
        %1582 = vmatpush1.bf16.msra.mxu0 %v1018
        %1583 = vmatprep.subr.bf16.mxu0 0
        %1584 = vmatpush1.bf16.msra.mxu0 %v1017
        %1585 = vmatprep.subr.bf16.mxu0 0
        %1586 = vmatpush1.bf16.msra.mxu0 %v1016
        %1587 = vmatprep.subr.bf16.mxu0 0
        %1588 = vmatpush1.bf16.msra.mxu0 %v1015
        %1589 = vmatprep.subr.bf16.mxu0 0
        %1590 = vmatpush1.bf16.msra.mxu0 %v1014
        %1591 = vmatprep.subr.bf16.mxu0 0
        %1592 = vmatpush1.bf16.msra.mxu0 %v1013
        %1593 = vmatprep.subr.bf16.mxu0 0
        %1594 = vmatpush2.bf16.msra.mxu0 0
        %1595 = vmatprep.subr.bf16.mxu0 0
        %1596 = vmatpush2.bf16.msra.mxu0 0
        %1597 = vmatprep.subr.bf16.mxu0 0
        %1598 = vmatpush2.bf16.msra.mxu0 0
        %1599 = vmatprep.subr.bf16.mxu0 0
        %1600 = vmatpush2.bf16.msra.mxu0 0
        %1601 = vmatprep.subr.bf16.mxu0 0
        %1602 = vmatpush2.bf16.msra.mxu0 0
        %1603 = vmatprep.subr.bf16.mxu0 0
        %1604 = vmatpush2.bf16.msra.mxu0 0
        %1605 = vmatprep.subr.bf16.mxu0 0
        %1606 = vmatpush2.bf16.msra.mxu0 0
        %1607 = vmatprep.subr.bf16.mxu0 0
        %1608 = vmatpush2.bf16.msra.mxu0 0
        %1609 = vmatprep.mubr.bf16.mxu0 0
        %1610 = vmatmul.mubr.bf16.gmra.mxu0 %v1575
        %v1611 = vpop.f32.mrf.mxu0
        %v1612 = vadd.f32 %v940, %v1611
        %v1613 = vpop.f32.mrf.mxu0
        %v1614 = vpop.f32.mrf.mxu0
        %v1615 = vpop.f32.mrf.mxu0
        %1616 = vdwg.mxu0
        %1617 = vst.msk [vmem:[%s643] sm:$0xff] %vm391, %v1612
        %v1618 = vld [vmem:[#allocation3 + $0x5] sm:$0x1]
        %v1619 = vld [vmem:[#allocation3 + $0xd] sm:$0x1]
        %v1620 = vld [vmem:[#allocation3 + $0x15] sm:$0x1]
        %v1621 = vld [vmem:[#allocation3 + $0x1d] sm:$0x1]
        %v1622 = vld [vmem:[#allocation3 + $0x25] sm:$0x1]
        %v1623 = vld [vmem:[#allocation3 + $0x2d] sm:$0x1]
        %v1624 = vld [vmem:[#allocation3 + $0x35] sm:$0x1]
        %v1625 = vld [vmem:[#allocation3 + $0x3d] sm:$0x1]
        %v1626 = vld [vmem:[#allocation3 + $0x2] sm:$0x1]
        %v1627 = vld [vmem:[#allocation3 + $0xa] sm:$0x1]
        %v1628 = vld [vmem:[#allocation3 + $0x12] sm:$0x1]
        %v1629 = vld [vmem:[#allocation3 + $0x1a] sm:$0x1]
        %v1630 = vld [vmem:[#allocation3 + $0x22] sm:$0x1]
        %v1631 = vld [vmem:[#allocation3 + $0x2a] sm:$0x1]
        %v1632 = vld [vmem:[#allocation3 + $0x32] sm:$0x1]
        %v1633 = vld [vmem:[#allocation3 + $0x3a] sm:$0x1]
        %1642 = vrot.lane.b32.xlu0 %v1626, 64
        %v1643 = vpop.permute.xlu0 %1642
        %1644 = vrot.lane.b32.xlu0 %v1627, 64
        %v1645 = vpop.permute.xlu0 %1644
        %1646 = vrot.lane.b32.xlu0 %v1628, 64
        %v1647 = vpop.permute.xlu0 %1646
        %1648 = vrot.lane.b32.xlu0 %v1629, 64
        %v1649 = vpop.permute.xlu0 %1648
        %1650 = vrot.lane.b32.xlu0 %v1630, 64
        %v1651 = vpop.permute.xlu0 %1650
        %1652 = vrot.lane.b32.xlu0 %v1631, 64
        %v1653 = vpop.permute.xlu0 %1652
        %1654 = vrot.lane.b32.xlu0 %v1632, 64
        %v1655 = vpop.permute.xlu0 %1654
        %1656 = vrot.lane.b32.xlu0 %v1633, 64
        %v1657 = vpop.permute.xlu0 %1656
        %v1666 = vsel %vm391, %v1618, %v1643
        %v1667 = vsel %vm391, %v1619, %v1645
        %v1668 = vsel %vm391, %v1620, %v1647
        %v1669 = vsel %vm391, %v1621, %v1649
        %v1670 = vsel %vm391, %v1622, %v1651
        %v1671 = vsel %vm391, %v1623, %v1653
        %v1672 = vsel %vm391, %v1624, %v1655
        %v1673 = vsel %vm391, %v1625, %v1657
        %v1674 = vpack.c.bf16 %v1666, %v1666
        %v1675 = vpack.c.bf16 %v1667, %v1667
        %v1676 = vpack.c.bf16 %v1668, %v1668
        %v1677 = vpack.c.bf16 %v1669, %v1669
        %v1678 = vpack.c.bf16 %v1670, %v1670
        %v1679 = vpack.c.bf16 %v1671, %v1671
        %v1680 = vpack.c.bf16 %v1672, %v1672
        %v1681 = vpack.c.bf16 %v1673, %v1673
        %v1690 = vunpack.c.l.b16 %v1674
        %v1691 = vunpack.c.l.b16 %v1675
        %v1692 = vunpack.c.l.b16 %v1676
        %v1693 = vunpack.c.l.b16 %v1677
        %v1694 = vunpack.c.l.b16 %v1678
        %v1695 = vunpack.c.l.b16 %v1679
        %v1696 = vunpack.c.l.b16 %v1680
        %v1697 = vunpack.c.l.b16 %v1681
        %v1698 = vrot.slane %v1691, 7
        %v1699 = vsel %vm959, %v1698, %v1690
        %v1700 = vrot.slane %v1692, 6
        %v1701 = vsel %vm962, %v1700, %v1699
        %v1702 = vrot.slane %v1693, 5
        %v1703 = vsel %vm965, %v1702, %v1701
        %v1704 = vrot.slane %v1694, 4
        %v1705 = vsel %vm968, %v1704, %v1703
        %v1706 = vrot.slane %v1695, 3
        %v1707 = vsel %vm971, %v1706, %v1705
        %v1708 = vrot.slane %v1696, 2
        %v1709 = vsel %vm974, %v1708, %v1707
        %v1710 = vrot.slane %v1697, 1
        %v1711 = vsel %vm977, %v1710, %v1709
        %v1712 = vpack.c.b16 %v1711, %v1711
        %1714 = vmatprep.subr.bf16.mxu0 0
        %1715 = vmatpush1.bf16.msra.mxu0 %v1020
        %1716 = vmatprep.subr.bf16.mxu0 0
        %1717 = vmatpush1.bf16.msra.mxu0 %v1019
        %1718 = vmatprep.subr.bf16.mxu0 0
        %1719 = vmatpush1.bf16.msra.mxu0 %v1018
        %1720 = vmatprep.subr.bf16.mxu0 0
        %1721 = vmatpush1.bf16.msra.mxu0 %v1017
        %1722 = vmatprep.subr.bf16.mxu0 0
        %1723 = vmatpush1.bf16.msra.mxu0 %v1016
        %1724 = vmatprep.subr.bf16.mxu0 0
        %1725 = vmatpush1.bf16.msra.mxu0 %v1015
        %1726 = vmatprep.subr.bf16.mxu0 0
        %1727 = vmatpush1.bf16.msra.mxu0 %v1014
        %1728 = vmatprep.subr.bf16.mxu0 0
        %1729 = vmatpush1.bf16.msra.mxu0 %v1013
        %1730 = vmatprep.subr.bf16.mxu0 0
        %1731 = vmatpush2.bf16.msra.mxu0 0
        %1732 = vmatprep.subr.bf16.mxu0 0
        %1733 = vmatpush2.bf16.msra.mxu0 0
        %1734 = vmatprep.subr.bf16.mxu0 0
        %1735 = vmatpush2.bf16.msra.mxu0 0
        %1736 = vmatprep.subr.bf16.mxu0 0
        %1737 = vmatpush2.bf16.msra.mxu0 0
        %1738 = vmatprep.subr.bf16.mxu0 0
        %1739 = vmatpush2.bf16.msra.mxu0 0
        %1740 = vmatprep.subr.bf16.mxu0 0
        %1741 = vmatpush2.bf16.msra.mxu0 0
        %1742 = vmatprep.subr.bf16.mxu0 0
        %1743 = vmatpush2.bf16.msra.mxu0 0
        %1744 = vmatprep.subr.bf16.mxu0 0
        %1745 = vmatpush2.bf16.msra.mxu0 0
        %1746 = vmatprep.mubr.bf16.mxu0 0
        %1747 = vmatmul.mubr.bf16.gmra.mxu0 %v1712
        %v1748 = vpop.f32.mrf.mxu0
        %v1749 = vadd.f32 %v940, %v1748
        %v1750 = vpop.f32.mrf.mxu0
        %v1751 = vpop.f32.mrf.mxu0
        %v1752 = vpop.f32.mrf.mxu0
        %1753 = vdwg.mxu0
        %1754 = vst.msk [vmem:[%s694] sm:$0xff] %vm391, %v1749
        %v1755 = vld [vmem:[#allocation3 + $0x6] sm:$0x1]
        %v1756 = vld [vmem:[#allocation3 + $0xe] sm:$0x1]
        %v1757 = vld [vmem:[#allocation3 + $0x16] sm:$0x1]
        %v1758 = vld [vmem:[#allocation3 + $0x1e] sm:$0x1]
        %v1759 = vld [vmem:[#allocation3 + $0x26] sm:$0x1]
        %v1760 = vld [vmem:[#allocation3 + $0x2e] sm:$0x1]
        %v1761 = vld [vmem:[#allocation3 + $0x36] sm:$0x1]
        %v1762 = vld [vmem:[#allocation3 + $0x3e] sm:$0x1]
        %v1763 = vld [vmem:[#allocation3 + $0x1] sm:$0x1]
        %v1764 = vld [vmem:[#allocation3 + $0x9] sm:$0x1]
        %v1765 = vld [vmem:[#allocation3 + $0x11] sm:$0x1]
        %v1766 = vld [vmem:[#allocation3 + $0x19] sm:$0x1]
        %v1767 = vld [vmem:[#allocation3 + $0x21] sm:$0x1]
        %v1768 = vld [vmem:[#allocation3 + $0x29] sm:$0x1]
        %v1769 = vld [vmem:[#allocation3 + $0x31] sm:$0x1]
        %v1770 = vld [vmem:[#allocation3 + $0x39] sm:$0x1]
        %1779 = vrot.lane.b32.xlu0 %v1763, 64
        %v1780 = vpop.permute.xlu0 %1779
        %1781 = vrot.lane.b32.xlu0 %v1764, 64
        %v1782 = vpop.permute.xlu0 %1781
        %1783 = vrot.lane.b32.xlu0 %v1765, 64
        %v1784 = vpop.permute.xlu0 %1783
        %1785 = vrot.lane.b32.xlu0 %v1766, 64
        %v1786 = vpop.permute.xlu0 %1785
        %1787 = vrot.lane.b32.xlu0 %v1767, 64
        %v1788 = vpop.permute.xlu0 %1787
        %1789 = vrot.lane.b32.xlu0 %v1768, 64
        %v1790 = vpop.permute.xlu0 %1789
        %1791 = vrot.lane.b32.xlu0 %v1769, 64
        %v1792 = vpop.permute.xlu0 %1791
        %1793 = vrot.lane.b32.xlu0 %v1770, 64
        %v1794 = vpop.permute.xlu0 %1793
        %v1803 = vsel %vm391, %v1755, %v1780
        %v1804 = vsel %vm391, %v1756, %v1782
        %v1805 = vsel %vm391, %v1757, %v1784
        %v1806 = vsel %vm391, %v1758, %v1786
        %v1807 = vsel %vm391, %v1759, %v1788
        %v1808 = vsel %vm391, %v1760, %v1790
        %v1809 = vsel %vm391, %v1761, %v1792
        %v1810 = vsel %vm391, %v1762, %v1794
        %v1811 = vpack.c.bf16 %v1803, %v1803
        %v1812 = vpack.c.bf16 %v1804, %v1804
        %v1813 = vpack.c.bf16 %v1805, %v1805
        %v1814 = vpack.c.bf16 %v1806, %v1806
        %v1815 = vpack.c.bf16 %v1807, %v1807
        %v1816 = vpack.c.bf16 %v1808, %v1808
        %v1817 = vpack.c.bf16 %v1809, %v1809
        %v1818 = vpack.c.bf16 %v1810, %v1810
        %v1827 = vunpack.c.l.b16 %v1811
        %v1828 = vunpack.c.l.b16 %v1812
        %v1829 = vunpack.c.l.b16 %v1813
        %v1830 = vunpack.c.l.b16 %v1814
        %v1831 = vunpack.c.l.b16 %v1815
        %v1832 = vunpack.c.l.b16 %v1816
        %v1833 = vunpack.c.l.b16 %v1817
        %v1834 = vunpack.c.l.b16 %v1818
        %v1835 = vrot.slane %v1828, 7
        %v1836 = vsel %vm959, %v1835, %v1827
        %v1837 = vrot.slane %v1829, 6
        %v1838 = vsel %vm962, %v1837, %v1836
        %v1839 = vrot.slane %v1830, 5
        %v1840 = vsel %vm965, %v1839, %v1838
        %v1841 = vrot.slane %v1831, 4
        %v1842 = vsel %vm968, %v1841, %v1840
        %v1843 = vrot.slane %v1832, 3
        %v1844 = vsel %vm971, %v1843, %v1842
        %v1845 = vrot.slane %v1833, 2
        %v1846 = vsel %vm974, %v1845, %v1844
        %v1847 = vrot.slane %v1834, 1
        %v1848 = vsel %vm977, %v1847, %v1846
        %v1849 = vpack.c.b16 %v1848, %v1848
        %1851 = vmatprep.subr.bf16.mxu0 0
        %1852 = vmatpush1.bf16.msra.mxu0 %v1020
        %1853 = vmatprep.subr.bf16.mxu0 0
        %1854 = vmatpush1.bf16.msra.mxu0 %v1019
        %1855 = vmatprep.subr.bf16.mxu0 0
        %1856 = vmatpush1.bf16.msra.mxu0 %v1018
        %1857 = vmatprep.subr.bf16.mxu0 0
        %1858 = vmatpush1.bf16.msra.mxu0 %v1017
        %1859 = vmatprep.subr.bf16.mxu0 0
        %1860 = vmatpush1.bf16.msra.mxu0 %v1016
        %1861 = vmatprep.subr.bf16.mxu0 0
        %1862 = vmatpush1.bf16.msra.mxu0 %v1015
        %1863 = vmatprep.subr.bf16.mxu0 0
        %1864 = vmatpush1.bf16.msra.mxu0 %v1014
        %1865 = vmatprep.subr.bf16.mxu0 0
        %1866 = vmatpush1.bf16.msra.mxu0 %v1013
        %1867 = vmatprep.subr.bf16.mxu0 0
        %1868 = vmatpush2.bf16.msra.mxu0 0
        %1869 = vmatprep.subr.bf16.mxu0 0
        %1870 = vmatpush2.bf16.msra.mxu0 0
        %1871 = vmatprep.subr.bf16.mxu0 0
        %1872 = vmatpush2.bf16.msra.mxu0 0
        %1873 = vmatprep.subr.bf16.mxu0 0
        %1874 = vmatpush2.bf16.msra.mxu0 0
        %1875 = vmatprep.subr.bf16.mxu0 0
        %1876 = vmatpush2.bf16.msra.mxu0 0
        %1877 = vmatprep.subr.bf16.mxu0 0
        %1878 = vmatpush2.bf16.msra.mxu0 0
        %1879 = vmatprep.subr.bf16.mxu0 0
        %1880 = vmatpush2.bf16.msra.mxu0 0
        %1881 = vmatprep.subr.bf16.mxu0 0
        %1882 = vmatpush2.bf16.msra.mxu0 0
        %1883 = vmatprep.mubr.bf16.mxu0 0
        %1884 = vmatmul.mubr.bf16.gmra.mxu0 %v1849
        %v1885 = vpop.f32.mrf.mxu0
        %v1886 = vadd.f32 %v940, %v1885
        %v1887 = vpop.f32.mrf.mxu0
        %v1888 = vpop.f32.mrf.mxu0
        %v1889 = vpop.f32.mrf.mxu0
        %1890 = vdwg.mxu0
        %1891 = vst.msk [vmem:[%s745] sm:$0xff] %vm391, %v1886
        %v1892 = vld [vmem:[#allocation3 + $0x7] sm:$0x1]
        %v1893 = vld [vmem:[#allocation3 + $0xf] sm:$0x1]
        %v1894 = vld [vmem:[#allocation3 + $0x17] sm:$0x1]
        %v1895 = vld [vmem:[#allocation3 + $0x1f] sm:$0x1]
        %v1896 = vld [vmem:[#allocation3 + $0x27] sm:$0x1]
        %v1897 = vld [vmem:[#allocation3 + $0x2f] sm:$0x1]
        %v1898 = vld [vmem:[#allocation3 + $0x37] sm:$0x1]
        %v1899 = vld [vmem:[#allocation3 + $0x3f] sm:$0x1]
        %v1900 = vld [vmem:[#allocation3] sm:$0x1]
        %v1901 = vld [vmem:[#allocation3 + $0x8] sm:$0x1]
        %v1902 = vld [vmem:[#allocation3 + $0x10] sm:$0x1]
        %v1903 = vld [vmem:[#allocation3 + $0x18] sm:$0x1]
        %v1904 = vld [vmem:[#allocation3 + $0x20] sm:$0x1]
        %v1905 = vld [vmem:[#allocation3 + $0x28] sm:$0x1]
        %v1906 = vld [vmem:[#allocation3 + $0x30] sm:$0x1]
        %v1907 = vld [vmem:[#allocation3 + $0x38] sm:$0x1]
        %1916 = vrot.lane.b32.xlu0 %v1900, 64
        %v1917 = vpop.permute.xlu0 %1916
        %1918 = vrot.lane.b32.xlu0 %v1901, 64
        %v1919 = vpop.permute.xlu0 %1918
        %1920 = vrot.lane.b32.xlu0 %v1902, 64
        %v1921 = vpop.permute.xlu0 %1920
        %1922 = vrot.lane.b32.xlu0 %v1903, 64
        %v1923 = vpop.permute.xlu0 %1922
        %1924 = vrot.lane.b32.xlu0 %v1904, 64
        %v1925 = vpop.permute.xlu0 %1924
        %1926 = vrot.lane.b32.xlu0 %v1905, 64
        %v1927 = vpop.permute.xlu0 %1926
        %1928 = vrot.lane.b32.xlu0 %v1906, 64
        %v1929 = vpop.permute.xlu0 %1928
        %1930 = vrot.lane.b32.xlu0 %v1907, 64
        %v1931 = vpop.permute.xlu0 %1930
        %v1940 = vsel %vm391, %v1892, %v1917
        %v1941 = vsel %vm391, %v1893, %v1919
        %v1942 = vsel %vm391, %v1894, %v1921
        %v1943 = vsel %vm391, %v1895, %v1923
        %v1944 = vsel %vm391, %v1896, %v1925
        %v1945 = vsel %vm391, %v1897, %v1927
        %v1946 = vsel %vm391, %v1898, %v1929
        %v1947 = vsel %vm391, %v1899, %v1931
        %v1948 = vpack.c.bf16 %v1940, %v1940
        %v1949 = vpack.c.bf16 %v1941, %v1941
        %v1950 = vpack.c.bf16 %v1942, %v1942
        %v1951 = vpack.c.bf16 %v1943, %v1943
        %v1952 = vpack.c.bf16 %v1944, %v1944
        %v1953 = vpack.c.bf16 %v1945, %v1945
        %v1954 = vpack.c.bf16 %v1946, %v1946
        %v1955 = vpack.c.bf16 %v1947, %v1947
        %v1964 = vunpack.c.l.b16 %v1948
        %v1965 = vunpack.c.l.b16 %v1949
        %v1966 = vunpack.c.l.b16 %v1950
        %v1967 = vunpack.c.l.b16 %v1951
        %v1968 = vunpack.c.l.b16 %v1952
        %v1969 = vunpack.c.l.b16 %v1953
        %v1970 = vunpack.c.l.b16 %v1954
        %v1971 = vunpack.c.l.b16 %v1955
        %v1972 = vrot.slane %v1965, 7
        %v1973 = vsel %vm959, %v1972, %v1964
        %v1974 = vrot.slane %v1966, 6
        %v1975 = vsel %vm962, %v1974, %v1973
        %v1976 = vrot.slane %v1967, 5
        %v1977 = vsel %vm965, %v1976, %v1975
        %v1978 = vrot.slane %v1968, 4
        %v1979 = vsel %vm968, %v1978, %v1977
        %v1980 = vrot.slane %v1969, 3
        %v1981 = vsel %vm971, %v1980, %v1979
        %v1982 = vrot.slane %v1970, 2
        %v1983 = vsel %vm974, %v1982, %v1981
        %v1984 = vrot.slane %v1971, 1
        %v1985 = vsel %vm977, %v1984, %v1983
        %v1986 = vpack.c.b16 %v1985, %v1985
        %1988 = vmatprep.subr.bf16.mxu0 0
        %1989 = vmatpush1.bf16.msra.mxu0 %v1020
        %1990 = vmatprep.subr.bf16.mxu0 0
        %1991 = vmatpush1.bf16.msra.mxu0 %v1019
        %1992 = vmatprep.subr.bf16.mxu0 0
        %1993 = vmatpush1.bf16.msra.mxu0 %v1018
        %1994 = vmatprep.subr.bf16.mxu0 0
        %1995 = vmatpush1.bf16.msra.mxu0 %v1017
        %1996 = vmatprep.subr.bf16.mxu0 0
        %1997 = vmatpush1.bf16.msra.mxu0 %v1016
        %1998 = vmatprep.subr.bf16.mxu0 0
        %1999 = vmatpush1.bf16.msra.mxu0 %v1015
        %2000 = vmatprep.subr.bf16.mxu0 0
        %2001 = vmatpush1.bf16.msra.mxu0 %v1014
        %2002 = vmatprep.subr.bf16.mxu0 0
        %2003 = vmatpush1.bf16.msra.mxu0 %v1013
        %2004 = vmatprep.subr.bf16.mxu0 0
        %2005 = vmatpush2.bf16.msra.mxu0 0
        %2006 = vmatprep.subr.bf16.mxu0 0
        %2007 = vmatpush2.bf16.msra.mxu0 0
        %2008 = vmatprep.subr.bf16.mxu0 0
        %2009 = vmatpush2.bf16.msra.mxu0 0
        %2010 = vmatprep.subr.bf16.mxu0 0
        %2011 = vmatpush2.bf16.msra.mxu0 0
        %2012 = vmatprep.subr.bf16.mxu0 0
        %2013 = vmatpush2.bf16.msra.mxu0 0
        %2014 = vmatprep.subr.bf16.mxu0 0
        %2015 = vmatpush2.bf16.msra.mxu0 0
        %2016 = vmatprep.subr.bf16.mxu0 0
        %2017 = vmatpush2.bf16.msra.mxu0 0
        %2018 = vmatprep.subr.bf16.mxu0 0
        %2019 = vmatpush2.bf16.msra.mxu0 0
        %2020 = vmatprep.mubr.bf16.mxu0 0
        %2021 = vmatmul.mubr.bf16.gmra.mxu0 %v1986
        %v2022 = vpop.f32.mrf.mxu0
        %v2023 = vadd.f32 %v940, %v2022
        %v2024 = vpop.f32.mrf.mxu0
        %v2025 = vpop.f32.mrf.mxu0
        %v2026 = vpop.f32.mrf.mxu0
        %2027 = vdwg.mxu0
        %2028 = vst.msk [vmem:[%s796] sm:$0xff] %vm391, %v2023
        %v2029 = vld [vmem:[#allocation2] sm:$0xff]
        %v2038 = vunpack.c.l.b16 %v864
        %v2039 = vunpack.c.l.b16 %v865
        %v2040 = vunpack.c.l.b16 %v866
        %v2041 = vunpack.c.l.b16 %v867
        %v2042 = vunpack.c.l.b16 %v868
        %v2043 = vunpack.c.l.b16 %v869
        %v2044 = vunpack.c.l.b16 %v870
        %v2045 = vunpack.c.l.b16 %v871
        %v2046 = vpack.c.b16 %v2039, %v2038
        %v2047 = vpack.c.b16 %v2041, %v2040
        %v2048 = vpack.c.b16 %v2043, %v2042
        %v2049 = vpack.c.b16 %v2045, %v2044
        %2054 = vmatprep.subr.bf16.mxu0 0
        %2055 = vmatpush1.bf16.msra.mxu0 0
        %2056 = vmatprep.subr.bf16.mxu0 0
        %2057 = vmatpush1.bf16.msra.mxu0 0
        %2058 = vmatprep.subr.bf16.mxu0 0
        %2059 = vmatpush1.bf16.msra.mxu0 0
        %2060 = vmatprep.subr.bf16.mxu0 0
        %2061 = vmatpush1.bf16.msra.mxu0 0
        %2062 = vmatprep.subr.bf16.mxu0 0
        %2063 = vmatpush1.bf16.msra.mxu0 %v2049
        %2064 = vmatprep.subr.bf16.mxu0 0
        %2065 = vmatpush1.bf16.msra.mxu0 %v2048
        %2066 = vmatprep.subr.bf16.mxu0 0
        %2067 = vmatpush1.bf16.msra.mxu0 %v2047
        %2068 = vmatprep.subr.bf16.mxu0 0
        %2069 = vmatpush1.bf16.msra.mxu0 %v2046
        %2070 = vmatprep.subr.bf16.mxu0 0
        %2071 = vmatpush2.bf16.msra.mxu0 0
        %2072 = vmatprep.subr.bf16.mxu0 0
        %2073 = vmatpush2.bf16.msra.mxu0 0
        %2074 = vmatprep.subr.bf16.mxu0 0
        %2075 = vmatpush2.bf16.msra.mxu0 0
        %2076 = vmatprep.subr.bf16.mxu0 0
        %2077 = vmatpush2.bf16.msra.mxu0 0
        %2078 = vmatprep.subr.bf16.mxu0 0
        %2079 = vmatpush2.bf16.msra.mxu0 0
        %2080 = vmatprep.subr.bf16.mxu0 0
        %2081 = vmatpush2.bf16.msra.mxu0 0
        %2082 = vmatprep.subr.bf16.mxu0 0
        %2083 = vmatpush2.bf16.msra.mxu0 0
        %2084 = vmatprep.subr.bf16.mxu0 0
        %2085 = vmatpush2.bf16.msra.mxu0 0
        %2086 = vmatprep.mubr.bf16.mxu0 0
        %2087 = vmatmul.mubr.bf16.gmra.mxu0 %v434
        %v2088 = vpop.f32.mrf.mxu0
        %v2089 = vadd.f32 0.0, %v2088
        %v2090 = vpop.f32.mrf.mxu0
        %v2091 = vpop.f32.mrf.mxu0
        %v2092 = vpop.f32.mrf.mxu0
        %2093 = vdwg.mxu0
        %v2094 = vadd.f32 %v2029, %v2089
        %v2095 = vtanh.pop %v2094
        %2096 = vst.msk [vmem:[%s271] sm:$0xff] %vm479, %v2095
        %s2097 = scalar_lea.vmem %s271, 56 [#allocation4]
        %2098 = vst.msk [vmem:[%s2097] sm:$0xff] %vm482, %v2095
        %v2099 = vld [vmem:[%s484] sm:$0xff]
        %v2100 = vpack.c.bf16 %v2095, %v2095
        %v2102 = vsel %vm391, %v2100, 0
        %2104 = vmatprep.subr.bf16.mxu0 0
        %2105 = vmatpush1.bf16.msra.mxu0 0
        %2106 = vmatprep.subr.bf16.mxu0 0
        %2107 = vmatpush1.bf16.msra.mxu0 0
        %2108 = vmatprep.subr.bf16.mxu0 0
        %2109 = vmatpush1.bf16.msra.mxu0 0
        %2110 = vmatprep.subr.bf16.mxu0 0
        %2111 = vmatpush1.bf16.msra.mxu0 0
        %2112 = vmatprep.subr.bf16.mxu0 0
        %2113 = vmatpush1.bf16.msra.mxu0 %v2049
        %2114 = vmatprep.subr.bf16.mxu0 0
        %2115 = vmatpush1.bf16.msra.mxu0 %v2048
        %2116 = vmatprep.subr.bf16.mxu0 0
        %2117 = vmatpush1.bf16.msra.mxu0 %v2047
        %2118 = vmatprep.subr.bf16.mxu0 0
        %2119 = vmatpush1.bf16.msra.mxu0 %v2046
        %2120 = vmatprep.subr.bf16.mxu0 0
        %2121 = vmatpush2.bf16.msra.mxu0 0
        %2122 = vmatprep.subr.bf16.mxu0 0
        %2123 = vmatpush2.bf16.msra.mxu0 0
        %2124 = vmatprep.subr.bf16.mxu0 0
        %2125 = vmatpush2.bf16.msra.mxu0 0
        %2126 = vmatprep.subr.bf16.mxu0 0
        %2127 = vmatpush2.bf16.msra.mxu0 0
        %2128 = vmatprep.subr.bf16.mxu0 0
        %2129 = vmatpush2.bf16.msra.mxu0 0
        %2130 = vmatprep.subr.bf16.mxu0 0
        %2131 = vmatpush2.bf16.msra.mxu0 0
        %2132 = vmatprep.subr.bf16.mxu0 0
        %2133 = vmatpush2.bf16.msra.mxu0 0
        %2134 = vmatprep.subr.bf16.mxu0 0
        %2135 = vmatpush2.bf16.msra.mxu0 0
        %2136 = vmatprep.mubr.bf16.mxu0 0
        %2137 = vmatmul.mubr.bf16.gmra.mxu0 %v2102
        %v2138 = vpop.f32.mrf.mxu0
        %v2139 = vadd.f32 0.0, %v2138
        %v2140 = vpop.f32.mrf.mxu0
        %v2141 = vpop.f32.mrf.mxu0
        %v2142 = vpop.f32.mrf.mxu0
        %2143 = vdwg.mxu0
        %v2144 = vadd.f32 %v2099, %v2139
        %v2145 = vtanh.pop %v2144
        %s2146 = scalar_lea.vmem %s271, 8 [#allocation4]
        %2147 = vst.msk [vmem:[%s2146] sm:$0xff] %vm479, %v2145
        %s2148 = scalar_lea.vmem %s271, 48 [#allocation4]
        %2149 = vst.msk [vmem:[%s2148] sm:$0xff] %vm482, %v2145
        %v2150 = vld [vmem:[%s537] sm:$0xff]
        %v2151 = vpack.c.bf16 %v2145, %v2145
        %v2153 = vsel %vm391, %v2151, 0
        %2155 = vmatprep.subr.bf16.mxu0 0
        %2156 = vmatpush1.bf16.msra.mxu0 0
        %2157 = vmatprep.subr.bf16.mxu0 0
        %2158 = vmatpush1.bf16.msra.mxu0 0
        %2159 = vmatprep.subr.bf16.mxu0 0
        %2160 = vmatpush1.bf16.msra.mxu0 0
        %2161 = vmatprep.subr.bf16.mxu0 0
        %2162 = vmatpush1.bf16.msra.mxu0 0
        %2163 = vmatprep.subr.bf16.mxu0 0
        %2164 = vmatpush1.bf16.msra.mxu0 %v2049
        %2165 = vmatprep.subr.bf16.mxu0 0
        %2166 = vmatpush1.bf16.msra.mxu0 %v2048
        %2167 = vmatprep.subr.bf16.mxu0 0
        %2168 = vmatpush1.bf16.msra.mxu0 %v2047
        %2169 = vmatprep.subr.bf16.mxu0 0
        %2170 = vmatpush1.bf16.msra.mxu0 %v2046
        %2171 = vmatprep.subr.bf16.mxu0 0
        %2172 = vmatpush2.bf16.msra.mxu0 0
        %2173 = vmatprep.subr.bf16.mxu0 0
        %2174 = vmatpush2.bf16.msra.mxu0 0
        %2175 = vmatprep.subr.bf16.mxu0 0
        %2176 = vmatpush2.bf16.msra.mxu0 0
        %2177 = vmatprep.subr.bf16.mxu0 0
        %2178 = vmatpush2.bf16.msra.mxu0 0
        %2179 = vmatprep.subr.bf16.mxu0 0
        %2180 = vmatpush2.bf16.msra.mxu0 0
        %2181 = vmatprep.subr.bf16.mxu0 0
        %2182 = vmatpush2.bf16.msra.mxu0 0
        %2183 = vmatprep.subr.bf16.mxu0 0
        %2184 = vmatpush2.bf16.msra.mxu0 0
        %2185 = vmatprep.subr.bf16.mxu0 0
        %2186 = vmatpush2.bf16.msra.mxu0 0
        %2187 = vmatprep.mubr.bf16.mxu0 0
        %2188 = vmatmul.mubr.bf16.gmra.mxu0 %v2153
        %v2189 = vpop.f32.mrf.mxu0
        %v2190 = vadd.f32 0.0, %v2189
        %v2191 = vpop.f32.mrf.mxu0
        %v2192 = vpop.f32.mrf.mxu0
        %v2193 = vpop.f32.mrf.mxu0
        %2194 = vdwg.mxu0
        %v2195 = vadd.f32 %v2150, %v2190
        %v2196 = vtanh.pop %v2195
        %s2197 = scalar_lea.vmem %s271, 16 [#allocation4]
        %2198 = vst.msk [vmem:[%s2197] sm:$0xff] %vm479, %v2196
        %s2199 = scalar_lea.vmem %s271, 40 [#allocation4]
        %2200 = vst.msk [vmem:[%s2199] sm:$0xff] %vm482, %v2196
        %v2201 = vld [vmem:[%s590] sm:$0xff]
        %v2202 = vpack.c.bf16 %v2196, %v2196
        %v2204 = vsel %vm391, %v2202, 0
        %2206 = vmatprep.subr.bf16.mxu0 0
        %2207 = vmatpush1.bf16.msra.mxu0 0
        %2208 = vmatprep.subr.bf16.mxu0 0
        %2209 = vmatpush1.bf16.msra.mxu0 0
        %2210 = vmatprep.subr.bf16.mxu0 0
        %2211 = vmatpush1.bf16.msra.mxu0 0
        %2212 = vmatprep.subr.bf16.mxu0 0
        %2213 = vmatpush1.bf16.msra.mxu0 0
        %2214 = vmatprep.subr.bf16.mxu0 0
        %2215 = vmatpush1.bf16.msra.mxu0 %v2049
        %2216 = vmatprep.subr.bf16.mxu0 0
        %2217 = vmatpush1.bf16.msra.mxu0 %v2048
        %2218 = vmatprep.subr.bf16.mxu0 0
        %2219 = vmatpush1.bf16.msra.mxu0 %v2047
        %2220 = vmatprep.subr.bf16.mxu0 0
        %2221 = vmatpush1.bf16.msra.mxu0 %v2046
        %2222 = vmatprep.subr.bf16.mxu0 0
        %2223 = vmatpush2.bf16.msra.mxu0 0
        %2224 = vmatprep.subr.bf16.mxu0 0
        %2225 = vmatpush2.bf16.msra.mxu0 0
        %2226 = vmatprep.subr.bf16.mxu0 0
        %2227 = vmatpush2.bf16.msra.mxu0 0
        %2228 = vmatprep.subr.bf16.mxu0 0
        %2229 = vmatpush2.bf16.msra.mxu0 0
        %2230 = vmatprep.subr.bf16.mxu0 0
        %2231 = vmatpush2.bf16.msra.mxu0 0
        %2232 = vmatprep.subr.bf16.mxu0 0
        %2233 = vmatpush2.bf16.msra.mxu0 0
        %2234 = vmatprep.subr.bf16.mxu0 0
        %2235 = vmatpush2.bf16.msra.mxu0 0
        %2236 = vmatprep.subr.bf16.mxu0 0
        %2237 = vmatpush2.bf16.msra.mxu0 0
        %2238 = vmatprep.mubr.bf16.mxu0 0
        %2239 = vmatmul.mubr.bf16.gmra.mxu0 %v2204
        %v2240 = vpop.f32.mrf.mxu0
        %v2241 = vadd.f32 0.0, %v2240
        %v2242 = vpop.f32.mrf.mxu0
        %v2243 = vpop.f32.mrf.mxu0
        %v2244 = vpop.f32.mrf.mxu0
        %2245 = vdwg.mxu0
        %v2246 = vadd.f32 %v2201, %v2241
        %v2247 = vtanh.pop %v2246
        %s2248 = scalar_lea.vmem %s271, 24 [#allocation4]
        %2249 = vst.msk [vmem:[%s2248] sm:$0xff] %vm479, %v2247
        %s2250 = scalar_lea.vmem %s271, 32 [#allocation4]
        %2251 = vst.msk [vmem:[%s2250] sm:$0xff] %vm482, %v2247
        %v2252 = vld [vmem:[%s643] sm:$0xff]
        %v2253 = vpack.c.bf16 %v2247, %v2247
        %v2255 = vsel %vm391, %v2253, 0
        %2257 = vmatprep.subr.bf16.mxu0 0
        %2258 = vmatpush1.bf16.msra.mxu0 0
        %2259 = vmatprep.subr.bf16.mxu0 0
        %2260 = vmatpush1.bf16.msra.mxu0 0
        %2261 = vmatprep.subr.bf16.mxu0 0
        %2262 = vmatpush1.bf16.msra.mxu0 0
        %2263 = vmatprep.subr.bf16.mxu0 0
        %2264 = vmatpush1.bf16.msra.mxu0 0
        %2265 = vmatprep.subr.bf16.mxu0 0
        %2266 = vmatpush1.bf16.msra.mxu0 %v2049
        %2267 = vmatprep.subr.bf16.mxu0 0
        %2268 = vmatpush1.bf16.msra.mxu0 %v2048
        %2269 = vmatprep.subr.bf16.mxu0 0
        %2270 = vmatpush1.bf16.msra.mxu0 %v2047
        %2271 = vmatprep.subr.bf16.mxu0 0
        %2272 = vmatpush1.bf16.msra.mxu0 %v2046
        %2273 = vmatprep.subr.bf16.mxu0 0
        %2274 = vmatpush2.bf16.msra.mxu0 0
        %2275 = vmatprep.subr.bf16.mxu0 0
        %2276 = vmatpush2.bf16.msra.mxu0 0
        %2277 = vmatprep.subr.bf16.mxu0 0
        %2278 = vmatpush2.bf16.msra.mxu0 0
        %2279 = vmatprep.subr.bf16.mxu0 0
        %2280 = vmatpush2.bf16.msra.mxu0 0
        %2281 = vmatprep.subr.bf16.mxu0 0
        %2282 = vmatpush2.bf16.msra.mxu0 0
        %2283 = vmatprep.subr.bf16.mxu0 0
        %2284 = vmatpush2.bf16.msra.mxu0 0
        %2285 = vmatprep.subr.bf16.mxu0 0
        %2286 = vmatpush2.bf16.msra.mxu0 0
        %2287 = vmatprep.subr.bf16.mxu0 0
        %2288 = vmatpush2.bf16.msra.mxu0 0
        %2289 = vmatprep.mubr.bf16.mxu0 0
        %2290 = vmatmul.mubr.bf16.gmra.mxu0 %v2255
        %v2291 = vpop.f32.mrf.mxu0
        %v2292 = vadd.f32 0.0, %v2291
        %v2293 = vpop.f32.mrf.mxu0
        %v2294 = vpop.f32.mrf.mxu0
        %v2295 = vpop.f32.mrf.mxu0
        %2296 = vdwg.mxu0
        %v2297 = vadd.f32 %v2252, %v2292
        %v2298 = vtanh.pop %v2297
        %2299 = vst.msk [vmem:[%s2250] sm:$0xff] %vm479, %v2298
        %2300 = vst.msk [vmem:[%s2248] sm:$0xff] %vm482, %v2298
        %v2301 = vld [vmem:[%s694] sm:$0xff]
        %v2302 = vpack.c.bf16 %v2298, %v2298
        %v2304 = vsel %vm391, %v2302, 0
        %2306 = vmatprep.subr.bf16.mxu0 0
        %2307 = vmatpush1.bf16.msra.mxu0 0
        %2308 = vmatprep.subr.bf16.mxu0 0
        %2309 = vmatpush1.bf16.msra.mxu0 0
        %2310 = vmatprep.subr.bf16.mxu0 0
        %2311 = vmatpush1.bf16.msra.mxu0 0
        %2312 = vmatprep.subr.bf16.mxu0 0
        %2313 = vmatpush1.bf16.msra.mxu0 0
        %2314 = vmatprep.subr.bf16.mxu0 0
        %2315 = vmatpush1.bf16.msra.mxu0 %v2049
        %2316 = vmatprep.subr.bf16.mxu0 0
        %2317 = vmatpush1.bf16.msra.mxu0 %v2048
        %2318 = vmatprep.subr.bf16.mxu0 0
        %2319 = vmatpush1.bf16.msra.mxu0 %v2047
        %2320 = vmatprep.subr.bf16.mxu0 0
        %2321 = vmatpush1.bf16.msra.mxu0 %v2046
        %2322 = vmatprep.subr.bf16.mxu0 0
        %2323 = vmatpush2.bf16.msra.mxu0 0
        %2324 = vmatprep.subr.bf16.mxu0 0
        %2325 = vmatpush2.bf16.msra.mxu0 0
        %2326 = vmatprep.subr.bf16.mxu0 0
        %2327 = vmatpush2.bf16.msra.mxu0 0
        %2328 = vmatprep.subr.bf16.mxu0 0
        %2329 = vmatpush2.bf16.msra.mxu0 0
        %2330 = vmatprep.subr.bf16.mxu0 0
        %2331 = vmatpush2.bf16.msra.mxu0 0
        %2332 = vmatprep.subr.bf16.mxu0 0
        %2333 = vmatpush2.bf16.msra.mxu0 0
        %2334 = vmatprep.subr.bf16.mxu0 0
        %2335 = vmatpush2.bf16.msra.mxu0 0
        %2336 = vmatprep.subr.bf16.mxu0 0
        %2337 = vmatpush2.bf16.msra.mxu0 0
        %2338 = vmatprep.mubr.bf16.mxu0 0
        %2339 = vmatmul.mubr.bf16.gmra.mxu0 %v2304
        %v2340 = vpop.f32.mrf.mxu0
        %v2341 = vadd.f32 0.0, %v2340
        %v2342 = vpop.f32.mrf.mxu0
        %v2343 = vpop.f32.mrf.mxu0
        %v2344 = vpop.f32.mrf.mxu0
        %2345 = vdwg.mxu0
        %v2346 = vadd.f32 %v2301, %v2341
        %v2347 = vtanh.pop %v2346
        %2348 = vst.msk [vmem:[%s2199] sm:$0xff] %vm479, %v2347
        %2349 = vst.msk [vmem:[%s2197] sm:$0xff] %vm482, %v2347
        %v2350 = vld [vmem:[%s745] sm:$0xff]
        %v2351 = vpack.c.bf16 %v2347, %v2347
        %v2353 = vsel %vm391, %v2351, 0
        %2355 = vmatprep.subr.bf16.mxu0 0
        %2356 = vmatpush1.bf16.msra.mxu0 0
        %2357 = vmatprep.subr.bf16.mxu0 0
        %2358 = vmatpush1.bf16.msra.mxu0 0
        %2359 = vmatprep.subr.bf16.mxu0 0
        %2360 = vmatpush1.bf16.msra.mxu0 0
        %2361 = vmatprep.subr.bf16.mxu0 0
        %2362 = vmatpush1.bf16.msra.mxu0 0
        %2363 = vmatprep.subr.bf16.mxu0 0
        %2364 = vmatpush1.bf16.msra.mxu0 %v2049
        %2365 = vmatprep.subr.bf16.mxu0 0
        %2366 = vmatpush1.bf16.msra.mxu0 %v2048
        %2367 = vmatprep.subr.bf16.mxu0 0
        %2368 = vmatpush1.bf16.msra.mxu0 %v2047
        %2369 = vmatprep.subr.bf16.mxu0 0
        %2370 = vmatpush1.bf16.msra.mxu0 %v2046
        %2371 = vmatprep.subr.bf16.mxu0 0
        %2372 = vmatpush2.bf16.msra.mxu0 0
        %2373 = vmatprep.subr.bf16.mxu0 0
        %2374 = vmatpush2.bf16.msra.mxu0 0
        %2375 = vmatprep.subr.bf16.mxu0 0
        %2376 = vmatpush2.bf16.msra.mxu0 0
        %2377 = vmatprep.subr.bf16.mxu0 0
        %2378 = vmatpush2.bf16.msra.mxu0 0
        %2379 = vmatprep.subr.bf16.mxu0 0
        %2380 = vmatpush2.bf16.msra.mxu0 0
        %2381 = vmatprep.subr.bf16.mxu0 0
        %2382 = vmatpush2.bf16.msra.mxu0 0
        %2383 = vmatprep.subr.bf16.mxu0 0
        %2384 = vmatpush2.bf16.msra.mxu0 0
        %2385 = vmatprep.subr.bf16.mxu0 0
        %2386 = vmatpush2.bf16.msra.mxu0 0
        %2387 = vmatprep.mubr.bf16.mxu0 0
        %2388 = vmatmul.mubr.bf16.gmra.mxu0 %v2353
        %v2389 = vpop.f32.mrf.mxu0
        %v2390 = vadd.f32 0.0, %v2389
        %v2391 = vpop.f32.mrf.mxu0
        %v2392 = vpop.f32.mrf.mxu0
        %v2393 = vpop.f32.mrf.mxu0
        %2394 = vdwg.mxu0
        %v2395 = vadd.f32 %v2350, %v2390
        %v2396 = vtanh.pop %v2395
        %2397 = vst.msk [vmem:[%s2148] sm:$0xff] %vm479, %v2396
        %2398 = vst.msk [vmem:[%s2146] sm:$0xff] %vm482, %v2396
        %v2399 = vld [vmem:[%s796] sm:$0xff]
        %v2400 = vpack.c.bf16 %v2396, %v2396
        %v2402 = vsel %vm391, %v2400, 0
        %2404 = vmatprep.subr.bf16.mxu0 0
        %2405 = vmatpush1.bf16.msra.mxu0 0
        %2406 = vmatprep.subr.bf16.mxu0 0
        %2407 = vmatpush1.bf16.msra.mxu0 0
        %2408 = vmatprep.subr.bf16.mxu0 0
        %2409 = vmatpush1.bf16.msra.mxu0 0
        %2410 = vmatprep.subr.bf16.mxu0 0
        %2411 = vmatpush1.bf16.msra.mxu0 0
        %2412 = vmatprep.subr.bf16.mxu0 0
        %2413 = vmatpush1.bf16.msra.mxu0 %v2049
        %2414 = vmatprep.subr.bf16.mxu0 0
        %2415 = vmatpush1.bf16.msra.mxu0 %v2048
        %2416 = vmatprep.subr.bf16.mxu0 0
        %2417 = vmatpush1.bf16.msra.mxu0 %v2047
        %2418 = vmatprep.subr.bf16.mxu0 0
        %2419 = vmatpush1.bf16.msra.mxu0 %v2046
        %2420 = vmatprep.subr.bf16.mxu0 0
        %2421 = vmatpush2.bf16.msra.mxu0 0
        %2422 = vmatprep.subr.bf16.mxu0 0
        %2423 = vmatpush2.bf16.msra.mxu0 0
        %2424 = vmatprep.subr.bf16.mxu0 0
        %2425 = vmatpush2.bf16.msra.mxu0 0
        %2426 = vmatprep.subr.bf16.mxu0 0
        %2427 = vmatpush2.bf16.msra.mxu0 0
        %2428 = vmatprep.subr.bf16.mxu0 0
        %2429 = vmatpush2.bf16.msra.mxu0 0
        %2430 = vmatprep.subr.bf16.mxu0 0
        %2431 = vmatpush2.bf16.msra.mxu0 0
        %2432 = vmatprep.subr.bf16.mxu0 0
        %2433 = vmatpush2.bf16.msra.mxu0 0
        %2434 = vmatprep.subr.bf16.mxu0 0
        %2435 = vmatpush2.bf16.msra.mxu0 0
        %2436 = vmatprep.mubr.bf16.mxu0 0
        %2437 = vmatmul.mubr.bf16.gmra.mxu0 %v2402
        %v2438 = vpop.f32.mrf.mxu0
        %v2439 = vadd.f32 0.0, %v2438
        %v2440 = vpop.f32.mrf.mxu0
        %v2441 = vpop.f32.mrf.mxu0
        %v2442 = vpop.f32.mrf.mxu0
        %2443 = vdwg.mxu0
        %v2444 = vadd.f32 %v2399, %v2439
        %v2445 = vtanh.pop %v2444
        %2446 = vst.msk [vmem:[%s2097] sm:$0xff] %vm479, %v2445
        %2447 = vst.msk [vmem:[%s271] sm:$0xff] %vm482, %v2445
        %s2448 = sand.u32 %s181, 1
        %s2449 = scalar_lea.sflag [#allocation5], %s2448
        %s2450 = sand.u32 %s181, 1
        %s2451 = smul.addr %s2450, 64
        %s2452 = scalar_lea.vmem [#allocation4], %s2451
        // Predicated region
        $region49: #{hilbert_renet_forward.1} parent=47 // pred_check
          %p2453 = pneg %p191
        $region50: #{hilbert_renet_forward.1} parent=47 // pred_check_branch
          %2455 = sbr.rel (%p2453) target = $region52
        $region51: #{hilbert_renet_forward.1} parent=47 // pred_region
          %s2457 = ssub.s32 1024, 1024
          %2458 = vsyncadd %s2449, %s2457
          %s2459 = smul.addr %s21, 8
          %s2460 = smul.addr %s2459, 128
          %s2461 = scalar_lea.hbm %s7, %s2460
          %s2462 = sshll.u32 %s2452, 4
          %s2463 = int_to_ptr.vmem [resolvable:$true] %s2462
          %2468 = dma.vmem_to_hbm [thread:$0]  %s2463, 1024, %s2461, %s2449, 128, 128, 8
        $region52: #{hilbert_renet_forward.1} parent=47 // pred_fallthru
          _
      $region48: #{hilbert_renet_forward.1} parent=5 // pred_fallthru
        _
      %p2469 = scmp.le.s32.totalorder 2, %s16
      // Predicated region
      $region53: #{hilbert_renet_forward.1} parent=5 // pred_check
        %p2470 = pneg %p2469
      $region54: #{hilbert_renet_forward.1} parent=5 // pred_check_branch
        %2472 = sbr.rel (%p2470) target = $region56
      $region55: #{hilbert_renet_forward.1} parent=5 // pred_region
        %s2473 = ssub.s32 %s16, 2
        // Predicated region
        $region57: #{hilbert_renet_forward.1} parent=55 // pred_check
          %p2474 = pneg %p197
        $region58: #{hilbert_renet_forward.1} parent=55 // pred_check_branch
          %2476 = sbr.rel (%p2474) target = $region60
        $region59: #{hilbert_renet_forward.1} parent=55 // pred_region
          %s2477 = sand.u32 %s182, 1
          %s2478 = scalar_lea.sflag [#allocation5], %s2477
          %s2479 = sand.u32 %s182, 1
          %s2480 = smul.addr %s2479, 64
          %s2481 = scalar_lea.vmem [#allocation4], %s2480
          %2482 = dma.done %s2478, 1024
        $region60: #{hilbert_renet_forward.1} parent=55 // pred_fallthru
          _
      $region56: #{hilbert_renet_forward.1} parent=5 // pred_fallthru
        _
    $region6: #{hilbert_renet_forward.1} parent=1 // loop_footer
      %s20 = sadd.s32 1, %s16
    $region7: #{hilbert_renet_forward.1} parent=1 // loop_footer_branch
      %15 = sbr.rel target = $region3
    $region8: #{hilbert_renet_forward.1} parent=1 // loop_exit
      _
    %2483 = vsyncpa [#allocation5], 1
    %s2484 = scalar_lea.sflag [#allocation5], 1
    %2485 = vsyncpa %s2484, 1

</llo_original>
